<compile_context>
chip_gen: v7x
topology: tpu7x:2x2x1
jax: 0.10.0
libtpu: 0.0.40
codegen_flags: <defaults>
</compile_context>

<pallas_src>
import functools

import jax
import jax.numpy as jnp
import numpy as np
from jax.experimental import pallas as pl
from jax.experimental.pallas import tpu as pltpu

MATMUL_DTYPE = jnp.bfloat16  # MXU input dtype (accumulation stays f32)


# ----------------------------------------------------------------------------
# Fused Pallas kernel (one batch element per grid step).
#   x_ref : (1, Cin, H*W)        bf16   flattened input image (row-major h,w)
#   u_ref : (H*W, 4*H*W)         bf16   bilinear-2x interpolation matrix (kron)
#   w*_ref: (Cout, 9*Cin)        bf16   conv weights packed per (kh, kw, ci)
#   b*_ref: (Cout, 1)            f32    conv bias
#   o_ref : (1, Cout, 4*H*W)     f32
# ----------------------------------------------------------------------------
def _fused_recon_kernel(x_ref, u_ref, w1_ref, b1_ref, w2_ref, b2_ref,
                        w3_ref, b3_ref, o_ref, *, h2, w2):
    hw = h2 * w2

    def conv3x3(act, w_ref, b_ref, relu):
        # act: (C, hw) f32, spatial flattened row-major (h major, w minor).
        c = act.shape[0]
        pad = w2 + 1  # covers every flat shift s = dh*w2 + dw, |s| <= w2 + 1
        zeros = jnp.zeros((c, pad), jnp.float32)
        actp = jnp.concatenate([zeros, act, zeros], axis=1)        # (c, hw + 2*pad)
        wcoord = jax.lax.broadcasted_iota(jnp.int32, (c, hw), 1) % w2
        taps = []
        for dh in (-1, 0, 1):
            for dw in (-1, 0, 1):
                s = dh * w2 + dw
                t = actp[:, pad + s: pad + s + hw]                 # static lane slice
                # h-boundary is handled by the zero padding; mask the w-boundary
                # cases where the flat shift wraps into the adjacent row.
                if dw == -1:
                    t = jnp.where(wcoord > 0, t, 0.0)
                elif dw == 1:
                    t = jnp.where(wcoord < w2 - 1, t, 0.0)
                taps.append(t)
        cols = jnp.concatenate(taps, axis=0).astype(w_ref.dtype)   # (9c, hw)
        acc = jnp.dot(w_ref[...], cols, preferred_element_type=jnp.float32)
        acc = acc + b_ref[...]                                     # (Cout,1) bcast over lanes
        return jnp.maximum(acc, 0.0) if relu else acc

    # self.up (bilinear 2x, align_corners=False) as one interpolation GEMM, then ReLU
    up = jnp.dot(x_ref[0], u_ref[...], preferred_element_type=jnp.float32)  # (Cin, hw)
    act = jnp.maximum(up, 0.0)

    act = conv3x3(act, w1_ref, b1_ref, relu=True)    # convblock.conv1 + relu
    act = conv3x3(act, w2_ref, b2_ref, relu=True)    # convblock.conv2 + relu
    act = jnp.maximum(act, 0.0)                      # outer relu (numeric no-op)
    out = conv3x3(act, w3_ref, b3_ref, relu=False)   # final conv (Cout channels)
    o_ref[0] = out.astype(o_ref.dtype)


# ----------------------------------------------------------------------------
# Host-side (trace-time) constant builders.
# ----------------------------------------------------------------------------
def _upsample_matrix_np(size):
    """1-D bilinear 2x upsample operator (align_corners=False), shape (2*size, size)."""
    out = 2 * size
    dst = np.arange(out, dtype=np.float64)
    src = np.maximum((dst + 0.5) * 0.5 - 0.5, 0.0)
    i0 = np.floor(src).astype(np.int64)
    i1 = np.minimum(i0 + 1, size - 1)
    lam = src - i0
    u = np.zeros((out, size), dtype=np.float64)
    u[np.arange(out), i0] += 1.0 - lam
    u[np.arange(out), i1] += lam
    return u


def _bilinear_kron_matrix(h, w):
    """(h*w, 2h*2w) matrix M with upsampled_flat = x_flat @ M (row-major flattening)."""
    u2d = np.kron(_upsample_matrix_np(h), _upsample_matrix_np(w))  # (2h*2w, h*w)
    return jnp.asarray(u2d.T, dtype=MATMUL_DTYPE)


def _pack_conv_weights(w_hwio):
    """(3,3,Cin,Cout) HWIO -> (Cout, 9*Cin), matching in-kernel tap order (kh,kw,ci)."""
    cout = w_hwio.shape[-1]
    return jnp.transpose(w_hwio, (3, 0, 1, 2)).reshape(cout, -1).astype(MATMUL_DTYPE)


# ----------------------------------------------------------------------------
# recon_model forward (NCHW in / NCHW out, like the PyTorch module)
# ----------------------------------------------------------------------------
def recon_model_forward(x_nchw, params):
    n, cin, h, w = x_nchw.shape
    h2, w2 = 2 * h, 2 * w
    hw_in, hw_out = h * w, h2 * w2
    cout = params["c1_w"].shape[-1]

    u = _bilinear_kron_matrix(h, w)                      # (hw_in, hw_out) bf16 constant
    x_flat = x_nchw.reshape(n, cin, hw_in).astype(MATMUL_DTYPE)
    cw1 = _pack_conv_weights(params["cb1_w"]); cb1 = params["cb1_b"].reshape(cin, 1)
    cw2 = _pack_conv_weights(params["cb2_w"]); cb2 = params["cb2_b"].reshape(cin, 1)
    cw3 = _pack_conv_weights(params["c1_w"]);  cb3 = params["c1_b"].reshape(cout, 1)

    const = lambda i: (0, 0)   # constant block index -> DMA'd once across the grid
    out = pl.pallas_call(
        functools.partial(_fused_recon_kernel, h2=h2, w2=w2),
        out_shape=jax.ShapeDtypeStruct((n, cout, hw_out), jnp.float32),
        grid=(n,),
        in_specs=[
            pl.BlockSpec((1, cin, hw_in), lambda i: (i, 0, 0)),
            pl.BlockSpec((hw_in, hw_out), const),
            pl.BlockSpec((cin, 9 * cin), const),
            pl.BlockSpec((cin, 1), const),
            pl.BlockSpec((cin, 9 * cin), const),
            pl.BlockSpec((cin, 1), const),
            pl.BlockSpec((cout, 9 * cin), const),
            pl.BlockSpec((cout, 1), const),
        ],
        out_specs=pl.BlockSpec((1, cout, hw_out), lambda i: (i, 0, 0)),
        compiler_params=pltpu.CompilerParams(
            dimension_semantics=("parallel",)),          # v7x: batch over both TCs
    )(x_flat, u, cw1, cb1, cw2, cb2, cw3, cb3)
    return out.reshape(n, cout, h2, w2)


# ----------------------------------------------------------------------------
# Deterministic parameter init (weights stored HWIO i.e. (3, 3, Cin, Cout)).
# ----------------------------------------------------------------------------
def init_params(key, cin, cout):
    k1, k2, k3, k4, k5, k6 = jax.random.split(key, 6)

    def uniform(k, shape, bound):
        return jax.random.uniform(k, shape, jnp.float32, -bound, bound)

    kaiming = 1.0 / float(np.sqrt(cin * 9))                 # torch conv default scale
    xavier = float(np.sqrt(6.0 / (cin * 9 + cout * 9)))     # xavier_uniform_
    return {
        "cb1_w": uniform(k1, (3, 3, cin, cin), kaiming),
        "cb1_b": uniform(k2, (cin,), kaiming),
        "cb2_w": uniform(k3, (3, 3, cin, cin), kaiming),
        "cb2_b": uniform(k4, (cin,), kaiming),
        "c1_w": uniform(k5, (3, 3, cin, cout), xavier),
        "c1_b": uniform(k6, (cout,), kaiming),
    }


# ----------------------------------------------------------------------------
# Pure-JAX f32 reference (gather upsample + lax.conv) to validate the fused kernel.
# ----------------------------------------------------------------------------
def _upsample_indices(size):
    dst = jnp.arange(2 * size, dtype=jnp.float32)
    src = jnp.maximum((dst + 0.5) * 0.5 - 0.5, 0.0)
    i0 = jnp.floor(src).astype(jnp.int32)
    i1 = jnp.minimum(i0 + 1, size - 1)
    lam = src - i0.astype(jnp.float32)
    return i0, i1, lam


def bilinear_upsample_2x_nhwc(x):
    n, h, w, c = x.shape
    hi0, hi1, hl = _upsample_indices(h)
    wi0, wi1, wl = _upsample_indices(w)
    xh = (x[:, hi0] * (1.0 - hl)[None, :, None, None]
          + x[:, hi1] * hl[None, :, None, None])
    xw = (xh[:, :, wi0] * (1.0 - wl)[None, None, :, None]
          + xh[:, :, wi1] * wl[None, None, :, None])
    return xw


def _conv_ref(x, w, b, relu):
    y = jax.lax.conv_general_dilated(
        x, w, window_strides=(1, 1), padding="SAME",
        dimension_numbers=("NHWC", "HWIO", "NHWC"))
    y = y + b[None, None, None, :]
    return jnp.maximum(y, 0.0) if relu else y


def reference_forward(x_nchw, params):
    x = jnp.transpose(x_nchw, (0, 2, 3, 1))
    x = bilinear_upsample_2x_nhwc(x)
    x = jnp.maximum(x, 0.0)
    x = _conv_ref(x, params["cb1_w"], params["cb1_b"], True)
    x = _conv_ref(x, params["cb2_w"], params["cb2_b"], True)
    x = jnp.maximum(x, 0.0)
    x = _conv_ref(x, params["c1_w"], params["c1_b"], False)
    return jnp.transpose(x, (0, 3, 1, 2))


if __name__ == "__main__":
    key = jax.random.PRNGKey(0)
    kx, kp = jax.random.split(key)

    in_channels, out_channels = 4, 8
    x = jax.random.normal(kx, (2, in_channels, 16, 16), jnp.float32)  # NCHW
    params = init_params(kp, in_channels, out_channels)

    fwd = jax.jit(recon_model_forward)
    y = fwd(x, params)
    jax.block_until_ready(y)
    assert y.shape == (2, out_channels, 32, 32), y.shape

    y_ref = reference_forward(x, params)
    # tolerance covers bf16 MXU inputs (f32 accumulation) vs the f32 reference
    np.testing.assert_allclose(np.asarray(y), np.asarray(y_ref), atol=5e-2, rtol=5e-2)
    print("KERNEL_OK")
</pallas_src>

<mosaic_0001>
module attributes {stable_mosaic.version = 11 : i64} {
  func.func @_fused_recon_kernel(%arg0: i32, %arg1: memref<1x4x256xbf16, #tpu.memory_space<vmem>>, %arg2: memref<256x1024xbf16, #tpu.memory_space<vmem>>, %arg3: memref<4x36xbf16, #tpu.memory_space<vmem>>, %arg4: memref<4x1xf32, #tpu.memory_space<vmem>>, %arg5: memref<4x36xbf16, #tpu.memory_space<vmem>>, %arg6: memref<4x1xf32, #tpu.memory_space<vmem>>, %arg7: memref<8x36xbf16, #tpu.memory_space<vmem>>, %arg8: memref<8x1xf32, #tpu.memory_space<vmem>>, %arg9: memref<1x8x1024xf32, #tpu.memory_space<vmem>>) attributes {dimension_semantics = [#tpu.dimension_semantics<parallel>], iteration_bounds = array<i64: 2>, scalar_prefetch = 0 : i64, scratch_operands = 0 : i64, tpu.core_type = #tpu.core_type<tc>, window_params = [{transform_indices = @transform_0, window_bounds = array<i64: 1, 4, 256>}, {pipeline_mode = #tpu.pipeline_mode<synchronous>, transform_indices = @transform_1, window_bounds = array<i64: 256, 1024>}, {pipeline_mode = #tpu.pipeline_mode<synchronous>, transform_indices = @transform_2, window_bounds = array<i64: 4, 36>}, {pipeline_mode = #tpu.pipeline_mode<synchronous>, transform_indices = @transform_3, window_bounds = array<i64: 4, 1>}, {pipeline_mode = #tpu.pipeline_mode<synchronous>, transform_indices = @transform_4, window_bounds = array<i64: 4, 36>}, {pipeline_mode = #tpu.pipeline_mode<synchronous>, transform_indices = @transform_5, window_bounds = array<i64: 4, 1>}, {pipeline_mode = #tpu.pipeline_mode<synchronous>, transform_indices = @transform_6, window_bounds = array<i64: 8, 36>}, {pipeline_mode = #tpu.pipeline_mode<synchronous>, transform_indices = @transform_7, window_bounds = array<i64: 8, 1>}, {transform_indices = @transform_8, window_bounds = array<i64: 1, 8, 1024>}]} {
    %c0 = arith.constant 0 : index
    %c0_0 = arith.constant 0 : index
    %c0_1 = arith.constant 0 : index
    %0 = vector.load %arg1[%c0, %c0_0, %c0_1] : memref<1x4x256xbf16, #tpu.memory_space<vmem>>, vector<1x4x256xbf16>
    %1 = vector.shape_cast %0 : vector<1x4x256xbf16> to vector<4x256xbf16>
    %c0_2 = arith.constant 0 : index
    %c0_3 = arith.constant 0 : index
    %2 = vector.load %arg2[%c0_2, %c0_3] : memref<256x1024xbf16, #tpu.memory_space<vmem>>, vector<256x1024xbf16>
    %cst = arith.constant dense<0.000000e+00> : vector<4x1024xf32>
    %3 = tpu.matmul %1, %2, %cst {dimension_numbers = #tpu.dot_dimension_numbers<[1], [0], [0], [1], [0, 0, 1, 1], [], []>} : vector<4x256xbf16>, vector<256x1024xbf16>, vector<4x1024xf32> -> vector<4x1024xf32>
    %cst_4 = arith.constant 0.000000e+00 : f32
    %4 = vector.broadcast %cst_4 : f32 to vector<4x1024xf32>
    %5 = arith.maximumf %3, %4 : vector<4x1024xf32>
    %cst_5 = arith.constant 0.000000e+00 : f32
    %6 = vector.broadcast %cst_5 : f32 to vector<4x33xf32>
    %7 = tpu.concatenate %6, %5, %6 in 1 : vector<4x33xf32>, vector<4x1024xf32>, vector<4x33xf32> -> vector<4x1090xf32>
    %8 = tpu.iota {dimensions = array<i32: 1>} : vector<4x1024xi32>
    %c32_i32 = arith.constant 32 : i32
    %c0_i32 = arith.constant 0 : i32
    %9 = arith.cmpi eq, %c32_i32, %c0_i32 : i32
    %c1_i32 = arith.constant 1 : i32
    %10 = arith.select %9, %c1_i32, %c32_i32 : i32
    %11 = vector.broadcast %10 : i32 to vector<4x1024xi32>
    %12 = arith.remsi %8, %11 : vector<4x1024xi32>
    %c0_i32_6 = arith.constant 0 : i32
    %13 = vector.broadcast %c0_i32_6 : i32 to vector<4x1024xi32>
    %14 = arith.cmpi ne, %12, %13 : vector<4x1024xi32>
    %c0_i32_7 = arith.constant 0 : i32
    %15 = vector.broadcast %c0_i32_7 : i32 to vector<4x1024xi32>
    %16 = arith.cmpi slt, %12, %15 : vector<4x1024xi32>
    %c0_i32_8 = arith.constant 0 : i32
    %17 = arith.cmpi slt, %10, %c0_i32_8 : i32
    %18 = vector.broadcast %17 : i1 to vector<4x1024xi1>
    %19 = vector.broadcast %18 : vector<4x1024xi1> to vector<4x1024xi1>
    %20 = arith.xori %16, %19 : vector<4x1024xi1>
    %21 = arith.andi %20, %14 : vector<4x1024xi1>
    %22 = vector.broadcast %10 : i32 to vector<4x1024xi32>
    %23 = arith.addi %12, %22 : vector<4x1024xi32>
    %24 = arith.select %21, %23, %12 : vector<4x1024xi1>, vector<4x1024xi32>
    %25 = vector.extract_strided_slice %7 {offsets = [0, 0], sizes = [4, 1024], strides = [1, 1]} : vector<4x1090xf32> to vector<4x1024xf32>
    %c0_i32_9 = arith.constant 0 : i32
    %26 = vector.broadcast %c0_i32_9 : i32 to vector<4x1024xi32>
    %27 = arith.cmpi sgt, %24, %26 : vector<4x1024xi32>
    %cst_10 = arith.constant 0.000000e+00 : f32
    %28 = vector.broadcast %cst_10 : f32 to vector<4x1024xf32>
    %29 = arith.select %27, %25, %28 : vector<4x1024xi1>, vector<4x1024xf32>
    %30 = vector.extract_strided_slice %7 {offsets = [0, 1], sizes = [4, 1024], strides = [1, 1]} : vector<4x1090xf32> to vector<4x1024xf32>
    %31 = vector.extract_strided_slice %7 {offsets = [0, 2], sizes = [4, 1024], strides = [1, 1]} : vector<4x1090xf32> to vector<4x1024xf32>
    %c31_i32 = arith.constant 31 : i32
    %32 = vector.broadcast %c31_i32 : i32 to vector<4x1024xi32>
    %33 = arith.cmpi slt, %24, %32 : vector<4x1024xi32>
    %cst_11 = arith.constant 0.000000e+00 : f32
    %34 = vector.broadcast %cst_11 : f32 to vector<4x1024xf32>
    %35 = arith.select %33, %31, %34 : vector<4x1024xi1>, vector<4x1024xf32>
    %36 = vector.extract_strided_slice %7 {offsets = [0, 32], sizes = [4, 1024], strides = [1, 1]} : vector<4x1090xf32> to vector<4x1024xf32>
    %c0_i32_12 = arith.constant 0 : i32
    %37 = vector.broadcast %c0_i32_12 : i32 to vector<4x1024xi32>
    %38 = arith.cmpi sgt, %24, %37 : vector<4x1024xi32>
    %cst_13 = arith.constant 0.000000e+00 : f32
    %39 = vector.broadcast %cst_13 : f32 to vector<4x1024xf32>
    %40 = arith.select %38, %36, %39 : vector<4x1024xi1>, vector<4x1024xf32>
    %41 = vector.extract_strided_slice %7 {offsets = [0, 33], sizes = [4, 1024], strides = [1, 1]} : vector<4x1090xf32> to vector<4x1024xf32>
    %42 = vector.extract_strided_slice %7 {offsets = [0, 34], sizes = [4, 1024], strides = [1, 1]} : vector<4x1090xf32> to vector<4x1024xf32>
    %c31_i32_14 = arith.constant 31 : i32
    %43 = vector.broadcast %c31_i32_14 : i32 to vector<4x1024xi32>
    %44 = arith.cmpi slt, %24, %43 : vector<4x1024xi32>
    %cst_15 = arith.constant 0.000000e+00 : f32
    %45 = vector.broadcast %cst_15 : f32 to vector<4x1024xf32>
    %46 = arith.select %44, %42, %45 : vector<4x1024xi1>, vector<4x1024xf32>
    %47 = vector.extract_strided_slice %7 {offsets = [0, 64], sizes = [4, 1024], strides = [1, 1]} : vector<4x1090xf32> to vector<4x1024xf32>
    %c0_i32_16 = arith.constant 0 : i32
    %48 = vector.broadcast %c0_i32_16 : i32 to vector<4x1024xi32>
    %49 = arith.cmpi sgt, %24, %48 : vector<4x1024xi32>
    %cst_17 = arith.constant 0.000000e+00 : f32
    %50 = vector.broadcast %cst_17 : f32 to vector<4x1024xf32>
    %51 = arith.select %49, %47, %50 : vector<4x1024xi1>, vector<4x1024xf32>
    %52 = vector.extract_strided_slice %7 {offsets = [0, 65], sizes = [4, 1024], strides = [1, 1]} : vector<4x1090xf32> to vector<4x1024xf32>
    %53 = vector.extract_strided_slice %7 {offsets = [0, 66], sizes = [4, 1024], strides = [1, 1]} : vector<4x1090xf32> to vector<4x1024xf32>
    %c31_i32_18 = arith.constant 31 : i32
    %54 = vector.broadcast %c31_i32_18 : i32 to vector<4x1024xi32>
    %55 = arith.cmpi slt, %24, %54 : vector<4x1024xi32>
    %cst_19 = arith.constant 0.000000e+00 : f32
    %56 = vector.broadcast %cst_19 : f32 to vector<4x1024xf32>
    %57 = arith.select %55, %53, %56 : vector<4x1024xi1>, vector<4x1024xf32>
    %58 = tpu.concatenate %29, %30, %35, %40, %41, %46, %51, %52, %57 in 0 : vector<4x1024xf32>, vector<4x1024xf32>, vector<4x1024xf32>, vector<4x1024xf32>, vector<4x1024xf32>, vector<4x1024xf32>, vector<4x1024xf32>, vector<4x1024xf32>, vector<4x1024xf32> -> vector<36x1024xf32>
    %59 = arith.truncf %58 : vector<36x1024xf32> to vector<36x1024xbf16>
    %c0_20 = arith.constant 0 : index
    %c0_21 = arith.constant 0 : index
    %60 = vector.load %arg3[%c0_20, %c0_21] : memref<4x36xbf16, #tpu.memory_space<vmem>>, vector<4x36xbf16>
    %cst_22 = arith.constant dense<0.000000e+00> : vector<4x1024xf32>
    %61 = tpu.matmul %60, %59, %cst_22 {dimension_numbers = #tpu.dot_dimension_numbers<[1], [0], [0], [1], [0, 0, 1, 1], [], []>} : vector<4x36xbf16>, vector<36x1024xbf16>, vector<4x1024xf32> -> vector<4x1024xf32>
    %c0_23 = arith.constant 0 : index
    %c0_24 = arith.constant 0 : index
    %62 = vector.load %arg4[%c0_23, %c0_24] : memref<4x1xf32, #tpu.memory_space<vmem>>, vector<4x1xf32>
    %63 = vector.broadcast %62 : vector<4x1xf32> to vector<4x1024xf32>
    %64 = arith.addf %61, %63 : vector<4x1024xf32>
    %cst_25 = arith.constant 0.000000e+00 : f32
    %65 = vector.broadcast %cst_25 : f32 to vector<4x1024xf32>
    %66 = arith.maximumf %64, %65 : vector<4x1024xf32>
    %cst_26 = arith.constant 0.000000e+00 : f32
    %67 = vector.broadcast %cst_26 : f32 to vector<4x33xf32>
    %68 = tpu.concatenate %67, %66, %67 in 1 : vector<4x33xf32>, vector<4x1024xf32>, vector<4x33xf32> -> vector<4x1090xf32>
    %69 = tpu.iota {dimensions = array<i32: 1>} : vector<4x1024xi32>
    %c32_i32_27 = arith.constant 32 : i32
    %c0_i32_28 = arith.constant 0 : i32
    %70 = arith.cmpi eq, %c32_i32_27, %c0_i32_28 : i32
    %c1_i32_29 = arith.constant 1 : i32
    %71 = arith.select %70, %c1_i32_29, %c32_i32_27 : i32
    %72 = vector.broadcast %71 : i32 to vector<4x1024xi32>
    %73 = arith.remsi %69, %72 : vector<4x1024xi32>
    %c0_i32_30 = arith.constant 0 : i32
    %74 = vector.broadcast %c0_i32_30 : i32 to vector<4x1024xi32>
    %75 = arith.cmpi ne, %73, %74 : vector<4x1024xi32>
    %c0_i32_31 = arith.constant 0 : i32
    %76 = vector.broadcast %c0_i32_31 : i32 to vector<4x1024xi32>
    %77 = arith.cmpi slt, %73, %76 : vector<4x1024xi32>
    %c0_i32_32 = arith.constant 0 : i32
    %78 = arith.cmpi slt, %71, %c0_i32_32 : i32
    %79 = vector.broadcast %78 : i1 to vector<4x1024xi1>
    %80 = vector.broadcast %79 : vector<4x1024xi1> to vector<4x1024xi1>
    %81 = arith.xori %77, %80 : vector<4x1024xi1>
    %82 = arith.andi %81, %75 : vector<4x1024xi1>
    %83 = vector.broadcast %71 : i32 to vector<4x1024xi32>
    %84 = arith.addi %73, %83 : vector<4x1024xi32>
    %85 = arith.select %82, %84, %73 : vector<4x1024xi1>, vector<4x1024xi32>
    %86 = vector.extract_strided_slice %68 {offsets = [0, 0], sizes = [4, 1024], strides = [1, 1]} : vector<4x1090xf32> to vector<4x1024xf32>
    %c0_i32_33 = arith.constant 0 : i32
    %87 = vector.broadcast %c0_i32_33 : i32 to vector<4x1024xi32>
    %88 = arith.cmpi sgt, %85, %87 : vector<4x1024xi32>
    %cst_34 = arith.constant 0.000000e+00 : f32
    %89 = vector.broadcast %cst_34 : f32 to vector<4x1024xf32>
    %90 = arith.select %88, %86, %89 : vector<4x1024xi1>, vector<4x1024xf32>
    %91 = vector.extract_strided_slice %68 {offsets = [0, 1], sizes = [4, 1024], strides = [1, 1]} : vector<4x1090xf32> to vector<4x1024xf32>
    %92 = vector.extract_strided_slice %68 {offsets = [0, 2], sizes = [4, 1024], strides = [1, 1]} : vector<4x1090xf32> to vector<4x1024xf32>
    %c31_i32_35 = arith.constant 31 : i32
    %93 = vector.broadcast %c31_i32_35 : i32 to vector<4x1024xi32>
    %94 = arith.cmpi slt, %85, %93 : vector<4x1024xi32>
    %cst_36 = arith.constant 0.000000e+00 : f32
    %95 = vector.broadcast %cst_36 : f32 to vector<4x1024xf32>
    %96 = arith.select %94, %92, %95 : vector<4x1024xi1>, vector<4x1024xf32>
    %97 = vector.extract_strided_slice %68 {offsets = [0, 32], sizes = [4, 1024], strides = [1, 1]} : vector<4x1090xf32> to vector<4x1024xf32>
    %c0_i32_37 = arith.constant 0 : i32
    %98 = vector.broadcast %c0_i32_37 : i32 to vector<4x1024xi32>
    %99 = arith.cmpi sgt, %85, %98 : vector<4x1024xi32>
    %cst_38 = arith.constant 0.000000e+00 : f32
    %100 = vector.broadcast %cst_38 : f32 to vector<4x1024xf32>
    %101 = arith.select %99, %97, %100 : vector<4x1024xi1>, vector<4x1024xf32>
    %102 = vector.extract_strided_slice %68 {offsets = [0, 33], sizes = [4, 1024], strides = [1, 1]} : vector<4x1090xf32> to vector<4x1024xf32>
    %103 = vector.extract_strided_slice %68 {offsets = [0, 34], sizes = [4, 1024], strides = [1, 1]} : vector<4x1090xf32> to vector<4x1024xf32>
    %c31_i32_39 = arith.constant 31 : i32
    %104 = vector.broadcast %c31_i32_39 : i32 to vector<4x1024xi32>
    %105 = arith.cmpi slt, %85, %104 : vector<4x1024xi32>
    %cst_40 = arith.constant 0.000000e+00 : f32
    %106 = vector.broadcast %cst_40 : f32 to vector<4x1024xf32>
    %107 = arith.select %105, %103, %106 : vector<4x1024xi1>, vector<4x1024xf32>
    %108 = vector.extract_strided_slice %68 {offsets = [0, 64], sizes = [4, 1024], strides = [1, 1]} : vector<4x1090xf32> to vector<4x1024xf32>
    %c0_i32_41 = arith.constant 0 : i32
    %109 = vector.broadcast %c0_i32_41 : i32 to vector<4x1024xi32>
    %110 = arith.cmpi sgt, %85, %109 : vector<4x1024xi32>
    %cst_42 = arith.constant 0.000000e+00 : f32
    %111 = vector.broadcast %cst_42 : f32 to vector<4x1024xf32>
    %112 = arith.select %110, %108, %111 : vector<4x1024xi1>, vector<4x1024xf32>
    %113 = vector.extract_strided_slice %68 {offsets = [0, 65], sizes = [4, 1024], strides = [1, 1]} : vector<4x1090xf32> to vector<4x1024xf32>
    %114 = vector.extract_strided_slice %68 {offsets = [0, 66], sizes = [4, 1024], strides = [1, 1]} : vector<4x1090xf32> to vector<4x1024xf32>
    %c31_i32_43 = arith.constant 31 : i32
    %115 = vector.broadcast %c31_i32_43 : i32 to vector<4x1024xi32>
    %116 = arith.cmpi slt, %85, %115 : vector<4x1024xi32>
    %cst_44 = arith.constant 0.000000e+00 : f32
    %117 = vector.broadcast %cst_44 : f32 to vector<4x1024xf32>
    %118 = arith.select %116, %114, %117 : vector<4x1024xi1>, vector<4x1024xf32>
    %119 = tpu.concatenate %90, %91, %96, %101, %102, %107, %112, %113, %118 in 0 : vector<4x1024xf32>, vector<4x1024xf32>, vector<4x1024xf32>, vector<4x1024xf32>, vector<4x1024xf32>, vector<4x1024xf32>, vector<4x1024xf32>, vector<4x1024xf32>, vector<4x1024xf32> -> vector<36x1024xf32>
    %120 = arith.truncf %119 : vector<36x1024xf32> to vector<36x1024xbf16>
    %c0_45 = arith.constant 0 : index
    %c0_46 = arith.constant 0 : index
    %121 = vector.load %arg5[%c0_45, %c0_46] : memref<4x36xbf16, #tpu.memory_space<vmem>>, vector<4x36xbf16>
    %cst_47 = arith.constant dense<0.000000e+00> : vector<4x1024xf32>
    %122 = tpu.matmul %121, %120, %cst_47 {dimension_numbers = #tpu.dot_dimension_numbers<[1], [0], [0], [1], [0, 0, 1, 1], [], []>} : vector<4x36xbf16>, vector<36x1024xbf16>, vector<4x1024xf32> -> vector<4x1024xf32>
    %c0_48 = arith.constant 0 : index
    %c0_49 = arith.constant 0 : index
    %123 = vector.load %arg6[%c0_48, %c0_49] : memref<4x1xf32, #tpu.memory_space<vmem>>, vector<4x1xf32>
    %124 = vector.broadcast %123 : vector<4x1xf32> to vector<4x1024xf32>
    %125 = arith.addf %122, %124 : vector<4x1024xf32>
    %cst_50 = arith.constant 0.000000e+00 : f32
    %126 = vector.broadcast %cst_50 : f32 to vector<4x1024xf32>
    %127 = arith.maximumf %125, %126 : vector<4x1024xf32>
    %cst_51 = arith.constant 0.000000e+00 : f32
    %128 = vector.broadcast %cst_51 : f32 to vector<4x1024xf32>
    %129 = arith.maximumf %127, %128 : vector<4x1024xf32>
    %cst_52 = arith.constant 0.000000e+00 : f32
    %130 = vector.broadcast %cst_52 : f32 to vector<4x33xf32>
    %131 = tpu.concatenate %130, %129, %130 in 1 : vector<4x33xf32>, vector<4x1024xf32>, vector<4x33xf32> -> vector<4x1090xf32>
    %132 = tpu.iota {dimensions = array<i32: 1>} : vector<4x1024xi32>
    %c32_i32_53 = arith.constant 32 : i32
    %c0_i32_54 = arith.constant 0 : i32
    %133 = arith.cmpi eq, %c32_i32_53, %c0_i32_54 : i32
    %c1_i32_55 = arith.constant 1 : i32
    %134 = arith.select %133, %c1_i32_55, %c32_i32_53 : i32
    %135 = vector.broadcast %134 : i32 to vector<4x1024xi32>
    %136 = arith.remsi %132, %135 : vector<4x1024xi32>
    %c0_i32_56 = arith.constant 0 : i32
    %137 = vector.broadcast %c0_i32_56 : i32 to vector<4x1024xi32>
    %138 = arith.cmpi ne, %136, %137 : vector<4x1024xi32>
    %c0_i32_57 = arith.constant 0 : i32
    %139 = vector.broadcast %c0_i32_57 : i32 to vector<4x1024xi32>
    %140 = arith.cmpi slt, %136, %139 : vector<4x1024xi32>
    %c0_i32_58 = arith.constant 0 : i32
    %141 = arith.cmpi slt, %134, %c0_i32_58 : i32
    %142 = vector.broadcast %141 : i1 to vector<4x1024xi1>
    %143 = vector.broadcast %142 : vector<4x1024xi1> to vector<4x1024xi1>
    %144 = arith.xori %140, %143 : vector<4x1024xi1>
    %145 = arith.andi %144, %138 : vector<4x1024xi1>
    %146 = vector.broadcast %134 : i32 to vector<4x1024xi32>
    %147 = arith.addi %136, %146 : vector<4x1024xi32>
    %148 = arith.select %145, %147, %136 : vector<4x1024xi1>, vector<4x1024xi32>
    %149 = vector.extract_strided_slice %131 {offsets = [0, 0], sizes = [4, 1024], strides = [1, 1]} : vector<4x1090xf32> to vector<4x1024xf32>
    %c0_i32_59 = arith.constant 0 : i32
    %150 = vector.broadcast %c0_i32_59 : i32 to vector<4x1024xi32>
    %151 = arith.cmpi sgt, %148, %150 : vector<4x1024xi32>
    %cst_60 = arith.constant 0.000000e+00 : f32
    %152 = vector.broadcast %cst_60 : f32 to vector<4x1024xf32>
    %153 = arith.select %151, %149, %152 : vector<4x1024xi1>, vector<4x1024xf32>
    %154 = vector.extract_strided_slice %131 {offsets = [0, 1], sizes = [4, 1024], strides = [1, 1]} : vector<4x1090xf32> to vector<4x1024xf32>
    %155 = vector.extract_strided_slice %131 {offsets = [0, 2], sizes = [4, 1024], strides = [1, 1]} : vector<4x1090xf32> to vector<4x1024xf32>
    %c31_i32_61 = arith.constant 31 : i32
    %156 = vector.broadcast %c31_i32_61 : i32 to vector<4x1024xi32>
    %157 = arith.cmpi slt, %148, %156 : vector<4x1024xi32>
    %cst_62 = arith.constant 0.000000e+00 : f32
    %158 = vector.broadcast %cst_62 : f32 to vector<4x1024xf32>
    %159 = arith.select %157, %155, %158 : vector<4x1024xi1>, vector<4x1024xf32>
    %160 = vector.extract_strided_slice %131 {offsets = [0, 32], sizes = [4, 1024], strides = [1, 1]} : vector<4x1090xf32> to vector<4x1024xf32>
    %c0_i32_63 = arith.constant 0 : i32
    %161 = vector.broadcast %c0_i32_63 : i32 to vector<4x1024xi32>
    %162 = arith.cmpi sgt, %148, %161 : vector<4x1024xi32>
    %cst_64 = arith.constant 0.000000e+00 : f32
    %163 = vector.broadcast %cst_64 : f32 to vector<4x1024xf32>
    %164 = arith.select %162, %160, %163 : vector<4x1024xi1>, vector<4x1024xf32>
    %165 = vector.extract_strided_slice %131 {offsets = [0, 33], sizes = [4, 1024], strides = [1, 1]} : vector<4x1090xf32> to vector<4x1024xf32>
    %166 = vector.extract_strided_slice %131 {offsets = [0, 34], sizes = [4, 1024], strides = [1, 1]} : vector<4x1090xf32> to vector<4x1024xf32>
    %c31_i32_65 = arith.constant 31 : i32
    %167 = vector.broadcast %c31_i32_65 : i32 to vector<4x1024xi32>
    %168 = arith.cmpi slt, %148, %167 : vector<4x1024xi32>
    %cst_66 = arith.constant 0.000000e+00 : f32
    %169 = vector.broadcast %cst_66 : f32 to vector<4x1024xf32>
    %170 = arith.select %168, %166, %169 : vector<4x1024xi1>, vector<4x1024xf32>
    %171 = vector.extract_strided_slice %131 {offsets = [0, 64], sizes = [4, 1024], strides = [1, 1]} : vector<4x1090xf32> to vector<4x1024xf32>
    %c0_i32_67 = arith.constant 0 : i32
    %172 = vector.broadcast %c0_i32_67 : i32 to vector<4x1024xi32>
    %173 = arith.cmpi sgt, %148, %172 : vector<4x1024xi32>
    %cst_68 = arith.constant 0.000000e+00 : f32
    %174 = vector.broadcast %cst_68 : f32 to vector<4x1024xf32>
    %175 = arith.select %173, %171, %174 : vector<4x1024xi1>, vector<4x1024xf32>
    %176 = vector.extract_strided_slice %131 {offsets = [0, 65], sizes = [4, 1024], strides = [1, 1]} : vector<4x1090xf32> to vector<4x1024xf32>
    %177 = vector.extract_strided_slice %131 {offsets = [0, 66], sizes = [4, 1024], strides = [1, 1]} : vector<4x1090xf32> to vector<4x1024xf32>
    %c31_i32_69 = arith.constant 31 : i32
    %178 = vector.broadcast %c31_i32_69 : i32 to vector<4x1024xi32>
    %179 = arith.cmpi slt, %148, %178 : vector<4x1024xi32>
    %cst_70 = arith.constant 0.000000e+00 : f32
    %180 = vector.broadcast %cst_70 : f32 to vector<4x1024xf32>
    %181 = arith.select %179, %177, %180 : vector<4x1024xi1>, vector<4x1024xf32>
    %182 = tpu.concatenate %153, %154, %159, %164, %165, %170, %175, %176, %181 in 0 : vector<4x1024xf32>, vector<4x1024xf32>, vector<4x1024xf32>, vector<4x1024xf32>, vector<4x1024xf32>, vector<4x1024xf32>, vector<4x1024xf32>, vector<4x1024xf32>, vector<4x1024xf32> -> vector<36x1024xf32>
    %183 = arith.truncf %182 : vector<36x1024xf32> to vector<36x1024xbf16>
    %c0_71 = arith.constant 0 : index
    %c0_72 = arith.constant 0 : index
    %184 = vector.load %arg7[%c0_71, %c0_72] : memref<8x36xbf16, #tpu.memory_space<vmem>>, vector<8x36xbf16>
    %cst_73 = arith.constant dense<0.000000e+00> : vector<8x1024xf32>
    %185 = tpu.matmul %184, %183, %cst_73 {dimension_numbers = #tpu.dot_dimension_numbers<[1], [0], [0], [1], [0, 0, 1, 1], [], []>} : vector<8x36xbf16>, vector<36x1024xbf16>, vector<8x1024xf32> -> vector<8x1024xf32>
    %c0_74 = arith.constant 0 : index
    %c0_75 = arith.constant 0 : index
    %186 = vector.load %arg8[%c0_74, %c0_75] : memref<8x1xf32, #tpu.memory_space<vmem>>, vector<8x1xf32>
    %187 = vector.broadcast %186 : vector<8x1xf32> to vector<8x1024xf32>
    %188 = arith.addf %185, %187 : vector<8x1024xf32>
    %c0_76 = arith.constant 0 : index
    %c0_77 = arith.constant 0 : index
    %c0_78 = arith.constant 0 : index
    %189 = vector.load %arg9[%c0_76, %c0_77, %c0_78] : memref<1x8x1024xf32, #tpu.memory_space<vmem>>, vector<1x8x1024xf32>
    %190 = vector.shape_cast %189 : vector<1x8x1024xf32> to vector<8x1024xf32>
    %191 = vector.shape_cast %188 : vector<8x1024xf32> to vector<1x8x1024xf32>
    tpu.vector_store %arg9[%c0_76, %c0_77, %c0_78], %191 {strides = array<i32>} : memref<1x8x1024xf32, #tpu.memory_space<vmem>>, vector<1x8x1024xf32>,
    return
  }
  func.func @transform_0(%arg0: i32) -> (i32, i32, i32) {
    %c0_i32 = arith.constant 0 : i32
    %c0_i32_0 = arith.constant 0 : i32
    %c0_i32_1 = arith.constant 0 : i32
    return %arg0, %c0_i32, %c0_i32_0 : i32, i32, i32
  }
  func.func @transform_1(%arg0: i32) -> (i32, i32) {
    %c0_i32 = arith.constant 0 : i32
    %c0_i32_0 = arith.constant 0 : i32
    %c0_i32_1 = arith.constant 0 : i32
    return %c0_i32, %c0_i32_0 : i32, i32
  }
  func.func @transform_2(%arg0: i32) -> (i32, i32) {
    %c0_i32 = arith.constant 0 : i32
    %c0_i32_0 = arith.constant 0 : i32
    %c0_i32_1 = arith.constant 0 : i32
    return %c0_i32, %c0_i32_0 : i32, i32
  }
  func.func @transform_3(%arg0: i32) -> (i32, i32) {
    %c0_i32 = arith.constant 0 : i32
    %c0_i32_0 = arith.constant 0 : i32
    %c0_i32_1 = arith.constant 0 : i32
    return %c0_i32, %c0_i32_0 : i32, i32
  }
  func.func @transform_4(%arg0: i32) -> (i32, i32) {
    %c0_i32 = arith.constant 0 : i32
    %c0_i32_0 = arith.constant 0 : i32
    %c0_i32_1 = arith.constant 0 : i32
    return %c0_i32, %c0_i32_0 : i32, i32
  }
  func.func @transform_5(%arg0: i32) -> (i32, i32) {
    %c0_i32 = arith.constant 0 : i32
    %c0_i32_0 = arith.constant 0 : i32
    %c0_i32_1 = arith.constant 0 : i32
    return %c0_i32, %c0_i32_0 : i32, i32
  }
  func.func @transform_6(%arg0: i32) -> (i32, i32) {
    %c0_i32 = arith.constant 0 : i32
    %c0_i32_0 = arith.constant 0 : i32
    %c0_i32_1 = arith.constant 0 : i32
    return %c0_i32, %c0_i32_0 : i32, i32
  }
  func.func @transform_7(%arg0: i32) -> (i32, i32) {
    %c0_i32 = arith.constant 0 : i32
    %c0_i32_0 = arith.constant 0 : i32
    %c0_i32_1 = arith.constant 0 : i32
    return %c0_i32, %c0_i32_0 : i32, i32
  }
  func.func @transform_8(%arg0: i32) -> (i32, i32, i32) {
    %c0_i32 = arith.constant 0 : i32
    %c0_i32_0 = arith.constant 0 : i32
    %c0_i32_1 = arith.constant 0 : i32
    return %arg0, %c0_i32, %c0_i32_0 : i32, i32, i32
  }
}

</mosaic_0001>

<llo_original>
// kernel: recon_model_forward.1
$region0: #{recon_model_forward.1}
  #allocation0 [shape = 'u32[]', space=smem, size = 0x4, offset = 0x4, fixed_abs, tag = 'smem constant byte address 0x4 - core index']
  #allocation1 [shape = 'u32[144,128]{1,0:T(1,128)}', space=vmem, size = 0x12000, scoped, tag = 'internal scratch']
  %s0 = inlined_call_operand.vmem [shape: bf16[2,4,256], index: 0, kind: input, shape index: {}]
  %s1 = inlined_call_operand.vmem [shape: bf16[256,1024], index: 1, kind: input, shape index: {}]
  %s2 = inlined_call_operand.vmem [shape: bf16[4,36], index: 2, kind: input, shape index: {}]
  %s3 = inlined_call_operand.vmem [shape: f32[4,1], index: 3, kind: input, shape index: {}]
  %s4 = inlined_call_operand.vmem [shape: bf16[4,36], index: 4, kind: input, shape index: {}]
  %s5 = inlined_call_operand.vmem [shape: f32[4,1], index: 5, kind: input, shape index: {}]
  %s6 = inlined_call_operand.vmem [shape: bf16[8,36], index: 6, kind: input, shape index: {}]
  %s7 = inlined_call_operand.vmem [shape: f32[8,1], index: 7, kind: input, shape index: {}]
  %s8 = inlined_call_operand.vmem [shape: f32[2,8,1024], index: 8, kind: output, shape index: {}]
  %s9 = sld [smem:[#allocation0]]
  $region65: #{recon_model_forward.1} parent=0
    _
  %s11 = ssub.s32 1, %s9
  %s12 = scalar_select 0, %s11, %s9
  loop: start=0, step=1, limit=4
  $region2: #{recon_model_forward.1} parent=0 // loop_pre_header
    _
  $region3: #{recon_model_forward.1} parent=0 // loop_header
    %s14 = sphi 0, %s18
    %p15 = scmp.ge.s32.totalorder %s14, 4
    %s24 = sphi 0, %s26
    %s27 = sphi 0, %s24
    %s28 = sphi 0, %s27
    %s44 = sphi 0, %s28
    %s48 = sphi 0, %s48
    %s50 = sphi 0, %s48
    %s51 = sphi 0, %s50
    %s65 = sphi 0, %s51
    %s69 = sphi 0, %s69
    %s71 = sphi 0, %s69
    %s72 = sphi 0, %s71
    %s86 = sphi 0, %s72
    %s90 = sphi 0, %s90
    %s92 = sphi 0, %s90
    %s93 = sphi 0, %s92
    %s107 = sphi 0, %s93
    %s111 = sphi 0, %s111
    %s113 = sphi 0, %s111
    %s114 = sphi 0, %s113
    %s128 = sphi 0, %s114
    %s132 = sphi 0, %s132
    %s134 = sphi 0, %s132
    %s135 = sphi 0, %s134
    %s149 = sphi 0, %s135
    %s153 = sphi 0, %s153
    %s155 = sphi 0, %s153
    %s156 = sphi 0, %s155
    %s170 = sphi 0, %s156
    %s174 = sphi 0, %s174
    %s176 = sphi 0, %s174
    %s177 = sphi 0, %s176
    %s191 = sphi 0, %s177
    %s197 = sphi 0, %s199
    %s200 = sphi 0, %s197
    %s201 = sphi 0, %s200
    %s217 = sphi 0, %s201
  $region4: #{recon_model_forward.1} parent=0 // loop_header_branch
    %17 = sbr.rel (%p15) target = $region8
  $region5: #{recon_model_forward.1} parent=0 // loop_body
    %s19 = ssub.s32 %s14, 1
    %s20 = ssub.s32 %s14, 2
    %s21 = sadd.s32 %s14, 1
    %s22 = ssub.s32 %s14, %s21
    %p23 = scmp.eq.s32.totalorder %s22, 0
    %s25 = sadd.s32 %s24, 1
    %s26 = scalar_select %p23, %s24, %s25
    %p29 = pneg %p23
    %p30 = scmp.eq.s32.totalorder %s14, 1
    %p31 = por %p29, %p30
    %p32 = scmp.ne.s32.totalorder %s24, %s27
    %p33 = scmp.eq.s32.totalorder %s14, 0
    %p34 = por %p32, %p33
    %p35 = scmp.ne.s32.totalorder %s24, %s27
    %p36 = scmp.eq.s32.totalorder %s19, 1
    %p37 = por %p35, %p36
    %p38 = scmp.ne.s32.totalorder %s27, %s28
    %p39 = scmp.eq.s32.totalorder %s19, 0
    %p40 = por %p38, %p39
    %p41 = scmp.ne.s32.totalorder %s27, %s28
    %p42 = scmp.eq.s32.totalorder %s20, 1
    %p43 = por %p41, %p42
    %p45 = scmp.ne.s32.totalorder %s28, %s44
    %p46 = scmp.eq.s32.totalorder %s20, 0
    %p47 = por %p45, %p46
    %s49 = sadd.s32 %s48, 1
    %p52 = scmp.eq.s32.totalorder %s14, 1
    %p53 = scmp.ne.s32.totalorder %s48, %s50
    %p54 = scmp.eq.s32.totalorder %s14, 0
    %p55 = por %p53, %p54
    %p56 = scmp.ne.s32.totalorder %s48, %s50
    %p57 = scmp.eq.s32.totalorder %s19, 1
    %p58 = por %p56, %p57
    %p59 = scmp.ne.s32.totalorder %s50, %s51
    %p60 = scmp.eq.s32.totalorder %s19, 0
    %p61 = por %p59, %p60
    %p62 = scmp.ne.s32.totalorder %s50, %s51
    %p63 = scmp.eq.s32.totalorder %s20, 1
    %p64 = por %p62, %p63
    %p66 = scmp.ne.s32.totalorder %s51, %s65
    %p67 = scmp.eq.s32.totalorder %s20, 0
    %p68 = por %p66, %p67
    %s70 = sadd.s32 %s69, 1
    %p73 = scmp.eq.s32.totalorder %s14, 1
    %p74 = scmp.ne.s32.totalorder %s69, %s71
    %p75 = scmp.eq.s32.totalorder %s14, 0
    %p76 = por %p74, %p75
    %p77 = scmp.ne.s32.totalorder %s69, %s71
    %p78 = scmp.eq.s32.totalorder %s19, 1
    %p79 = por %p77, %p78
    %p80 = scmp.ne.s32.totalorder %s71, %s72
    %p81 = scmp.eq.s32.totalorder %s19, 0
    %p82 = por %p80, %p81
    %p83 = scmp.ne.s32.totalorder %s71, %s72
    %p84 = scmp.eq.s32.totalorder %s20, 1
    %p85 = por %p83, %p84
    %p87 = scmp.ne.s32.totalorder %s72, %s86
    %p88 = scmp.eq.s32.totalorder %s20, 0
    %p89 = por %p87, %p88
    %s91 = sadd.s32 %s90, 1
    %p94 = scmp.eq.s32.totalorder %s14, 1
    %p95 = scmp.ne.s32.totalorder %s90, %s92
    %p96 = scmp.eq.s32.totalorder %s14, 0
    %p97 = por %p95, %p96
    %p98 = scmp.ne.s32.totalorder %s90, %s92
    %p99 = scmp.eq.s32.totalorder %s19, 1
    %p100 = por %p98, %p99
    %p101 = scmp.ne.s32.totalorder %s92, %s93
    %p102 = scmp.eq.s32.totalorder %s19, 0
    %p103 = por %p101, %p102
    %p104 = scmp.ne.s32.totalorder %s92, %s93
    %p105 = scmp.eq.s32.totalorder %s20, 1
    %p106 = por %p104, %p105
    %p108 = scmp.ne.s32.totalorder %s93, %s107
    %p109 = scmp.eq.s32.totalorder %s20, 0
    %p110 = por %p108, %p109
    %s112 = sadd.s32 %s111, 1
    %p115 = scmp.eq.s32.totalorder %s14, 1
    %p116 = scmp.ne.s32.totalorder %s111, %s113
    %p117 = scmp.eq.s32.totalorder %s14, 0
    %p118 = por %p116, %p117
    %p119 = scmp.ne.s32.totalorder %s111, %s113
    %p120 = scmp.eq.s32.totalorder %s19, 1
    %p121 = por %p119, %p120
    %p122 = scmp.ne.s32.totalorder %s113, %s114
    %p123 = scmp.eq.s32.totalorder %s19, 0
    %p124 = por %p122, %p123
    %p125 = scmp.ne.s32.totalorder %s113, %s114
    %p126 = scmp.eq.s32.totalorder %s20, 1
    %p127 = por %p125, %p126
    %p129 = scmp.ne.s32.totalorder %s114, %s128
    %p130 = scmp.eq.s32.totalorder %s20, 0
    %p131 = por %p129, %p130
    %s133 = sadd.s32 %s132, 1
    %p136 = scmp.eq.s32.totalorder %s14, 1
    %p137 = scmp.ne.s32.totalorder %s132, %s134
    %p138 = scmp.eq.s32.totalorder %s14, 0
    %p139 = por %p137, %p138
    %p140 = scmp.ne.s32.totalorder %s132, %s134
    %p141 = scmp.eq.s32.totalorder %s19, 1
    %p142 = por %p140, %p141
    %p143 = scmp.ne.s32.totalorder %s134, %s135
    %p144 = scmp.eq.s32.totalorder %s19, 0
    %p145 = por %p143, %p144
    %p146 = scmp.ne.s32.totalorder %s134, %s135
    %p147 = scmp.eq.s32.totalorder %s20, 1
    %p148 = por %p146, %p147
    %p150 = scmp.ne.s32.totalorder %s135, %s149
    %p151 = scmp.eq.s32.totalorder %s20, 0
    %p152 = por %p150, %p151
    %s154 = sadd.s32 %s153, 1
    %p157 = scmp.eq.s32.totalorder %s14, 1
    %p158 = scmp.ne.s32.totalorder %s153, %s155
    %p159 = scmp.eq.s32.totalorder %s14, 0
    %p160 = por %p158, %p159
    %p161 = scmp.ne.s32.totalorder %s153, %s155
    %p162 = scmp.eq.s32.totalorder %s19, 1
    %p163 = por %p161, %p162
    %p164 = scmp.ne.s32.totalorder %s155, %s156
    %p165 = scmp.eq.s32.totalorder %s19, 0
    %p166 = por %p164, %p165
    %p167 = scmp.ne.s32.totalorder %s155, %s156
    %p168 = scmp.eq.s32.totalorder %s20, 1
    %p169 = por %p167, %p168
    %p171 = scmp.ne.s32.totalorder %s156, %s170
    %p172 = scmp.eq.s32.totalorder %s20, 0
    %p173 = por %p171, %p172
    %s175 = sadd.s32 %s174, 1
    %p178 = scmp.eq.s32.totalorder %s14, 1
    %p179 = scmp.ne.s32.totalorder %s174, %s176
    %p180 = scmp.eq.s32.totalorder %s14, 0
    %p181 = por %p179, %p180
    %p182 = scmp.ne.s32.totalorder %s174, %s176
    %p183 = scmp.eq.s32.totalorder %s19, 1
    %p184 = por %p182, %p183
    %p185 = scmp.ne.s32.totalorder %s176, %s177
    %p186 = scmp.eq.s32.totalorder %s19, 0
    %p187 = por %p185, %p186
    %p188 = scmp.ne.s32.totalorder %s176, %s177
    %p189 = scmp.eq.s32.totalorder %s20, 1
    %p190 = por %p188, %p189
    %p192 = scmp.ne.s32.totalorder %s177, %s191
    %p193 = scmp.eq.s32.totalorder %s20, 0
    %p194 = por %p192, %p193
    %s195 = ssub.s32 %s14, %s21
    %p196 = scmp.eq.s32.totalorder %s195, 0
    %s198 = sadd.s32 %s197, 1
    %s199 = scalar_select %p196, %s197, %s198
    %p202 = pneg %p196
    %p203 = scmp.eq.s32.totalorder %s14, 1
    %p204 = por %p202, %p203
    %p205 = scmp.ne.s32.totalorder %s197, %s200
    %p206 = scmp.eq.s32.totalorder %s14, 0
    %p207 = por %p205, %p206
    %p208 = scmp.ne.s32.totalorder %s197, %s200
    %p209 = scmp.eq.s32.totalorder %s19, 1
    %p210 = por %p208, %p209
    %p211 = scmp.ne.s32.totalorder %s200, %s201
    %p212 = scmp.eq.s32.totalorder %s19, 0
    %p213 = por %p211, %p212
    %p214 = scmp.ne.s32.totalorder %s200, %s201
    %p215 = scmp.eq.s32.totalorder %s20, 1
    %p216 = por %p214, %p215
    %p218 = scmp.ne.s32.totalorder %s201, %s217
    %p219 = scmp.eq.s32.totalorder %s20, 0
    %p220 = por %p218, %p219
    %p221 = scmp.le.s32.totalorder 1, %s14
    %p222 = scmp.lt.s32.totalorder %s14, 3
    %p223 = pnand %p221, %p222
    %p224 = pneg %p223
    // Predicated region
    $region9: #{recon_model_forward.1} parent=5 // pred_check
      _
    $region10: #{recon_model_forward.1} parent=5 // pred_check_branch
      %226 = sbr.rel (%p223) target = $region12
    $region11: #{recon_model_forward.1} parent=5 // pred_region
      %s227 = ssub.s32 %s14, 1
      // Predicated region
      $region13: #{recon_model_forward.1} parent=11 // pred_check
        %p228 = pneg %p61
      $region14: #{recon_model_forward.1} parent=11 // pred_check_branch
        %230 = sbr.rel (%p228) target = $region16
      $region15: #{recon_model_forward.1} parent=11 // pred_region
        _
      $region16: #{recon_model_forward.1} parent=11 // pred_fallthru
        _
      // Predicated region
      $region17: #{recon_model_forward.1} parent=11 // pred_check
        %p231 = pneg %p82
      $region18: #{recon_model_forward.1} parent=11 // pred_check_branch
        %233 = sbr.rel (%p231) target = $region20
      $region19: #{recon_model_forward.1} parent=11 // pred_region
        _
      $region20: #{recon_model_forward.1} parent=11 // pred_fallthru
        _
      // Predicated region
      $region21: #{recon_model_forward.1} parent=11 // pred_check
        %p234 = pneg %p103
      $region22: #{recon_model_forward.1} parent=11 // pred_check_branch
        %236 = sbr.rel (%p234) target = $region24
      $region23: #{recon_model_forward.1} parent=11 // pred_region
        _
      $region24: #{recon_model_forward.1} parent=11 // pred_fallthru
        _
      // Predicated region
      $region25: #{recon_model_forward.1} parent=11 // pred_check
        %p237 = pneg %p124
      $region26: #{recon_model_forward.1} parent=11 // pred_check_branch
        %239 = sbr.rel (%p237) target = $region28
      $region27: #{recon_model_forward.1} parent=11 // pred_region
        _
      $region28: #{recon_model_forward.1} parent=11 // pred_fallthru
        _
      // Predicated region
      $region29: #{recon_model_forward.1} parent=11 // pred_check
        %p240 = pneg %p145
      $region30: #{recon_model_forward.1} parent=11 // pred_check_branch
        %242 = sbr.rel (%p240) target = $region32
      $region31: #{recon_model_forward.1} parent=11 // pred_region
        _
      $region32: #{recon_model_forward.1} parent=11 // pred_fallthru
        _
      // Predicated region
      $region33: #{recon_model_forward.1} parent=11 // pred_check
        %p243 = pneg %p166
      $region34: #{recon_model_forward.1} parent=11 // pred_check_branch
        %245 = sbr.rel (%p243) target = $region36
      $region35: #{recon_model_forward.1} parent=11 // pred_region
        _
      $region36: #{recon_model_forward.1} parent=11 // pred_fallthru
        _
      // Predicated region
      $region37: #{recon_model_forward.1} parent=11 // pred_check
        %p246 = pneg %p187
      $region38: #{recon_model_forward.1} parent=11 // pred_check_branch
        %248 = sbr.rel (%p246) target = $region40
      $region39: #{recon_model_forward.1} parent=11 // pred_region
        _
      $region40: #{recon_model_forward.1} parent=11 // pred_fallthru
        _
    $region12: #{recon_model_forward.1} parent=5 // pred_fallthru
      _
    %p249 = scmp.lt.s32.totalorder %s14, 2
    // Predicated region
    $region41: #{recon_model_forward.1} parent=5 // pred_check
      %p250 = pneg %p249
    $region42: #{recon_model_forward.1} parent=5 // pred_check_branch
      %252 = sbr.rel (%p250) target = $region44
    $region43: #{recon_model_forward.1} parent=5 // pred_region
      // Predicated region
      $region45: #{recon_model_forward.1} parent=43 // pred_check
        %p253 = pneg %p34
      $region46: #{recon_model_forward.1} parent=43 // pred_check_branch
        %255 = sbr.rel (%p253) target = $region48
      $region47: #{recon_model_forward.1} parent=43 // pred_region
        %p256 = scmp.lt.s32.totalorder %s14, 1
        %s257 = scalar_select %p256, %s14, 1
        %s258 = smul.addr %s257, 2
        %s259 = smul.addr %s258, 2
        %s260 = scalar_lea.vmem %s0, %s259
      $region48: #{recon_model_forward.1} parent=43 // pred_fallthru
        _
    $region44: #{recon_model_forward.1} parent=5 // pred_fallthru
      _
    %p261 = scmp.le.s32.totalorder 1, %s14
    %p262 = scmp.lt.s32.totalorder %s14, 3
    %p263 = pnand %p261, %p262
    %p264 = pneg %p263
    // Predicated region
    $region49: #{recon_model_forward.1} parent=5 // pred_check
      _
    $region50: #{recon_model_forward.1} parent=5 // pred_check_branch
      %266 = sbr.rel (%p263) target = $region52
    $region51: #{recon_model_forward.1} parent=5 // pred_region
      %s267 = ssub.s32 %s14, 1
      %p268 = scmp.lt.s32.totalorder %s19, 1
      %s269 = scalar_select %p268, %s19, 1
      %s270 = smul.addr %s269, 2
      %s271 = smul.addr %s270, 2
      %s272 = scalar_lea.vmem %s0, %s271
      %p273 = pneg %p40
      %p274 = pneg %p37
      %p275 = pneg %p61
      %p276 = pneg %p58
      %p277 = pneg %p82
      %p278 = pneg %p79
      %p279 = pneg %p103
      %p280 = pneg %p100
      %p281 = pneg %p124
      %p282 = pneg %p121
      %p283 = pneg %p145
      %p284 = pneg %p142
      %p285 = pneg %p166
      %p286 = pneg %p163
      %p287 = pneg %p187
      %p288 = pneg %p184
      %p289 = pneg %p213
      %p290 = pneg %p210
      %p291 = scmp.lt.s32.totalorder %s19, 1
      %s292 = scalar_select %p291, %s19, 1
      %s293 = smul.addr %s292, 8
      %s294 = smul.addr %s293, 8
      %s295 = scalar_lea.vmem %s8, %s294
      %p296 = scmp.lt.s32.totalorder %s19, 1
      %s297 = scalar_select %p296, %s19, 1
      %s298 = smul.addr %s297, 2
      %s299 = smul.addr %s298, 2
      %s300 = scalar_lea.vmem %s0, %s299
      %p301 = scmp.lt.s32.totalorder %s19, 1
      %s302 = scalar_select %p301, %s19, 1
      %s303 = smul.addr %s302, 8
      %s304 = smul.addr %s303, 8
      %s305 = scalar_lea.vmem %s8, %s304
      %v307 = vld [vmem:[%s300] sm:$0xf]
      %v308 = vld [vmem:[%s1] sm:$0xff]
      %v309 = vld [vmem:[%s1 + $0x8] sm:$0xff]
      %v310 = vld [vmem:[%s1 + $0x10] sm:$0xff]
      %v311 = vld [vmem:[%s1 + $0x18] sm:$0xff]
      %v312 = vld [vmem:[%s1 + $0x20] sm:$0xff]
      %v313 = vld [vmem:[%s1 + $0x28] sm:$0xff]
      %v314 = vld [vmem:[%s1 + $0x30] sm:$0xff]
      %v315 = vld [vmem:[%s1 + $0x38] sm:$0xff]
      %v316 = vld [vmem:[%s1 + $0x40] sm:$0xff]
      %v317 = vld [vmem:[%s1 + $0x48] sm:$0xff]
      %v318 = vld [vmem:[%s1 + $0x50] sm:$0xff]
      %v319 = vld [vmem:[%s1 + $0x58] sm:$0xff]
      %v320 = vld [vmem:[%s1 + $0x60] sm:$0xff]
      %v321 = vld [vmem:[%s1 + $0x68] sm:$0xff]
      %v322 = vld [vmem:[%s1 + $0x70] sm:$0xff]
      %v323 = vld [vmem:[%s1 + $0x78] sm:$0xff]
      %v324 = vld [vmem:[%s1 + $0x80] sm:$0xff]
      %v325 = vld [vmem:[%s1 + $0x88] sm:$0xff]
      %v326 = vld [vmem:[%s1 + $0x90] sm:$0xff]
      %v327 = vld [vmem:[%s1 + $0x98] sm:$0xff]
      %v328 = vld [vmem:[%s1 + $0xa0] sm:$0xff]
      %v329 = vld [vmem:[%s1 + $0xa8] sm:$0xff]
      %v330 = vld [vmem:[%s1 + $0xb0] sm:$0xff]
      %v331 = vld [vmem:[%s1 + $0xb8] sm:$0xff]
      %v332 = vld [vmem:[%s1 + $0xc0] sm:$0xff]
      %v333 = vld [vmem:[%s1 + $0xc8] sm:$0xff]
      %v334 = vld [vmem:[%s1 + $0xd0] sm:$0xff]
      %v335 = vld [vmem:[%s1 + $0xd8] sm:$0xff]
      %v336 = vld [vmem:[%s1 + $0xe0] sm:$0xff]
      %v337 = vld [vmem:[%s1 + $0xe8] sm:$0xff]
      %v338 = vld [vmem:[%s1 + $0xf0] sm:$0xff]
      %v339 = vld [vmem:[%s1 + $0xf8] sm:$0xff]
      %v340 = vld [vmem:[%s1 + $0x100] sm:$0xff]
      %v341 = vld [vmem:[%s1 + $0x108] sm:$0xff]
      %v342 = vld [vmem:[%s1 + $0x110] sm:$0xff]
      %v343 = vld [vmem:[%s1 + $0x118] sm:$0xff]
      %v344 = vld [vmem:[%s1 + $0x120] sm:$0xff]
      %v345 = vld [vmem:[%s1 + $0x128] sm:$0xff]
      %v346 = vld [vmem:[%s1 + $0x130] sm:$0xff]
      %v347 = vld [vmem:[%s1 + $0x138] sm:$0xff]
      %v348 = vld [vmem:[%s1 + $0x140] sm:$0xff]
      %v349 = vld [vmem:[%s1 + $0x148] sm:$0xff]
      %v350 = vld [vmem:[%s1 + $0x150] sm:$0xff]
      %v351 = vld [vmem:[%s1 + $0x158] sm:$0xff]
      %v352 = vld [vmem:[%s1 + $0x160] sm:$0xff]
      %v353 = vld [vmem:[%s1 + $0x168] sm:$0xff]
      %v354 = vld [vmem:[%s1 + $0x170] sm:$0xff]
      %v355 = vld [vmem:[%s1 + $0x178] sm:$0xff]
      %v356 = vld [vmem:[%s1 + $0x180] sm:$0xff]
      %v357 = vld [vmem:[%s1 + $0x188] sm:$0xff]
      %v358 = vld [vmem:[%s1 + $0x190] sm:$0xff]
      %v359 = vld [vmem:[%s1 + $0x198] sm:$0xff]
      %v360 = vld [vmem:[%s1 + $0x1a0] sm:$0xff]
      %v361 = vld [vmem:[%s1 + $0x1a8] sm:$0xff]
      %v362 = vld [vmem:[%s1 + $0x1b0] sm:$0xff]
      %v363 = vld [vmem:[%s1 + $0x1b8] sm:$0xff]
      %v364 = vld [vmem:[%s1 + $0x1c0] sm:$0xff]
      %v365 = vld [vmem:[%s1 + $0x1c8] sm:$0xff]
      %v366 = vld [vmem:[%s1 + $0x1d0] sm:$0xff]
      %v367 = vld [vmem:[%s1 + $0x1d8] sm:$0xff]
      %v368 = vld [vmem:[%s1 + $0x1e0] sm:$0xff]
      %v369 = vld [vmem:[%s1 + $0x1e8] sm:$0xff]
      %v370 = vld [vmem:[%s1 + $0x1f0] sm:$0xff]
      %v371 = vld [vmem:[%s1 + $0x1f8] sm:$0xff]
      %v372 = vld [vmem:[%s1 + $0x200] sm:$0xff]
      %v373 = vld [vmem:[%s1 + $0x208] sm:$0xff]
      %v374 = vld [vmem:[%s1 + $0x210] sm:$0xff]
      %v375 = vld [vmem:[%s1 + $0x218] sm:$0xff]
      %v376 = vld [vmem:[%s1 + $0x220] sm:$0xff]
      %v377 = vld [vmem:[%s1 + $0x228] sm:$0xff]
      %v378 = vld [vmem:[%s1 + $0x230] sm:$0xff]
      %v379 = vld [vmem:[%s1 + $0x238] sm:$0xff]
      %v380 = vld [vmem:[%s1 + $0x240] sm:$0xff]
      %v381 = vld [vmem:[%s1 + $0x248] sm:$0xff]
      %v382 = vld [vmem:[%s1 + $0x250] sm:$0xff]
      %v383 = vld [vmem:[%s1 + $0x258] sm:$0xff]
      %v384 = vld [vmem:[%s1 + $0x260] sm:$0xff]
      %v385 = vld [vmem:[%s1 + $0x268] sm:$0xff]
      %v386 = vld [vmem:[%s1 + $0x270] sm:$0xff]
      %v387 = vld [vmem:[%s1 + $0x278] sm:$0xff]
      %v388 = vld [vmem:[%s1 + $0x280] sm:$0xff]
      %v389 = vld [vmem:[%s1 + $0x288] sm:$0xff]
      %v390 = vld [vmem:[%s1 + $0x290] sm:$0xff]
      %v391 = vld [vmem:[%s1 + $0x298] sm:$0xff]
      %v392 = vld [vmem:[%s1 + $0x2a0] sm:$0xff]
      %v393 = vld [vmem:[%s1 + $0x2a8] sm:$0xff]
      %v394 = vld [vmem:[%s1 + $0x2b0] sm:$0xff]
      %v395 = vld [vmem:[%s1 + $0x2b8] sm:$0xff]
      %v396 = vld [vmem:[%s1 + $0x2c0] sm:$0xff]
      %v397 = vld [vmem:[%s1 + $0x2c8] sm:$0xff]
      %v398 = vld [vmem:[%s1 + $0x2d0] sm:$0xff]
      %v399 = vld [vmem:[%s1 + $0x2d8] sm:$0xff]
      %v400 = vld [vmem:[%s1 + $0x2e0] sm:$0xff]
      %v401 = vld [vmem:[%s1 + $0x2e8] sm:$0xff]
      %v402 = vld [vmem:[%s1 + $0x2f0] sm:$0xff]
      %v403 = vld [vmem:[%s1 + $0x2f8] sm:$0xff]
      %v404 = vld [vmem:[%s1 + $0x300] sm:$0xff]
      %v405 = vld [vmem:[%s1 + $0x308] sm:$0xff]
      %v406 = vld [vmem:[%s1 + $0x310] sm:$0xff]
      %v407 = vld [vmem:[%s1 + $0x318] sm:$0xff]
      %v408 = vld [vmem:[%s1 + $0x320] sm:$0xff]
      %v409 = vld [vmem:[%s1 + $0x328] sm:$0xff]
      %v410 = vld [vmem:[%s1 + $0x330] sm:$0xff]
      %v411 = vld [vmem:[%s1 + $0x338] sm:$0xff]
      %v412 = vld [vmem:[%s1 + $0x340] sm:$0xff]
      %v413 = vld [vmem:[%s1 + $0x348] sm:$0xff]
      %v414 = vld [vmem:[%s1 + $0x350] sm:$0xff]
      %v415 = vld [vmem:[%s1 + $0x358] sm:$0xff]
      %v416 = vld [vmem:[%s1 + $0x360] sm:$0xff]
      %v417 = vld [vmem:[%s1 + $0x368] sm:$0xff]
      %v418 = vld [vmem:[%s1 + $0x370] sm:$0xff]
      %v419 = vld [vmem:[%s1 + $0x378] sm:$0xff]
      %v420 = vld [vmem:[%s1 + $0x380] sm:$0xff]
      %v421 = vld [vmem:[%s1 + $0x388] sm:$0xff]
      %v422 = vld [vmem:[%s1 + $0x390] sm:$0xff]
      %v423 = vld [vmem:[%s1 + $0x398] sm:$0xff]
      %v424 = vld [vmem:[%s1 + $0x3a0] sm:$0xff]
      %v425 = vld [vmem:[%s1 + $0x3a8] sm:$0xff]
      %v426 = vld [vmem:[%s1 + $0x3b0] sm:$0xff]
      %v427 = vld [vmem:[%s1 + $0x3b8] sm:$0xff]
      %v428 = vld [vmem:[%s1 + $0x3c0] sm:$0xff]
      %v429 = vld [vmem:[%s1 + $0x3c8] sm:$0xff]
      %v430 = vld [vmem:[%s1 + $0x3d0] sm:$0xff]
      %v431 = vld [vmem:[%s1 + $0x3d8] sm:$0xff]
      %v432 = vld [vmem:[%s1 + $0x3e0] sm:$0xff]
      %v433 = vld [vmem:[%s1 + $0x3e8] sm:$0xff]
      %v434 = vld [vmem:[%s1 + $0x3f0] sm:$0xff]
      %v435 = vld [vmem:[%s1 + $0x3f8] sm:$0xff]
      %v438 = vunpack.c.l.s4 1983009808
      %v439 = vunpack.c.0.s8 %v438
      %v440 = vlaneseq
      %v441 = vshrl.u32 %v440, 7
      %v442 = vsub.s32 %v439, %v441
      %v443 = vrot.slane %v307, %v442
      %v444 = vcombine.high %v443, %v443
      %v575 = vunpack.c.l.b16 %v308
      %v576 = vunpack.c.h.b16 %v308
      %v577 = vunpack.c.l.b16 %v309
      %v578 = vunpack.c.h.b16 %v309
      %v579 = vunpack.c.l.b16 %v310
      %v580 = vunpack.c.h.b16 %v310
      %v581 = vunpack.c.l.b16 %v311
      %v582 = vunpack.c.h.b16 %v311
      %v583 = vunpack.c.l.b16 %v312
      %v584 = vunpack.c.h.b16 %v312
      %v585 = vunpack.c.l.b16 %v313
      %v586 = vunpack.c.h.b16 %v313
      %v587 = vunpack.c.l.b16 %v314
      %v588 = vunpack.c.h.b16 %v314
      %v589 = vunpack.c.l.b16 %v315
      %v590 = vunpack.c.h.b16 %v315
      %v591 = vunpack.c.l.b16 %v316
      %v592 = vunpack.c.h.b16 %v316
      %v593 = vunpack.c.l.b16 %v317
      %v594 = vunpack.c.h.b16 %v317
      %v595 = vunpack.c.l.b16 %v318
      %v596 = vunpack.c.h.b16 %v318
      %v597 = vunpack.c.l.b16 %v319
      %v598 = vunpack.c.h.b16 %v319
      %v599 = vunpack.c.l.b16 %v320
      %v600 = vunpack.c.h.b16 %v320
      %v601 = vunpack.c.l.b16 %v321
      %v602 = vunpack.c.h.b16 %v321
      %v603 = vunpack.c.l.b16 %v322
      %v604 = vunpack.c.h.b16 %v322
      %v605 = vunpack.c.l.b16 %v323
      %v606 = vunpack.c.h.b16 %v323
      %v607 = vunpack.c.l.b16 %v324
      %v608 = vunpack.c.h.b16 %v324
      %v609 = vunpack.c.l.b16 %v325
      %v610 = vunpack.c.h.b16 %v325
      %v611 = vunpack.c.l.b16 %v326
      %v612 = vunpack.c.h.b16 %v326
      %v613 = vunpack.c.l.b16 %v327
      %v614 = vunpack.c.h.b16 %v327
      %v615 = vunpack.c.l.b16 %v328
      %v616 = vunpack.c.h.b16 %v328
      %v617 = vunpack.c.l.b16 %v329
      %v618 = vunpack.c.h.b16 %v329
      %v619 = vunpack.c.l.b16 %v330
      %v620 = vunpack.c.h.b16 %v330
      %v621 = vunpack.c.l.b16 %v331
      %v622 = vunpack.c.h.b16 %v331
      %v623 = vunpack.c.l.b16 %v332
      %v624 = vunpack.c.h.b16 %v332
      %v625 = vunpack.c.l.b16 %v333
      %v626 = vunpack.c.h.b16 %v333
      %v627 = vunpack.c.l.b16 %v334
      %v628 = vunpack.c.h.b16 %v334
      %v629 = vunpack.c.l.b16 %v335
      %v630 = vunpack.c.h.b16 %v335
      %v631 = vunpack.c.l.b16 %v336
      %v632 = vunpack.c.h.b16 %v336
      %v633 = vunpack.c.l.b16 %v337
      %v634 = vunpack.c.h.b16 %v337
      %v635 = vunpack.c.l.b16 %v338
      %v636 = vunpack.c.h.b16 %v338
      %v637 = vunpack.c.l.b16 %v339
      %v638 = vunpack.c.h.b16 %v339
      %v639 = vunpack.c.l.b16 %v340
      %v640 = vunpack.c.h.b16 %v340
      %v641 = vunpack.c.l.b16 %v341
      %v642 = vunpack.c.h.b16 %v341
      %v643 = vunpack.c.l.b16 %v342
      %v644 = vunpack.c.h.b16 %v342
      %v645 = vunpack.c.l.b16 %v343
      %v646 = vunpack.c.h.b16 %v343
      %v647 = vunpack.c.l.b16 %v344
      %v648 = vunpack.c.h.b16 %v344
      %v649 = vunpack.c.l.b16 %v345
      %v650 = vunpack.c.h.b16 %v345
      %v651 = vunpack.c.l.b16 %v346
      %v652 = vunpack.c.h.b16 %v346
      %v653 = vunpack.c.l.b16 %v347
      %v654 = vunpack.c.h.b16 %v347
      %v655 = vunpack.c.l.b16 %v348
      %v656 = vunpack.c.h.b16 %v348
      %v657 = vunpack.c.l.b16 %v349
      %v658 = vunpack.c.h.b16 %v349
      %v659 = vunpack.c.l.b16 %v350
      %v660 = vunpack.c.h.b16 %v350
      %v661 = vunpack.c.l.b16 %v351
      %v662 = vunpack.c.h.b16 %v351
      %v663 = vunpack.c.l.b16 %v352
      %v664 = vunpack.c.h.b16 %v352
      %v665 = vunpack.c.l.b16 %v353
      %v666 = vunpack.c.h.b16 %v353
      %v667 = vunpack.c.l.b16 %v354
      %v668 = vunpack.c.h.b16 %v354
      %v669 = vunpack.c.l.b16 %v355
      %v670 = vunpack.c.h.b16 %v355
      %v671 = vunpack.c.l.b16 %v356
      %v672 = vunpack.c.h.b16 %v356
      %v673 = vunpack.c.l.b16 %v357
      %v674 = vunpack.c.h.b16 %v357
      %v675 = vunpack.c.l.b16 %v358
      %v676 = vunpack.c.h.b16 %v358
      %v677 = vunpack.c.l.b16 %v359
      %v678 = vunpack.c.h.b16 %v359
      %v679 = vunpack.c.l.b16 %v360
      %v680 = vunpack.c.h.b16 %v360
      %v681 = vunpack.c.l.b16 %v361
      %v682 = vunpack.c.h.b16 %v361
      %v683 = vunpack.c.l.b16 %v362
      %v684 = vunpack.c.h.b16 %v362
      %v685 = vunpack.c.l.b16 %v363
      %v686 = vunpack.c.h.b16 %v363
      %v687 = vunpack.c.l.b16 %v364
      %v688 = vunpack.c.h.b16 %v364
      %v689 = vunpack.c.l.b16 %v365
      %v690 = vunpack.c.h.b16 %v365
      %v691 = vunpack.c.l.b16 %v366
      %v692 = vunpack.c.h.b16 %v366
      %v693 = vunpack.c.l.b16 %v367
      %v694 = vunpack.c.h.b16 %v367
      %v695 = vunpack.c.l.b16 %v368
      %v696 = vunpack.c.h.b16 %v368
      %v697 = vunpack.c.l.b16 %v369
      %v698 = vunpack.c.h.b16 %v369
      %v699 = vunpack.c.l.b16 %v370
      %v700 = vunpack.c.h.b16 %v370
      %v701 = vunpack.c.l.b16 %v371
      %v702 = vunpack.c.h.b16 %v371
      %v703 = vunpack.c.l.b16 %v372
      %v704 = vunpack.c.h.b16 %v372
      %v705 = vunpack.c.l.b16 %v373
      %v706 = vunpack.c.h.b16 %v373
      %v707 = vunpack.c.l.b16 %v374
      %v708 = vunpack.c.h.b16 %v374
      %v709 = vunpack.c.l.b16 %v375
      %v710 = vunpack.c.h.b16 %v375
      %v711 = vunpack.c.l.b16 %v376
      %v712 = vunpack.c.h.b16 %v376
      %v713 = vunpack.c.l.b16 %v377
      %v714 = vunpack.c.h.b16 %v377
      %v715 = vunpack.c.l.b16 %v378
      %v716 = vunpack.c.h.b16 %v378
      %v717 = vunpack.c.l.b16 %v379
      %v718 = vunpack.c.h.b16 %v379
      %v719 = vunpack.c.l.b16 %v380
      %v720 = vunpack.c.h.b16 %v380
      %v721 = vunpack.c.l.b16 %v381
      %v722 = vunpack.c.h.b16 %v381
      %v723 = vunpack.c.l.b16 %v382
      %v724 = vunpack.c.h.b16 %v382
      %v725 = vunpack.c.l.b16 %v383
      %v726 = vunpack.c.h.b16 %v383
      %v727 = vunpack.c.l.b16 %v384
      %v728 = vunpack.c.h.b16 %v384
      %v729 = vunpack.c.l.b16 %v385
      %v730 = vunpack.c.h.b16 %v385
      %v731 = vunpack.c.l.b16 %v386
      %v732 = vunpack.c.h.b16 %v386
      %v733 = vunpack.c.l.b16 %v387
      %v734 = vunpack.c.h.b16 %v387
      %v735 = vunpack.c.l.b16 %v388
      %v736 = vunpack.c.h.b16 %v388
      %v737 = vunpack.c.l.b16 %v389
      %v738 = vunpack.c.h.b16 %v389
      %v739 = vunpack.c.l.b16 %v390
      %v740 = vunpack.c.h.b16 %v390
      %v741 = vunpack.c.l.b16 %v391
      %v742 = vunpack.c.h.b16 %v391
      %v743 = vunpack.c.l.b16 %v392
      %v744 = vunpack.c.h.b16 %v392
      %v745 = vunpack.c.l.b16 %v393
      %v746 = vunpack.c.h.b16 %v393
      %v747 = vunpack.c.l.b16 %v394
      %v748 = vunpack.c.h.b16 %v394
      %v749 = vunpack.c.l.b16 %v395
      %v750 = vunpack.c.h.b16 %v395
      %v751 = vunpack.c.l.b16 %v396
      %v752 = vunpack.c.h.b16 %v396
      %v753 = vunpack.c.l.b16 %v397
      %v754 = vunpack.c.h.b16 %v397
      %v755 = vunpack.c.l.b16 %v398
      %v756 = vunpack.c.h.b16 %v398
      %v757 = vunpack.c.l.b16 %v399
      %v758 = vunpack.c.h.b16 %v399
      %v759 = vunpack.c.l.b16 %v400
      %v760 = vunpack.c.h.b16 %v400
      %v761 = vunpack.c.l.b16 %v401
      %v762 = vunpack.c.h.b16 %v401
      %v763 = vunpack.c.l.b16 %v402
      %v764 = vunpack.c.h.b16 %v402
      %v765 = vunpack.c.l.b16 %v403
      %v766 = vunpack.c.h.b16 %v403
      %v767 = vunpack.c.l.b16 %v404
      %v768 = vunpack.c.h.b16 %v404
      %v769 = vunpack.c.l.b16 %v405
      %v770 = vunpack.c.h.b16 %v405
      %v771 = vunpack.c.l.b16 %v406
      %v772 = vunpack.c.h.b16 %v406
      %v773 = vunpack.c.l.b16 %v407
      %v774 = vunpack.c.h.b16 %v407
      %v775 = vunpack.c.l.b16 %v408
      %v776 = vunpack.c.h.b16 %v408
      %v777 = vunpack.c.l.b16 %v409
      %v778 = vunpack.c.h.b16 %v409
      %v779 = vunpack.c.l.b16 %v410
      %v780 = vunpack.c.h.b16 %v410
      %v781 = vunpack.c.l.b16 %v411
      %v782 = vunpack.c.h.b16 %v411
      %v783 = vunpack.c.l.b16 %v412
      %v784 = vunpack.c.h.b16 %v412
      %v785 = vunpack.c.l.b16 %v413
      %v786 = vunpack.c.h.b16 %v413
      %v787 = vunpack.c.l.b16 %v414
      %v788 = vunpack.c.h.b16 %v414
      %v789 = vunpack.c.l.b16 %v415
      %v790 = vunpack.c.h.b16 %v415
      %v791 = vunpack.c.l.b16 %v416
      %v792 = vunpack.c.h.b16 %v416
      %v793 = vunpack.c.l.b16 %v417
      %v794 = vunpack.c.h.b16 %v417
      %v795 = vunpack.c.l.b16 %v418
      %v796 = vunpack.c.h.b16 %v418
      %v797 = vunpack.c.l.b16 %v419
      %v798 = vunpack.c.h.b16 %v419
      %v799 = vunpack.c.l.b16 %v420
      %v800 = vunpack.c.h.b16 %v420
      %v801 = vunpack.c.l.b16 %v421
      %v802 = vunpack.c.h.b16 %v421
      %v803 = vunpack.c.l.b16 %v422
      %v804 = vunpack.c.h.b16 %v422
      %v805 = vunpack.c.l.b16 %v423
      %v806 = vunpack.c.h.b16 %v423
      %v807 = vunpack.c.l.b16 %v424
      %v808 = vunpack.c.h.b16 %v424
      %v809 = vunpack.c.l.b16 %v425
      %v810 = vunpack.c.h.b16 %v425
      %v811 = vunpack.c.l.b16 %v426
      %v812 = vunpack.c.h.b16 %v426
      %v813 = vunpack.c.l.b16 %v427
      %v814 = vunpack.c.h.b16 %v427
      %v815 = vunpack.c.l.b16 %v428
      %v816 = vunpack.c.h.b16 %v428
      %v817 = vunpack.c.l.b16 %v429
      %v818 = vunpack.c.h.b16 %v429
      %v819 = vunpack.c.l.b16 %v430
      %v820 = vunpack.c.h.b16 %v430
      %v821 = vunpack.c.l.b16 %v431
      %v822 = vunpack.c.h.b16 %v431
      %v823 = vunpack.c.l.b16 %v432
      %v824 = vunpack.c.h.b16 %v432
      %v825 = vunpack.c.l.b16 %v433
      %v826 = vunpack.c.h.b16 %v433
      %v827 = vunpack.c.l.b16 %v434
      %v828 = vunpack.c.h.b16 %v434
      %v829 = vunpack.c.l.b16 %v435
      %v830 = vunpack.c.h.b16 %v435
      %v831 = vpack.c.b16 %v583, %v575
      %v832 = vpack.c.b16 %v584, %v576
      %v833 = vpack.c.b16 %v585, %v577
      %v834 = vpack.c.b16 %v586, %v578
      %v835 = vpack.c.b16 %v587, %v579
      %v836 = vpack.c.b16 %v588, %v580
      %v837 = vpack.c.b16 %v589, %v581
      %v838 = vpack.c.b16 %v590, %v582
      %v839 = vpack.c.b16 %v599, %v591
      %v840 = vpack.c.b16 %v600, %v592
      %v841 = vpack.c.b16 %v601, %v593
      %v842 = vpack.c.b16 %v602, %v594
      %v843 = vpack.c.b16 %v603, %v595
      %v844 = vpack.c.b16 %v604, %v596
      %v845 = vpack.c.b16 %v605, %v597
      %v846 = vpack.c.b16 %v606, %v598
      %v847 = vpack.c.b16 %v615, %v607
      %v848 = vpack.c.b16 %v616, %v608
      %v849 = vpack.c.b16 %v617, %v609
      %v850 = vpack.c.b16 %v618, %v610
      %v851 = vpack.c.b16 %v619, %v611
      %v852 = vpack.c.b16 %v620, %v612
      %v853 = vpack.c.b16 %v621, %v613
      %v854 = vpack.c.b16 %v622, %v614
      %v855 = vpack.c.b16 %v631, %v623
      %v856 = vpack.c.b16 %v632, %v624
      %v857 = vpack.c.b16 %v633, %v625
      %v858 = vpack.c.b16 %v634, %v626
      %v859 = vpack.c.b16 %v635, %v627
      %v860 = vpack.c.b16 %v636, %v628
      %v861 = vpack.c.b16 %v637, %v629
      %v862 = vpack.c.b16 %v638, %v630
      %v863 = vpack.c.b16 %v647, %v639
      %v864 = vpack.c.b16 %v648, %v640
      %v865 = vpack.c.b16 %v649, %v641
      %v866 = vpack.c.b16 %v650, %v642
      %v867 = vpack.c.b16 %v651, %v643
      %v868 = vpack.c.b16 %v652, %v644
      %v869 = vpack.c.b16 %v653, %v645
      %v870 = vpack.c.b16 %v654, %v646
      %v871 = vpack.c.b16 %v663, %v655
      %v872 = vpack.c.b16 %v664, %v656
      %v873 = vpack.c.b16 %v665, %v657
      %v874 = vpack.c.b16 %v666, %v658
      %v875 = vpack.c.b16 %v667, %v659
      %v876 = vpack.c.b16 %v668, %v660
      %v877 = vpack.c.b16 %v669, %v661
      %v878 = vpack.c.b16 %v670, %v662
      %v879 = vpack.c.b16 %v679, %v671
      %v880 = vpack.c.b16 %v680, %v672
      %v881 = vpack.c.b16 %v681, %v673
      %v882 = vpack.c.b16 %v682, %v674
      %v883 = vpack.c.b16 %v683, %v675
      %v884 = vpack.c.b16 %v684, %v676
      %v885 = vpack.c.b16 %v685, %v677
      %v886 = vpack.c.b16 %v686, %v678
      %v887 = vpack.c.b16 %v695, %v687
      %v888 = vpack.c.b16 %v696, %v688
      %v889 = vpack.c.b16 %v697, %v689
      %v890 = vpack.c.b16 %v698, %v690
      %v891 = vpack.c.b16 %v699, %v691
      %v892 = vpack.c.b16 %v700, %v692
      %v893 = vpack.c.b16 %v701, %v693
      %v894 = vpack.c.b16 %v702, %v694
      %v895 = vpack.c.b16 %v711, %v703
      %v896 = vpack.c.b16 %v712, %v704
      %v897 = vpack.c.b16 %v713, %v705
      %v898 = vpack.c.b16 %v714, %v706
      %v899 = vpack.c.b16 %v715, %v707
      %v900 = vpack.c.b16 %v716, %v708
      %v901 = vpack.c.b16 %v717, %v709
      %v902 = vpack.c.b16 %v718, %v710
      %v903 = vpack.c.b16 %v727, %v719
      %v904 = vpack.c.b16 %v728, %v720
      %v905 = vpack.c.b16 %v729, %v721
      %v906 = vpack.c.b16 %v730, %v722
      %v907 = vpack.c.b16 %v731, %v723
      %v908 = vpack.c.b16 %v732, %v724
      %v909 = vpack.c.b16 %v733, %v725
      %v910 = vpack.c.b16 %v734, %v726
      %v911 = vpack.c.b16 %v743, %v735
      %v912 = vpack.c.b16 %v744, %v736
      %v913 = vpack.c.b16 %v745, %v737
      %v914 = vpack.c.b16 %v746, %v738
      %v915 = vpack.c.b16 %v747, %v739
      %v916 = vpack.c.b16 %v748, %v740
      %v917 = vpack.c.b16 %v749, %v741
      %v918 = vpack.c.b16 %v750, %v742
      %v919 = vpack.c.b16 %v759, %v751
      %v920 = vpack.c.b16 %v760, %v752
      %v921 = vpack.c.b16 %v761, %v753
      %v922 = vpack.c.b16 %v762, %v754
      %v923 = vpack.c.b16 %v763, %v755
      %v924 = vpack.c.b16 %v764, %v756
      %v925 = vpack.c.b16 %v765, %v757
      %v926 = vpack.c.b16 %v766, %v758
      %v927 = vpack.c.b16 %v775, %v767
      %v928 = vpack.c.b16 %v776, %v768
      %v929 = vpack.c.b16 %v777, %v769
      %v930 = vpack.c.b16 %v778, %v770
      %v931 = vpack.c.b16 %v779, %v771
      %v932 = vpack.c.b16 %v780, %v772
      %v933 = vpack.c.b16 %v781, %v773
      %v934 = vpack.c.b16 %v782, %v774
      %v935 = vpack.c.b16 %v791, %v783
      %v936 = vpack.c.b16 %v792, %v784
      %v937 = vpack.c.b16 %v793, %v785
      %v938 = vpack.c.b16 %v794, %v786
      %v939 = vpack.c.b16 %v795, %v787
      %v940 = vpack.c.b16 %v796, %v788
      %v941 = vpack.c.b16 %v797, %v789
      %v942 = vpack.c.b16 %v798, %v790
      %v943 = vpack.c.b16 %v807, %v799
      %v944 = vpack.c.b16 %v808, %v800
      %v945 = vpack.c.b16 %v809, %v801
      %v946 = vpack.c.b16 %v810, %v802
      %v947 = vpack.c.b16 %v811, %v803
      %v948 = vpack.c.b16 %v812, %v804
      %v949 = vpack.c.b16 %v813, %v805
      %v950 = vpack.c.b16 %v814, %v806
      %v951 = vpack.c.b16 %v823, %v815
      %v952 = vpack.c.b16 %v824, %v816
      %v953 = vpack.c.b16 %v825, %v817
      %v954 = vpack.c.b16 %v826, %v818
      %v955 = vpack.c.b16 %v827, %v819
      %v956 = vpack.c.b16 %v828, %v820
      %v957 = vpack.c.b16 %v829, %v821
      %v958 = vpack.c.b16 %v830, %v822
      %1087 = vmatprep.subr.bf16.mxu0 %v832
      %1088 = vmatpush1.bf16.msra.mxu0 %v831
      %1089 = vmatprep.subr.bf16.mxu0 %v840
      %1090 = vmatpush1.bf16.msra.mxu0 %v839
      %1091 = vmatprep.subr.bf16.mxu0 %v848
      %1092 = vmatpush1.bf16.msra.mxu0 %v847
      %1093 = vmatprep.subr.bf16.mxu0 %v856
      %1094 = vmatpush1.bf16.msra.mxu0 %v855
      %1095 = vmatprep.subr.bf16.mxu0 %v864
      %1096 = vmatpush1.bf16.msra.mxu0 %v863
      %1097 = vmatprep.subr.bf16.mxu0 %v872
      %1098 = vmatpush1.bf16.msra.mxu0 %v871
      %1099 = vmatprep.subr.bf16.mxu0 %v880
      %1100 = vmatpush1.bf16.msra.mxu0 %v879
      %1101 = vmatprep.subr.bf16.mxu0 %v888
      %1102 = vmatpush1.bf16.msra.mxu0 %v887
      %1103 = vmatprep.subr.bf16.mxu0 %v896
      %1104 = vmatpush1.bf16.msra.mxu0 %v895
      %1105 = vmatprep.subr.bf16.mxu0 %v904
      %1106 = vmatpush1.bf16.msra.mxu0 %v903
      %1107 = vmatprep.subr.bf16.mxu0 %v912
      %1108 = vmatpush1.bf16.msra.mxu0 %v911
      %1109 = vmatprep.subr.bf16.mxu0 %v920
      %1110 = vmatpush1.bf16.msra.mxu0 %v919
      %1111 = vmatprep.subr.bf16.mxu0 %v928
      %1112 = vmatpush1.bf16.msra.mxu0 %v927
      %1113 = vmatprep.subr.bf16.mxu0 %v936
      %1114 = vmatpush1.bf16.msra.mxu0 %v935
      %1115 = vmatprep.subr.bf16.mxu0 %v944
      %1116 = vmatpush1.bf16.msra.mxu0 %v943
      %1117 = vmatprep.subr.bf16.mxu0 %v952
      %1118 = vmatpush1.bf16.msra.mxu0 %v951
      %1119 = vmatprep.mubr.bf16.mxu0 %v444
      %1120 = vmatmul.mubr.bf16.gmra.mrb[0].mxu0 %v443
      %v1121 = vpop.f32.mrb[0].mxu0
      %v1122 = vadd.f32 0.0, %v1121
      %v1123 = vpop.f32.mrb[0].mxu0
      %v1124 = vadd.f32 0.0, %v1123
      %v1125 = vpop.f32.mrb[0].mxu0
      %v1126 = vpop.f32.mrb[0].mxu0
      %1127 = vdwg.mxu0
      %1128 = vmatprep.subr.bf16.mxu0 %v834
      %1129 = vmatpush1.bf16.msra.mxu0 %v833
      %1130 = vmatprep.subr.bf16.mxu0 %v842
      %1131 = vmatpush1.bf16.msra.mxu0 %v841
      %1132 = vmatprep.subr.bf16.mxu0 %v850
      %1133 = vmatpush1.bf16.msra.mxu0 %v849
      %1134 = vmatprep.subr.bf16.mxu0 %v858
      %1135 = vmatpush1.bf16.msra.mxu0 %v857
      %1136 = vmatprep.subr.bf16.mxu0 %v866
      %1137 = vmatpush1.bf16.msra.mxu0 %v865
      %1138 = vmatprep.subr.bf16.mxu0 %v874
      %1139 = vmatpush1.bf16.msra.mxu0 %v873
      %1140 = vmatprep.subr.bf16.mxu0 %v882
      %1141 = vmatpush1.bf16.msra.mxu0 %v881
      %1142 = vmatprep.subr.bf16.mxu0 %v890
      %1143 = vmatpush1.bf16.msra.mxu0 %v889
      %1144 = vmatprep.subr.bf16.mxu0 %v898
      %1145 = vmatpush1.bf16.msra.mxu0 %v897
      %1146 = vmatprep.subr.bf16.mxu0 %v906
      %1147 = vmatpush1.bf16.msra.mxu0 %v905
      %1148 = vmatprep.subr.bf16.mxu0 %v914
      %1149 = vmatpush1.bf16.msra.mxu0 %v913
      %1150 = vmatprep.subr.bf16.mxu0 %v922
      %1151 = vmatpush1.bf16.msra.mxu0 %v921
      %1152 = vmatprep.subr.bf16.mxu0 %v930
      %1153 = vmatpush1.bf16.msra.mxu0 %v929
      %1154 = vmatprep.subr.bf16.mxu0 %v938
      %1155 = vmatpush1.bf16.msra.mxu0 %v937
      %1156 = vmatprep.subr.bf16.mxu0 %v946
      %1157 = vmatpush1.bf16.msra.mxu0 %v945
      %1158 = vmatprep.subr.bf16.mxu0 %v954
      %1159 = vmatpush1.bf16.msra.mxu0 %v953
      %1160 = vmatprep.mubr.bf16.mxu0 %v444
      %1161 = vmatmul.mubr.bf16.gmra.mrb[0].mxu0 %v443
      %v1162 = vpop.f32.mrb[0].mxu0
      %v1163 = vadd.f32 0.0, %v1162
      %v1164 = vpop.f32.mrb[0].mxu0
      %v1165 = vadd.f32 0.0, %v1164
      %v1166 = vpop.f32.mrb[0].mxu0
      %v1167 = vpop.f32.mrb[0].mxu0
      %1168 = vdwg.mxu0
      %1169 = vmatprep.subr.bf16.mxu0 %v836
      %1170 = vmatpush1.bf16.msra.mxu0 %v835
      %1171 = vmatprep.subr.bf16.mxu0 %v844
      %1172 = vmatpush1.bf16.msra.mxu0 %v843
      %1173 = vmatprep.subr.bf16.mxu0 %v852
      %1174 = vmatpush1.bf16.msra.mxu0 %v851
      %1175 = vmatprep.subr.bf16.mxu0 %v860
      %1176 = vmatpush1.bf16.msra.mxu0 %v859
      %1177 = vmatprep.subr.bf16.mxu0 %v868
      %1178 = vmatpush1.bf16.msra.mxu0 %v867
      %1179 = vmatprep.subr.bf16.mxu0 %v876
      %1180 = vmatpush1.bf16.msra.mxu0 %v875
      %1181 = vmatprep.subr.bf16.mxu0 %v884
      %1182 = vmatpush1.bf16.msra.mxu0 %v883
      %1183 = vmatprep.subr.bf16.mxu0 %v892
      %1184 = vmatpush1.bf16.msra.mxu0 %v891
      %1185 = vmatprep.subr.bf16.mxu0 %v900
      %1186 = vmatpush1.bf16.msra.mxu0 %v899
      %1187 = vmatprep.subr.bf16.mxu0 %v908
      %1188 = vmatpush1.bf16.msra.mxu0 %v907
      %1189 = vmatprep.subr.bf16.mxu0 %v916
      %1190 = vmatpush1.bf16.msra.mxu0 %v915
      %1191 = vmatprep.subr.bf16.mxu0 %v924
      %1192 = vmatpush1.bf16.msra.mxu0 %v923
      %1193 = vmatprep.subr.bf16.mxu0 %v932
      %1194 = vmatpush1.bf16.msra.mxu0 %v931
      %1195 = vmatprep.subr.bf16.mxu0 %v940
      %1196 = vmatpush1.bf16.msra.mxu0 %v939
      %1197 = vmatprep.subr.bf16.mxu0 %v948
      %1198 = vmatpush1.bf16.msra.mxu0 %v947
      %1199 = vmatprep.subr.bf16.mxu0 %v956
      %1200 = vmatpush1.bf16.msra.mxu0 %v955
      %1201 = vmatprep.mubr.bf16.mxu0 %v444
      %1202 = vmatmul.mubr.bf16.gmra.mrb[0].mxu0 %v443
      %v1203 = vpop.f32.mrb[0].mxu0
      %v1204 = vadd.f32 0.0, %v1203
      %v1205 = vpop.f32.mrb[0].mxu0
      %v1206 = vadd.f32 0.0, %v1205
      %v1207 = vpop.f32.mrb[0].mxu0
      %v1208 = vpop.f32.mrb[0].mxu0
      %1209 = vdwg.mxu0
      %1210 = vmatprep.subr.bf16.mxu0 %v838
      %1211 = vmatpush1.bf16.msra.mxu0 %v837
      %1212 = vmatprep.subr.bf16.mxu0 %v846
      %1213 = vmatpush1.bf16.msra.mxu0 %v845
      %1214 = vmatprep.subr.bf16.mxu0 %v854
      %1215 = vmatpush1.bf16.msra.mxu0 %v853
      %1216 = vmatprep.subr.bf16.mxu0 %v862
      %1217 = vmatpush1.bf16.msra.mxu0 %v861
      %1218 = vmatprep.subr.bf16.mxu0 %v870
      %1219 = vmatpush1.bf16.msra.mxu0 %v869
      %1220 = vmatprep.subr.bf16.mxu0 %v878
      %1221 = vmatpush1.bf16.msra.mxu0 %v877
      %1222 = vmatprep.subr.bf16.mxu0 %v886
      %1223 = vmatpush1.bf16.msra.mxu0 %v885
      %1224 = vmatprep.subr.bf16.mxu0 %v894
      %1225 = vmatpush1.bf16.msra.mxu0 %v893
      %1226 = vmatprep.subr.bf16.mxu0 %v902
      %1227 = vmatpush1.bf16.msra.mxu0 %v901
      %1228 = vmatprep.subr.bf16.mxu0 %v910
      %1229 = vmatpush1.bf16.msra.mxu0 %v909
      %1230 = vmatprep.subr.bf16.mxu0 %v918
      %1231 = vmatpush1.bf16.msra.mxu0 %v917
      %1232 = vmatprep.subr.bf16.mxu0 %v926
      %1233 = vmatpush1.bf16.msra.mxu0 %v925
      %1234 = vmatprep.subr.bf16.mxu0 %v934
      %1235 = vmatpush1.bf16.msra.mxu0 %v933
      %1236 = vmatprep.subr.bf16.mxu0 %v942
      %1237 = vmatpush1.bf16.msra.mxu0 %v941
      %1238 = vmatprep.subr.bf16.mxu0 %v950
      %1239 = vmatpush1.bf16.msra.mxu0 %v949
      %1240 = vmatprep.subr.bf16.mxu0 %v958
      %1241 = vmatpush1.bf16.msra.mxu0 %v957
      %1242 = vmatprep.mubr.bf16.mxu0 %v444
      %1243 = vmatmul.mubr.bf16.gmra.mrb[0].mxu0 %v443
      %v1244 = vpop.f32.mrb[0].mxu0
      %v1245 = vadd.f32 0.0, %v1244
      %v1246 = vpop.f32.mrb[0].mxu0
      %v1247 = vadd.f32 0.0, %v1246
      %v1248 = vpop.f32.mrb[0].mxu0
      %v1249 = vpop.f32.mrb[0].mxu0
      %1250 = vdwg.mxu0
      %v1251 = vmax.f32 %v1122, 0.0
      %v1252 = vmax.f32 %v1124, 0.0
      %v1253 = vmax.f32 %v1163, 0.0
      %v1254 = vmax.f32 %v1165, 0.0
      %v1255 = vmax.f32 %v1204, 0.0
      %v1256 = vmax.f32 %v1206, 0.0
      %v1257 = vmax.f32 %v1245, 0.0
      %v1258 = vmax.f32 %v1247, 0.0
      %1267 = vrot.lane.b32.xlu0 %v1251, 33
      %v1268 = vpop.permute.xlu0 %1267
      %1269 = vrot.lane.b32.xlu0 %v1252, 33
      %v1270 = vpop.permute.xlu0 %1269
      %1271 = vrot.lane.b32.xlu0 %v1253, 33
      %v1272 = vpop.permute.xlu0 %1271
      %1273 = vrot.lane.b32.xlu0 %v1254, 33
      %v1274 = vpop.permute.xlu0 %1273
      %1275 = vrot.lane.b32.xlu0 %v1255, 33
      %v1276 = vpop.permute.xlu0 %1275
      %1277 = vrot.lane.b32.xlu0 %v1256, 33
      %v1278 = vpop.permute.xlu0 %1277
      %1279 = vrot.lane.b32.xlu0 %v1257, 33
      %v1280 = vpop.permute.xlu0 %1279
      %1281 = vrot.lane.b32.xlu0 %v1258, 33
      %v1282 = vpop.permute.xlu0 %1281
      %vm1283 = vcmask 269312
      %v1284 = vsel %vm1283, %v1268, %v1270
      %v1285 = vsel %vm1283, %v1270, %v1272
      %v1286 = vsel %vm1283, %v1272, %v1274
      %v1287 = vsel %vm1283, %v1274, %v1276
      %v1288 = vsel %vm1283, %v1276, %v1278
      %v1289 = vsel %vm1283, %v1278, %v1280
      %v1290 = vsel %vm1283, %v1280, %v1282
      %v1300 = vsel %vm1283, 0.0, %v1268
      %v1301 = vsel %vm1283, %v1282, 0.0
      %v1302 = vlaneseq
      %v1303 = vand.u32 %v1302, 127
      %v1304 = vadd.s32 %v1303, 128
      %v1305 = vadd.s32 %v1303, 256
      %v1306 = vadd.s32 %v1303, 384
      %v1307 = vadd.s32 %v1303, 512
      %v1308 = vadd.s32 %v1303, 640
      %v1309 = vadd.s32 %v1303, 768
      %v1310 = vadd.s32 %v1303, 896
      %vm1311 = vcmp.lt.s32.totalorder %v1303, 0
      %v1312 = vsub.s32 0, %v1303
      %v1313 = vsel %vm1311, %v1312, %v1303
      %v1314 = vshrl.u32 %v1313, 5
      %v1315 = vand.u32 %v1313, 31
      %v1316 = vsub.s32 0, %v1315
      %v1317 = vsel %vm1311, %v1316, %v1315
      %vm1318 = vcmp.lt.s32.totalorder %v1304, 0
      %v1319 = vsub.s32 0, %v1304
      %v1320 = vsel %vm1318, %v1319, %v1304
      %v1321 = vshrl.u32 %v1320, 5
      %v1322 = vand.u32 %v1320, 31
      %v1323 = vsub.s32 0, %v1322
      %v1324 = vsel %vm1318, %v1323, %v1322
      %vm1325 = vcmp.lt.s32.totalorder %v1305, 0
      %v1326 = vsub.s32 0, %v1305
      %v1327 = vsel %vm1325, %v1326, %v1305
      %v1328 = vshrl.u32 %v1327, 5
      %v1329 = vand.u32 %v1327, 31
      %v1330 = vsub.s32 0, %v1329
      %v1331 = vsel %vm1325, %v1330, %v1329
      %vm1332 = vcmp.lt.s32.totalorder %v1306, 0
      %v1333 = vsub.s32 0, %v1306
      %v1334 = vsel %vm1332, %v1333, %v1306
      %v1335 = vshrl.u32 %v1334, 5
      %v1336 = vand.u32 %v1334, 31
      %v1337 = vsub.s32 0, %v1336
      %v1338 = vsel %vm1332, %v1337, %v1336
      %vm1339 = vcmp.lt.s32.totalorder %v1307, 0
      %v1340 = vsub.s32 0, %v1307
      %v1341 = vsel %vm1339, %v1340, %v1307
      %v1342 = vshrl.u32 %v1341, 5
      %v1343 = vand.u32 %v1341, 31
      %v1344 = vsub.s32 0, %v1343
      %v1345 = vsel %vm1339, %v1344, %v1343
      %vm1346 = vcmp.lt.s32.totalorder %v1308, 0
      %v1347 = vsub.s32 0, %v1308
      %v1348 = vsel %vm1346, %v1347, %v1308
      %v1349 = vshrl.u32 %v1348, 5
      %v1350 = vand.u32 %v1348, 31
      %v1351 = vsub.s32 0, %v1350
      %v1352 = vsel %vm1346, %v1351, %v1350
      %vm1353 = vcmp.lt.s32.totalorder %v1309, 0
      %v1354 = vsub.s32 0, %v1309
      %v1355 = vsel %vm1353, %v1354, %v1309
      %v1356 = vshrl.u32 %v1355, 5
      %v1357 = vand.u32 %v1355, 31
      %v1358 = vsub.s32 0, %v1357
      %v1359 = vsel %vm1353, %v1358, %v1357
      %vm1360 = vcmp.lt.s32.totalorder %v1310, 0
      %v1361 = vsub.s32 0, %v1310
      %v1362 = vsel %vm1360, %v1361, %v1310
      %v1363 = vshrl.u32 %v1362, 5
      %v1364 = vand.u32 %v1362, 31
      %v1365 = vsub.s32 0, %v1364
      %v1366 = vsel %vm1360, %v1365, %v1364
      %vm1367 = vcmp.ne.s32.totalorder %v1317, 0
      %vm1368 = vcmp.ne.s32.totalorder %v1324, 0
      %vm1369 = vcmp.ne.s32.totalorder %v1331, 0
      %vm1370 = vcmp.ne.s32.totalorder %v1338, 0
      %vm1371 = vcmp.ne.s32.totalorder %v1345, 0
      %vm1372 = vcmp.ne.s32.totalorder %v1352, 0
      %vm1373 = vcmp.ne.s32.totalorder %v1359, 0
      %vm1374 = vcmp.ne.s32.totalorder %v1366, 0
      %vm1375 = vcmp.lt.s32.totalorder %v1317, 0
      %vm1376 = vcmp.lt.s32.totalorder %v1324, 0
      %vm1377 = vcmp.lt.s32.totalorder %v1331, 0
      %vm1378 = vcmp.lt.s32.totalorder %v1338, 0
      %vm1379 = vcmp.lt.s32.totalorder %v1345, 0
      %vm1380 = vcmp.lt.s32.totalorder %v1352, 0
      %vm1381 = vcmp.lt.s32.totalorder %v1359, 0
      %vm1382 = vcmp.lt.s32.totalorder %v1366, 0
      %vm1383 = vmand %vm1375, %vm1367
      %vm1384 = vmand %vm1376, %vm1368
      %vm1385 = vmand %vm1377, %vm1369
      %vm1386 = vmand %vm1378, %vm1370
      %vm1387 = vmand %vm1379, %vm1371
      %vm1388 = vmand %vm1380, %vm1372
      %vm1389 = vmand %vm1381, %vm1373
      %vm1390 = vmand %vm1382, %vm1374
      %v1391 = vadd.s32 %v1317, 32
      %v1392 = vadd.s32 %v1324, 32
      %v1393 = vadd.s32 %v1331, 32
      %v1394 = vadd.s32 %v1338, 32
      %v1395 = vadd.s32 %v1345, 32
      %v1396 = vadd.s32 %v1352, 32
      %v1397 = vadd.s32 %v1359, 32
      %v1398 = vadd.s32 %v1366, 32
      %v1399 = vsel %vm1383, %v1391, %v1317
      %v1400 = vsel %vm1384, %v1392, %v1324
      %v1401 = vsel %vm1385, %v1393, %v1331
      %v1402 = vsel %vm1386, %v1394, %v1338
      %v1403 = vsel %vm1387, %v1395, %v1345
      %v1404 = vsel %vm1388, %v1396, %v1352
      %v1405 = vsel %vm1389, %v1397, %v1359
      %v1406 = vsel %vm1390, %v1398, %v1366
      %vm1407 = vcmp.gt.s32.totalorder %v1399, 0
      %vm1408 = vcmp.gt.s32.totalorder %v1400, 0
      %vm1409 = vcmp.gt.s32.totalorder %v1401, 0
      %vm1410 = vcmp.gt.s32.totalorder %v1402, 0
      %vm1411 = vcmp.gt.s32.totalorder %v1403, 0
      %vm1412 = vcmp.gt.s32.totalorder %v1404, 0
      %vm1413 = vcmp.gt.s32.totalorder %v1405, 0
      %vm1414 = vcmp.gt.s32.totalorder %v1406, 0
      %v1415 = vsel %vm1407, %v1300, 0.0
      %v1416 = vsel %vm1408, %v1284, 0.0
      %v1417 = vsel %vm1409, %v1285, 0.0
      %v1418 = vsel %vm1410, %v1286, 0.0
      %v1419 = vsel %vm1411, %v1287, 0.0
      %v1420 = vsel %vm1412, %v1288, 0.0
      %v1421 = vsel %vm1413, %v1289, 0.0
      %v1422 = vsel %vm1414, %v1290, 0.0
      %vm1423 = vcmp.lt.s32.totalorder %v1399, 31
      %vm1424 = vcmp.lt.s32.totalorder %v1400, 31
      %vm1425 = vcmp.lt.s32.totalorder %v1401, 31
      %vm1426 = vcmp.lt.s32.totalorder %v1402, 31
      %vm1427 = vcmp.lt.s32.totalorder %v1403, 31
      %vm1428 = vcmp.lt.s32.totalorder %v1404, 31
      %vm1429 = vcmp.lt.s32.totalorder %v1405, 31
      %vm1430 = vcmp.lt.s32.totalorder %v1406, 31
      %1433 = vrot.lane.b32.xlu0 %v1300, 126
      %v1434 = vpop.permute.xlu0 %1433
      %1435 = vrot.lane.b32.xlu0 %v1284, 126
      %v1436 = vpop.permute.xlu0 %1435
      %1437 = vrot.lane.b32.xlu0 %v1285, 126
      %v1438 = vpop.permute.xlu0 %1437
      %1439 = vrot.lane.b32.xlu0 %v1286, 126
      %v1440 = vpop.permute.xlu0 %1439
      %1441 = vrot.lane.b32.xlu0 %v1287, 126
      %v1442 = vpop.permute.xlu0 %1441
      %1443 = vrot.lane.b32.xlu0 %v1288, 126
      %v1444 = vpop.permute.xlu0 %1443
      %1445 = vrot.lane.b32.xlu0 %v1289, 126
      %v1446 = vpop.permute.xlu0 %1445
      %1447 = vrot.lane.b32.xlu0 %v1290, 126
      %v1448 = vpop.permute.xlu0 %1447
      %1449 = vrot.lane.b32.xlu0 %v1301, 126
      %v1450 = vpop.permute.xlu0 %1449
      %vm1451 = vcmask 1031168
      %v1452 = vsel %vm1451, %v1434, %v1436
      %v1453 = vsel %vm1451, %v1436, %v1438
      %v1454 = vsel %vm1451, %v1438, %v1440
      %v1455 = vsel %vm1451, %v1440, %v1442
      %v1456 = vsel %vm1451, %v1442, %v1444
      %v1457 = vsel %vm1451, %v1444, %v1446
      %v1458 = vsel %vm1451, %v1446, %v1448
      %v1459 = vsel %vm1451, %v1448, %v1450
      %v1468 = vsel %vm1423, %v1452, 0.0
      %v1469 = vsel %vm1424, %v1453, 0.0
      %v1470 = vsel %vm1425, %v1454, 0.0
      %v1471 = vsel %vm1426, %v1455, 0.0
      %v1472 = vsel %vm1427, %v1456, 0.0
      %v1473 = vsel %vm1428, %v1457, 0.0
      %v1474 = vsel %vm1429, %v1458, 0.0
      %v1475 = vsel %vm1430, %v1459, 0.0
      %1476 = vrot.lane.b32.xlu0 %v1300, 96
      %v1477 = vpop.permute.xlu0 %1476
      %1478 = vrot.lane.b32.xlu0 %v1284, 96
      %v1479 = vpop.permute.xlu0 %1478
      %1480 = vrot.lane.b32.xlu0 %v1285, 96
      %v1481 = vpop.permute.xlu0 %1480
      %1482 = vrot.lane.b32.xlu0 %v1286, 96
      %v1483 = vpop.permute.xlu0 %1482
      %1484 = vrot.lane.b32.xlu0 %v1287, 96
      %v1485 = vpop.permute.xlu0 %1484
      %1486 = vrot.lane.b32.xlu0 %v1288, 96
      %v1487 = vpop.permute.xlu0 %1486
      %1488 = vrot.lane.b32.xlu0 %v1289, 96
      %v1489 = vpop.permute.xlu0 %1488
      %1490 = vrot.lane.b32.xlu0 %v1290, 96
      %v1491 = vpop.permute.xlu0 %1490
      %1492 = vrot.lane.b32.xlu0 %v1301, 96
      %v1493 = vpop.permute.xlu0 %1492
      %vm1494 = vcmask 785408
      %v1495 = vsel %vm1494, %v1477, %v1479
      %v1496 = vsel %vm1494, %v1479, %v1481
      %v1497 = vsel %vm1494, %v1481, %v1483
      %v1498 = vsel %vm1494, %v1483, %v1485
      %v1499 = vsel %vm1494, %v1485, %v1487
      %v1500 = vsel %vm1494, %v1487, %v1489
      %v1501 = vsel %vm1494, %v1489, %v1491
      %v1502 = vsel %vm1494, %v1491, %v1493
      %v1511 = vsel %vm1407, %v1495, 0.0
      %v1512 = vsel %vm1408, %v1496, 0.0
      %v1513 = vsel %vm1409, %v1497, 0.0
      %v1514 = vsel %vm1410, %v1498, 0.0
      %v1515 = vsel %vm1411, %v1499, 0.0
      %v1516 = vsel %vm1412, %v1500, 0.0
      %v1517 = vsel %vm1413, %v1501, 0.0
      %v1518 = vsel %vm1414, %v1502, 0.0
      %1519 = vrot.lane.b32.xlu0 %v1300, 94
      %v1520 = vpop.permute.xlu0 %1519
      %1521 = vrot.lane.b32.xlu0 %v1284, 94
      %v1522 = vpop.permute.xlu0 %1521
      %1523 = vrot.lane.b32.xlu0 %v1285, 94
      %v1524 = vpop.permute.xlu0 %1523
      %1525 = vrot.lane.b32.xlu0 %v1286, 94
      %v1526 = vpop.permute.xlu0 %1525
      %1527 = vrot.lane.b32.xlu0 %v1287, 94
      %v1528 = vpop.permute.xlu0 %1527
      %1529 = vrot.lane.b32.xlu0 %v1288, 94
      %v1530 = vpop.permute.xlu0 %1529
      %1531 = vrot.lane.b32.xlu0 %v1289, 94
      %v1532 = vpop.permute.xlu0 %1531
      %1533 = vrot.lane.b32.xlu0 %v1290, 94
      %v1534 = vpop.permute.xlu0 %1533
      %1535 = vrot.lane.b32.xlu0 %v1301, 94
      %v1536 = vpop.permute.xlu0 %1535
      %vm1537 = vcmask 769024
      %v1538 = vsel %vm1537, %v1520, %v1522
      %v1539 = vsel %vm1537, %v1522, %v1524
      %v1540 = vsel %vm1537, %v1524, %v1526
      %v1541 = vsel %vm1537, %v1526, %v1528
      %v1542 = vsel %vm1537, %v1528, %v1530
      %v1543 = vsel %vm1537, %v1530, %v1532
      %v1544 = vsel %vm1537, %v1532, %v1534
      %v1545 = vsel %vm1537, %v1534, %v1536
      %v1554 = vsel %vm1423, %v1538, 0.0
      %v1555 = vsel %vm1424, %v1539, 0.0
      %v1556 = vsel %vm1425, %v1540, 0.0
      %v1557 = vsel %vm1426, %v1541, 0.0
      %v1558 = vsel %vm1427, %v1542, 0.0
      %v1559 = vsel %vm1428, %v1543, 0.0
      %v1560 = vsel %vm1429, %v1544, 0.0
      %v1561 = vsel %vm1430, %v1545, 0.0
      %1562 = vrot.lane.b32.xlu0 %v1300, 64
      %v1563 = vpop.permute.xlu0 %1562
      %1564 = vrot.lane.b32.xlu0 %v1284, 64
      %v1565 = vpop.permute.xlu0 %1564
      %1566 = vrot.lane.b32.xlu0 %v1285, 64
      %v1567 = vpop.permute.xlu0 %1566
      %1568 = vrot.lane.b32.xlu0 %v1286, 64
      %v1569 = vpop.permute.xlu0 %1568
      %1570 = vrot.lane.b32.xlu0 %v1287, 64
      %v1571 = vpop.permute.xlu0 %1570
      %1572 = vrot.lane.b32.xlu0 %v1288, 64
      %v1573 = vpop.permute.xlu0 %1572
      %1574 = vrot.lane.b32.xlu0 %v1289, 64
      %v1575 = vpop.permute.xlu0 %1574
      %1576 = vrot.lane.b32.xlu0 %v1290, 64
      %v1577 = vpop.permute.xlu0 %1576
      %1578 = vrot.lane.b32.xlu0 %v1301, 64
      %v1579 = vpop.permute.xlu0 %1578
      %vm1580 = vcmask 523264
      %v1581 = vsel %vm1580, %v1563, %v1565
      %v1582 = vsel %vm1580, %v1565, %v1567
      %v1583 = vsel %vm1580, %v1567, %v1569
      %v1584 = vsel %vm1580, %v1569, %v1571
      %v1585 = vsel %vm1580, %v1571, %v1573
      %v1586 = vsel %vm1580, %v1573, %v1575
      %v1587 = vsel %vm1580, %v1575, %v1577
      %v1588 = vsel %vm1580, %v1577, %v1579
      %v1597 = vsel %vm1407, %v1581, 0.0
      %v1598 = vsel %vm1408, %v1582, 0.0
      %v1599 = vsel %vm1409, %v1583, 0.0
      %v1600 = vsel %vm1410, %v1584, 0.0
      %v1601 = vsel %vm1411, %v1585, 0.0
      %v1602 = vsel %vm1412, %v1586, 0.0
      %v1603 = vsel %vm1413, %v1587, 0.0
      %v1604 = vsel %vm1414, %v1588, 0.0
      %1605 = vrot.lane.b32.xlu0 %v1300, 62
      %v1606 = vpop.permute.xlu0 %1605
      %1607 = vrot.lane.b32.xlu0 %v1284, 62
      %v1608 = vpop.permute.xlu0 %1607
      %1609 = vrot.lane.b32.xlu0 %v1285, 62
      %v1610 = vpop.permute.xlu0 %1609
      %1611 = vrot.lane.b32.xlu0 %v1286, 62
      %v1612 = vpop.permute.xlu0 %1611
      %1613 = vrot.lane.b32.xlu0 %v1287, 62
      %v1614 = vpop.permute.xlu0 %1613
      %1615 = vrot.lane.b32.xlu0 %v1288, 62
      %v1616 = vpop.permute.xlu0 %1615
      %1617 = vrot.lane.b32.xlu0 %v1289, 62
      %v1618 = vpop.permute.xlu0 %1617
      %1619 = vrot.lane.b32.xlu0 %v1290, 62
      %v1620 = vpop.permute.xlu0 %1619
      %1621 = vrot.lane.b32.xlu0 %v1301, 62
      %v1622 = vpop.permute.xlu0 %1621
      %vm1623 = vcmask 506880
      %v1624 = vsel %vm1623, %v1606, %v1608
      %v1625 = vsel %vm1623, %v1608, %v1610
      %v1626 = vsel %vm1623, %v1610, %v1612
      %v1627 = vsel %vm1623, %v1612, %v1614
      %v1628 = vsel %vm1623, %v1614, %v1616
      %v1629 = vsel %vm1623, %v1616, %v1618
      %v1630 = vsel %vm1623, %v1618, %v1620
      %v1631 = vsel %vm1623, %v1620, %v1622
      %v1640 = vsel %vm1423, %v1624, 0.0
      %v1641 = vsel %vm1424, %v1625, 0.0
      %v1642 = vsel %vm1425, %v1626, 0.0
      %v1643 = vsel %vm1426, %v1627, 0.0
      %v1644 = vsel %vm1427, %v1628, 0.0
      %v1645 = vsel %vm1428, %v1629, 0.0
      %v1646 = vsel %vm1429, %v1630, 0.0
      %v1647 = vsel %vm1430, %v1631, 0.0
      %v1648 = vrot.slane %v1300, 4
      %v1649 = vrot.slane %v1284, 4
      %v1650 = vrot.slane %v1285, 4
      %v1651 = vrot.slane %v1286, 4
      %v1652 = vrot.slane %v1287, 4
      %v1653 = vrot.slane %v1288, 4
      %v1654 = vrot.slane %v1289, 4
      %v1655 = vrot.slane %v1290, 4
      %v1656 = vrot.slane %v1301, 4
      %1657 = vrot.lane.b32.xlu0 %v1648, 127
      %v1658 = vpop.permute.xlu0 %1657
      %1659 = vrot.lane.b32.xlu0 %v1649, 127
      %v1660 = vpop.permute.xlu0 %1659
      %1661 = vrot.lane.b32.xlu0 %v1650, 127
      %v1662 = vpop.permute.xlu0 %1661
      %1663 = vrot.lane.b32.xlu0 %v1651, 127
      %v1664 = vpop.permute.xlu0 %1663
      %1665 = vrot.lane.b32.xlu0 %v1652, 127
      %v1666 = vpop.permute.xlu0 %1665
      %1667 = vrot.lane.b32.xlu0 %v1653, 127
      %v1668 = vpop.permute.xlu0 %1667
      %1669 = vrot.lane.b32.xlu0 %v1654, 127
      %v1670 = vpop.permute.xlu0 %1669
      %1671 = vrot.lane.b32.xlu0 %v1655, 127
      %v1672 = vpop.permute.xlu0 %1671
      %1673 = vrot.lane.b32.xlu0 %v1656, 127
      %v1674 = vpop.permute.xlu0 %1673
      %vm1675 = vcmask 1039360
      %v1676 = vsel %vm1675, %v1658, %v1660
      %v1677 = vsel %vm1675, %v1660, %v1662
      %v1678 = vsel %vm1675, %v1662, %v1664
      %v1679 = vsel %vm1675, %v1664, %v1666
      %v1680 = vsel %vm1675, %v1666, %v1668
      %v1681 = vsel %vm1675, %v1668, %v1670
      %v1682 = vsel %vm1675, %v1670, %v1672
      %v1683 = vsel %vm1675, %v1672, %v1674
      %v1700 = vrot.slane %v1511, 4
      %v1701 = vrot.slane %v1512, 4
      %v1702 = vrot.slane %v1513, 4
      %v1703 = vrot.slane %v1514, 4
      %v1704 = vrot.slane %v1515, 4
      %v1705 = vrot.slane %v1516, 4
      %v1706 = vrot.slane %v1517, 4
      %v1707 = vrot.slane %v1518, 4
      %1716 = vrot.lane.b32.xlu0 %v1300, 95
      %v1717 = vpop.permute.xlu0 %1716
      %1718 = vrot.lane.b32.xlu0 %v1284, 95
      %v1719 = vpop.permute.xlu0 %1718
      %1720 = vrot.lane.b32.xlu0 %v1285, 95
      %v1721 = vpop.permute.xlu0 %1720
      %1722 = vrot.lane.b32.xlu0 %v1286, 95
      %v1723 = vpop.permute.xlu0 %1722
      %1724 = vrot.lane.b32.xlu0 %v1287, 95
      %v1725 = vpop.permute.xlu0 %1724
      %1726 = vrot.lane.b32.xlu0 %v1288, 95
      %v1727 = vpop.permute.xlu0 %1726
      %1728 = vrot.lane.b32.xlu0 %v1289, 95
      %v1729 = vpop.permute.xlu0 %1728
      %1730 = vrot.lane.b32.xlu0 %v1290, 95
      %v1731 = vpop.permute.xlu0 %1730
      %1732 = vrot.lane.b32.xlu0 %v1301, 95
      %v1733 = vpop.permute.xlu0 %1732
      %vm1734 = vcmask 777216
      %v1735 = vsel %vm1734, %v1717, %v1719
      %v1736 = vsel %vm1734, %v1719, %v1721
      %v1737 = vsel %vm1734, %v1721, %v1723
      %v1738 = vsel %vm1734, %v1723, %v1725
      %v1739 = vsel %vm1734, %v1725, %v1727
      %v1740 = vsel %vm1734, %v1727, %v1729
      %v1741 = vsel %vm1734, %v1729, %v1731
      %v1742 = vsel %vm1734, %v1731, %v1733
      %v1759 = vrot.slane %v1554, 4
      %v1760 = vrot.slane %v1555, 4
      %v1761 = vrot.slane %v1556, 4
      %v1762 = vrot.slane %v1557, 4
      %v1763 = vrot.slane %v1558, 4
      %v1764 = vrot.slane %v1559, 4
      %v1765 = vrot.slane %v1560, 4
      %v1766 = vrot.slane %v1561, 4
      %1775 = vrot.lane.b32.xlu0 %v1648, 63
      %v1776 = vpop.permute.xlu0 %1775
      %1777 = vrot.lane.b32.xlu0 %v1649, 63
      %v1778 = vpop.permute.xlu0 %1777
      %1779 = vrot.lane.b32.xlu0 %v1650, 63
      %v1780 = vpop.permute.xlu0 %1779
      %1781 = vrot.lane.b32.xlu0 %v1651, 63
      %v1782 = vpop.permute.xlu0 %1781
      %1783 = vrot.lane.b32.xlu0 %v1652, 63
      %v1784 = vpop.permute.xlu0 %1783
      %1785 = vrot.lane.b32.xlu0 %v1653, 63
      %v1786 = vpop.permute.xlu0 %1785
      %1787 = vrot.lane.b32.xlu0 %v1654, 63
      %v1788 = vpop.permute.xlu0 %1787
      %1789 = vrot.lane.b32.xlu0 %v1655, 63
      %v1790 = vpop.permute.xlu0 %1789
      %1791 = vrot.lane.b32.xlu0 %v1656, 63
      %v1792 = vpop.permute.xlu0 %1791
      %vm1793 = vcmask 515072
      %v1794 = vsel %vm1793, %v1776, %v1778
      %v1795 = vsel %vm1793, %v1778, %v1780
      %v1796 = vsel %vm1793, %v1780, %v1782
      %v1797 = vsel %vm1793, %v1782, %v1784
      %v1798 = vsel %vm1793, %v1784, %v1786
      %v1799 = vsel %vm1793, %v1786, %v1788
      %v1800 = vsel %vm1793, %v1788, %v1790
      %v1801 = vsel %vm1793, %v1790, %v1792
      %vm1810 = vcmask 1043456
      %v1811 = vsel %vm1810, %v1415, %v1676
      %v1812 = vsel %vm1810, %v1416, %v1677
      %v1813 = vsel %vm1810, %v1417, %v1678
      %v1814 = vsel %vm1810, %v1418, %v1679
      %v1815 = vsel %vm1810, %v1419, %v1680
      %v1816 = vsel %vm1810, %v1420, %v1681
      %v1817 = vsel %vm1810, %v1421, %v1682
      %v1818 = vsel %vm1810, %v1422, %v1683
      %v1819 = vsel %vm1810, %v1468, %v1700
      %v1820 = vsel %vm1810, %v1469, %v1701
      %v1821 = vsel %vm1810, %v1470, %v1702
      %v1822 = vsel %vm1810, %v1471, %v1703
      %v1823 = vsel %vm1810, %v1472, %v1704
      %v1824 = vsel %vm1810, %v1473, %v1705
      %v1825 = vsel %vm1810, %v1474, %v1706
      %v1826 = vsel %vm1810, %v1475, %v1707
      %v1827 = vsel %vm1810, %v1735, %v1759
      %v1828 = vsel %vm1810, %v1736, %v1760
      %v1829 = vsel %vm1810, %v1737, %v1761
      %v1830 = vsel %vm1810, %v1738, %v1762
      %v1831 = vsel %vm1810, %v1739, %v1763
      %v1832 = vsel %vm1810, %v1740, %v1764
      %v1833 = vsel %vm1810, %v1741, %v1765
      %v1834 = vsel %vm1810, %v1742, %v1766
      %v1835 = vsel %vm1810, %v1597, %v1794
      %v1836 = vsel %vm1810, %v1598, %v1795
      %v1837 = vsel %vm1810, %v1599, %v1796
      %v1838 = vsel %vm1810, %v1600, %v1797
      %v1839 = vsel %vm1810, %v1601, %v1798
      %v1840 = vsel %vm1810, %v1602, %v1799
      %v1841 = vsel %vm1810, %v1603, %v1800
      %v1842 = vsel %vm1810, %v1604, %v1801
      %v1843 = vpack.c.bf16 %v1819, %v1811
      %v1844 = vpack.c.bf16 %v1820, %v1812
      %v1845 = vpack.c.bf16 %v1821, %v1813
      %v1846 = vpack.c.bf16 %v1822, %v1814
      %v1847 = vpack.c.bf16 %v1823, %v1815
      %v1848 = vpack.c.bf16 %v1824, %v1816
      %v1849 = vpack.c.bf16 %v1825, %v1817
      %v1850 = vpack.c.bf16 %v1826, %v1818
      %v1851 = vpack.c.bf16 %v1835, %v1827
      %v1852 = vpack.c.bf16 %v1836, %v1828
      %v1853 = vpack.c.bf16 %v1837, %v1829
      %v1854 = vpack.c.bf16 %v1838, %v1830
      %v1855 = vpack.c.bf16 %v1839, %v1831
      %v1856 = vpack.c.bf16 %v1840, %v1832
      %v1857 = vpack.c.bf16 %v1841, %v1833
      %v1858 = vpack.c.bf16 %v1842, %v1834
      %v1859 = vpack.c.bf16 %v1640, %v1640
      %v1860 = vpack.c.bf16 %v1641, %v1641
      %v1861 = vpack.c.bf16 %v1642, %v1642
      %v1862 = vpack.c.bf16 %v1643, %v1643
      %v1863 = vpack.c.bf16 %v1644, %v1644
      %v1864 = vpack.c.bf16 %v1645, %v1645
      %v1865 = vpack.c.bf16 %v1646, %v1646
      %v1866 = vpack.c.bf16 %v1647, %v1647
      %v1867 = vld [vmem:[%s2] sm:$0x3]
      %v1868 = vld [vmem:[%s3] sm:$0xf]
      %1870 = vset.pattern.permute.xlu0 0
      %1871 = vperm.xlu0 %1870, %v1868
      %v1872 = vpop.permute.xlu0 %1871
      %vm1874 = vcmask 293888
      %v1876 = vsel %vm1874, %v1867, 0
      %vm1878 = vcmask 1041408
      %v1880 = vsel %vm1878, %v1859, 0
      %v1883 = vsel %vm1878, %v1860, 0
      %v1886 = vsel %vm1878, %v1861, 0
      %v1889 = vsel %vm1878, %v1862, 0
      %v1892 = vsel %vm1878, %v1863, 0
      %v1895 = vsel %vm1878, %v1864, 0
      %v1898 = vsel %vm1878, %v1865, 0
      %v1901 = vsel %vm1878, %v1866, 0
      %1903 = vmatprep.subr.bf16.mxu0 %v1844
      %1904 = vmatpush1.bf16.msra.mxu0 %v1843
      %1905 = vmatprep.subr.bf16.mxu0 %v1852
      %1906 = vmatpush1.bf16.msra.mxu0 %v1851
      %1907 = vmatprep.subr.bf16.mxu0 %v1883
      %1908 = vmatpush1.bf16.msra.mxu0 %v1880
      %1909 = vmatprep.subr.bf16.mxu0 0
      %1910 = vmatpush1.bf16.msra.mxu0 0
      %1911 = vmatprep.subr.bf16.mxu0 0
      %1912 = vmatpush1.bf16.msra.mxu0 0
      %1913 = vmatprep.subr.bf16.mxu0 0
      %1914 = vmatpush1.bf16.msra.mxu0 0
      %1915 = vmatprep.subr.bf16.mxu0 0
      %1916 = vmatpush1.bf16.msra.mxu0 0
      %1917 = vmatprep.subr.bf16.mxu0 0
      %1918 = vmatpush1.bf16.msra.mxu0 0
      %1919 = vmatprep.subr.bf16.mxu0 0
      %1920 = vmatpush1.bf16.msra.mxu0 0
      %1921 = vmatprep.subr.bf16.mxu0 0
      %1922 = vmatpush1.bf16.msra.mxu0 0
      %1923 = vmatprep.subr.bf16.mxu0 0
      %1924 = vmatpush1.bf16.msra.mxu0 0
      %1925 = vmatprep.subr.bf16.mxu0 0
      %1926 = vmatpush1.bf16.msra.mxu0 0
      %1927 = vmatprep.subr.bf16.mxu0 0
      %1928 = vmatpush1.bf16.msra.mxu0 0
      %1929 = vmatprep.subr.bf16.mxu0 0
      %1930 = vmatpush1.bf16.msra.mxu0 0
      %1931 = vmatprep.subr.bf16.mxu0 0
      %1932 = vmatpush1.bf16.msra.mxu0 0
      %1933 = vmatprep.subr.bf16.mxu0 0
      %1934 = vmatpush1.bf16.msra.mxu0 0
      %1935 = vmatprep.mubr.bf16.mxu0 0
      %1936 = vmatmul.mubr.bf16.gmra.mrb[0].mxu0 %v1876
      %v1937 = vpop.f32.mrb[0].mxu0
      %v1938 = vadd.f32 %v1872, %v1937
      %v1939 = vpop.f32.mrb[0].mxu0
      %v1940 = vadd.f32 %v1872, %v1939
      %v1941 = vpop.f32.mrb[0].mxu0
      %v1942 = vpop.f32.mrb[0].mxu0
      %1943 = vdwg.mxu0
      %1944 = vmatprep.subr.bf16.mxu0 %v1846
      %1945 = vmatpush1.bf16.msra.mxu0 %v1845
      %1946 = vmatprep.subr.bf16.mxu0 %v1854
      %1947 = vmatpush1.bf16.msra.mxu0 %v1853
      %1948 = vmatprep.subr.bf16.mxu0 %v1889
      %1949 = vmatpush1.bf16.msra.mxu0 %v1886
      %1950 = vmatprep.subr.bf16.mxu0 0
      %1951 = vmatpush1.bf16.msra.mxu0 0
      %1952 = vmatprep.subr.bf16.mxu0 0
      %1953 = vmatpush1.bf16.msra.mxu0 0
      %1954 = vmatprep.subr.bf16.mxu0 0
      %1955 = vmatpush1.bf16.msra.mxu0 0
      %1956 = vmatprep.subr.bf16.mxu0 0
      %1957 = vmatpush1.bf16.msra.mxu0 0
      %1958 = vmatprep.subr.bf16.mxu0 0
      %1959 = vmatpush1.bf16.msra.mxu0 0
      %1960 = vmatprep.subr.bf16.mxu0 0
      %1961 = vmatpush1.bf16.msra.mxu0 0
      %1962 = vmatprep.subr.bf16.mxu0 0
      %1963 = vmatpush1.bf16.msra.mxu0 0
      %1964 = vmatprep.subr.bf16.mxu0 0
      %1965 = vmatpush1.bf16.msra.mxu0 0
      %1966 = vmatprep.subr.bf16.mxu0 0
      %1967 = vmatpush1.bf16.msra.mxu0 0
      %1968 = vmatprep.subr.bf16.mxu0 0
      %1969 = vmatpush1.bf16.msra.mxu0 0
      %1970 = vmatprep.subr.bf16.mxu0 0
      %1971 = vmatpush1.bf16.msra.mxu0 0
      %1972 = vmatprep.subr.bf16.mxu0 0
      %1973 = vmatpush1.bf16.msra.mxu0 0
      %1974 = vmatprep.subr.bf16.mxu0 0
      %1975 = vmatpush1.bf16.msra.mxu0 0
      %1976 = vmatprep.mubr.bf16.mxu0 0
      %1977 = vmatmul.mubr.bf16.gmra.mrb[0].mxu0 %v1876
      %v1978 = vpop.f32.mrb[0].mxu0
      %v1979 = vadd.f32 %v1872, %v1978
      %v1980 = vpop.f32.mrb[0].mxu0
      %v1981 = vadd.f32 %v1872, %v1980
      %v1982 = vpop.f32.mrb[0].mxu0
      %v1983 = vpop.f32.mrb[0].mxu0
      %1984 = vdwg.mxu0
      %1985 = vmatprep.subr.bf16.mxu0 %v1848
      %1986 = vmatpush1.bf16.msra.mxu0 %v1847
      %1987 = vmatprep.subr.bf16.mxu0 %v1856
      %1988 = vmatpush1.bf16.msra.mxu0 %v1855
      %1989 = vmatprep.subr.bf16.mxu0 %v1895
      %1990 = vmatpush1.bf16.msra.mxu0 %v1892
      %1991 = vmatprep.subr.bf16.mxu0 0
      %1992 = vmatpush1.bf16.msra.mxu0 0
      %1993 = vmatprep.subr.bf16.mxu0 0
      %1994 = vmatpush1.bf16.msra.mxu0 0
      %1995 = vmatprep.subr.bf16.mxu0 0
      %1996 = vmatpush1.bf16.msra.mxu0 0
      %1997 = vmatprep.subr.bf16.mxu0 0
      %1998 = vmatpush1.bf16.msra.mxu0 0
      %1999 = vmatprep.subr.bf16.mxu0 0
      %2000 = vmatpush1.bf16.msra.mxu0 0
      %2001 = vmatprep.subr.bf16.mxu0 0
      %2002 = vmatpush1.bf16.msra.mxu0 0
      %2003 = vmatprep.subr.bf16.mxu0 0
      %2004 = vmatpush1.bf16.msra.mxu0 0
      %2005 = vmatprep.subr.bf16.mxu0 0
      %2006 = vmatpush1.bf16.msra.mxu0 0
      %2007 = vmatprep.subr.bf16.mxu0 0
      %2008 = vmatpush1.bf16.msra.mxu0 0
      %2009 = vmatprep.subr.bf16.mxu0 0
      %2010 = vmatpush1.bf16.msra.mxu0 0
      %2011 = vmatprep.subr.bf16.mxu0 0
      %2012 = vmatpush1.bf16.msra.mxu0 0
      %2013 = vmatprep.subr.bf16.mxu0 0
      %2014 = vmatpush1.bf16.msra.mxu0 0
      %2015 = vmatprep.subr.bf16.mxu0 0
      %2016 = vmatpush1.bf16.msra.mxu0 0
      %2017 = vmatprep.mubr.bf16.mxu0 0
      %2018 = vmatmul.mubr.bf16.gmra.mrb[0].mxu0 %v1876
      %v2019 = vpop.f32.mrb[0].mxu0
      %v2020 = vadd.f32 %v1872, %v2019
      %v2021 = vpop.f32.mrb[0].mxu0
      %v2022 = vadd.f32 %v1872, %v2021
      %v2023 = vpop.f32.mrb[0].mxu0
      %v2024 = vpop.f32.mrb[0].mxu0
      %2025 = vdwg.mxu0
      %2026 = vmatprep.subr.bf16.mxu0 %v1850
      %2027 = vmatpush1.bf16.msra.mxu0 %v1849
      %2028 = vmatprep.subr.bf16.mxu0 %v1858
      %2029 = vmatpush1.bf16.msra.mxu0 %v1857
      %2030 = vmatprep.subr.bf16.mxu0 %v1901
      %2031 = vmatpush1.bf16.msra.mxu0 %v1898
      %2032 = vmatprep.subr.bf16.mxu0 0
      %2033 = vmatpush1.bf16.msra.mxu0 0
      %2034 = vmatprep.subr.bf16.mxu0 0
      %2035 = vmatpush1.bf16.msra.mxu0 0
      %2036 = vmatprep.subr.bf16.mxu0 0
      %2037 = vmatpush1.bf16.msra.mxu0 0
      %2038 = vmatprep.subr.bf16.mxu0 0
      %2039 = vmatpush1.bf16.msra.mxu0 0
      %2040 = vmatprep.subr.bf16.mxu0 0
      %2041 = vmatpush1.bf16.msra.mxu0 0
      %2042 = vmatprep.subr.bf16.mxu0 0
      %2043 = vmatpush1.bf16.msra.mxu0 0
      %2044 = vmatprep.subr.bf16.mxu0 0
      %2045 = vmatpush1.bf16.msra.mxu0 0
      %2046 = vmatprep.subr.bf16.mxu0 0
      %2047 = vmatpush1.bf16.msra.mxu0 0
      %2048 = vmatprep.subr.bf16.mxu0 0
      %2049 = vmatpush1.bf16.msra.mxu0 0
      %2050 = vmatprep.subr.bf16.mxu0 0
      %2051 = vmatpush1.bf16.msra.mxu0 0
      %2052 = vmatprep.subr.bf16.mxu0 0
      %2053 = vmatpush1.bf16.msra.mxu0 0
      %2054 = vmatprep.subr.bf16.mxu0 0
      %2055 = vmatpush1.bf16.msra.mxu0 0
      %2056 = vmatprep.subr.bf16.mxu0 0
      %2057 = vmatpush1.bf16.msra.mxu0 0
      %2058 = vmatprep.mubr.bf16.mxu0 0
      %2059 = vmatmul.mubr.bf16.gmra.mrb[0].mxu0 %v1876
      %v2060 = vpop.f32.mrb[0].mxu0
      %v2061 = vadd.f32 %v1872, %v2060
      %v2062 = vpop.f32.mrb[0].mxu0
      %v2063 = vadd.f32 %v1872, %v2062
      %v2064 = vpop.f32.mrb[0].mxu0
      %v2065 = vpop.f32.mrb[0].mxu0
      %2066 = vdwg.mxu0
      %v2067 = vmax.f32 %v1938, 0.0
      %v2068 = vmax.f32 %v1940, 0.0
      %v2069 = vmax.f32 %v1979, 0.0
      %v2070 = vmax.f32 %v1981, 0.0
      %v2071 = vmax.f32 %v2020, 0.0
      %v2072 = vmax.f32 %v2022, 0.0
      %v2073 = vmax.f32 %v2061, 0.0
      %v2074 = vmax.f32 %v2063, 0.0
      %2083 = vrot.lane.b32.xlu0 %v2067, 33
      %v2084 = vpop.permute.xlu0 %2083
      %2085 = vrot.lane.b32.xlu0 %v2068, 33
      %v2086 = vpop.permute.xlu0 %2085
      %2087 = vrot.lane.b32.xlu0 %v2069, 33
      %v2088 = vpop.permute.xlu0 %2087
      %2089 = vrot.lane.b32.xlu0 %v2070, 33
      %v2090 = vpop.permute.xlu0 %2089
      %2091 = vrot.lane.b32.xlu0 %v2071, 33
      %v2092 = vpop.permute.xlu0 %2091
      %2093 = vrot.lane.b32.xlu0 %v2072, 33
      %v2094 = vpop.permute.xlu0 %2093
      %2095 = vrot.lane.b32.xlu0 %v2073, 33
      %v2096 = vpop.permute.xlu0 %2095
      %2097 = vrot.lane.b32.xlu0 %v2074, 33
      %v2098 = vpop.permute.xlu0 %2097
      %v2099 = vsel %vm1283, %v2084, %v2086
      %v2100 = vsel %vm1283, %v2086, %v2088
      %v2101 = vsel %vm1283, %v2088, %v2090
      %v2102 = vsel %vm1283, %v2090, %v2092
      %v2103 = vsel %vm1283, %v2092, %v2094
      %v2104 = vsel %vm1283, %v2094, %v2096
      %v2105 = vsel %vm1283, %v2096, %v2098
      %v2115 = vsel %vm1283, 0.0, %v2084
      %v2116 = vsel %vm1283, %v2098, 0.0
      %v2117 = vsel %vm1407, %v2115, 0.0
      %v2118 = vsel %vm1408, %v2099, 0.0
      %v2119 = vsel %vm1409, %v2100, 0.0
      %v2120 = vsel %vm1410, %v2101, 0.0
      %v2121 = vsel %vm1411, %v2102, 0.0
      %v2122 = vsel %vm1412, %v2103, 0.0
      %v2123 = vsel %vm1413, %v2104, 0.0
      %v2124 = vsel %vm1414, %v2105, 0.0
      %2127 = vrot.lane.b32.xlu0 %v2115, 126
      %v2128 = vpop.permute.xlu0 %2127
      %2129 = vrot.lane.b32.xlu0 %v2099, 126
      %v2130 = vpop.permute.xlu0 %2129
      %2131 = vrot.lane.b32.xlu0 %v2100, 126
      %v2132 = vpop.permute.xlu0 %2131
      %2133 = vrot.lane.b32.xlu0 %v2101, 126
      %v2134 = vpop.permute.xlu0 %2133
      %2135 = vrot.lane.b32.xlu0 %v2102, 126
      %v2136 = vpop.permute.xlu0 %2135
      %2137 = vrot.lane.b32.xlu0 %v2103, 126
      %v2138 = vpop.permute.xlu0 %2137
      %2139 = vrot.lane.b32.xlu0 %v2104, 126
      %v2140 = vpop.permute.xlu0 %2139
      %2141 = vrot.lane.b32.xlu0 %v2105, 126
      %v2142 = vpop.permute.xlu0 %2141
      %2143 = vrot.lane.b32.xlu0 %v2116, 126
      %v2144 = vpop.permute.xlu0 %2143
      %v2145 = vsel %vm1451, %v2128, %v2130
      %v2146 = vsel %vm1451, %v2130, %v2132
      %v2147 = vsel %vm1451, %v2132, %v2134
      %v2148 = vsel %vm1451, %v2134, %v2136
      %v2149 = vsel %vm1451, %v2136, %v2138
      %v2150 = vsel %vm1451, %v2138, %v2140
      %v2151 = vsel %vm1451, %v2140, %v2142
      %v2152 = vsel %vm1451, %v2142, %v2144
      %v2161 = vsel %vm1423, %v2145, 0.0
      %v2162 = vsel %vm1424, %v2146, 0.0
      %v2163 = vsel %vm1425, %v2147, 0.0
      %v2164 = vsel %vm1426, %v2148, 0.0
      %v2165 = vsel %vm1427, %v2149, 0.0
      %v2166 = vsel %vm1428, %v2150, 0.0
      %v2167 = vsel %vm1429, %v2151, 0.0
      %v2168 = vsel %vm1430, %v2152, 0.0
      %2169 = vrot.lane.b32.xlu0 %v2115, 96
      %v2170 = vpop.permute.xlu0 %2169
      %2171 = vrot.lane.b32.xlu0 %v2099, 96
      %v2172 = vpop.permute.xlu0 %2171
      %2173 = vrot.lane.b32.xlu0 %v2100, 96
      %v2174 = vpop.permute.xlu0 %2173
      %2175 = vrot.lane.b32.xlu0 %v2101, 96
      %v2176 = vpop.permute.xlu0 %2175
      %2177 = vrot.lane.b32.xlu0 %v2102, 96
      %v2178 = vpop.permute.xlu0 %2177
      %2179 = vrot.lane.b32.xlu0 %v2103, 96
      %v2180 = vpop.permute.xlu0 %2179
      %2181 = vrot.lane.b32.xlu0 %v2104, 96
      %v2182 = vpop.permute.xlu0 %2181
      %2183 = vrot.lane.b32.xlu0 %v2105, 96
      %v2184 = vpop.permute.xlu0 %2183
      %2185 = vrot.lane.b32.xlu0 %v2116, 96
      %v2186 = vpop.permute.xlu0 %2185
      %v2187 = vsel %vm1494, %v2170, %v2172
      %v2188 = vsel %vm1494, %v2172, %v2174
      %v2189 = vsel %vm1494, %v2174, %v2176
      %v2190 = vsel %vm1494, %v2176, %v2178
      %v2191 = vsel %vm1494, %v2178, %v2180
      %v2192 = vsel %vm1494, %v2180, %v2182
      %v2193 = vsel %vm1494, %v2182, %v2184
      %v2194 = vsel %vm1494, %v2184, %v2186
      %v2203 = vsel %vm1407, %v2187, 0.0
      %v2204 = vsel %vm1408, %v2188, 0.0
      %v2205 = vsel %vm1409, %v2189, 0.0
      %v2206 = vsel %vm1410, %v2190, 0.0
      %v2207 = vsel %vm1411, %v2191, 0.0
      %v2208 = vsel %vm1412, %v2192, 0.0
      %v2209 = vsel %vm1413, %v2193, 0.0
      %v2210 = vsel %vm1414, %v2194, 0.0
      %2211 = vrot.lane.b32.xlu0 %v2115, 94
      %v2212 = vpop.permute.xlu0 %2211
      %2213 = vrot.lane.b32.xlu0 %v2099, 94
      %v2214 = vpop.permute.xlu0 %2213
      %2215 = vrot.lane.b32.xlu0 %v2100, 94
      %v2216 = vpop.permute.xlu0 %2215
      %2217 = vrot.lane.b32.xlu0 %v2101, 94
      %v2218 = vpop.permute.xlu0 %2217
      %2219 = vrot.lane.b32.xlu0 %v2102, 94
      %v2220 = vpop.permute.xlu0 %2219
      %2221 = vrot.lane.b32.xlu0 %v2103, 94
      %v2222 = vpop.permute.xlu0 %2221
      %2223 = vrot.lane.b32.xlu0 %v2104, 94
      %v2224 = vpop.permute.xlu0 %2223
      %2225 = vrot.lane.b32.xlu0 %v2105, 94
      %v2226 = vpop.permute.xlu0 %2225
      %2227 = vrot.lane.b32.xlu0 %v2116, 94
      %v2228 = vpop.permute.xlu0 %2227
      %v2229 = vsel %vm1537, %v2212, %v2214
      %v2230 = vsel %vm1537, %v2214, %v2216
      %v2231 = vsel %vm1537, %v2216, %v2218
      %v2232 = vsel %vm1537, %v2218, %v2220
      %v2233 = vsel %vm1537, %v2220, %v2222
      %v2234 = vsel %vm1537, %v2222, %v2224
      %v2235 = vsel %vm1537, %v2224, %v2226
      %v2236 = vsel %vm1537, %v2226, %v2228
      %v2245 = vsel %vm1423, %v2229, 0.0
      %v2246 = vsel %vm1424, %v2230, 0.0
      %v2247 = vsel %vm1425, %v2231, 0.0
      %v2248 = vsel %vm1426, %v2232, 0.0
      %v2249 = vsel %vm1427, %v2233, 0.0
      %v2250 = vsel %vm1428, %v2234, 0.0
      %v2251 = vsel %vm1429, %v2235, 0.0
      %v2252 = vsel %vm1430, %v2236, 0.0
      %2253 = vrot.lane.b32.xlu0 %v2115, 64
      %v2254 = vpop.permute.xlu0 %2253
      %2255 = vrot.lane.b32.xlu0 %v2099, 64
      %v2256 = vpop.permute.xlu0 %2255
      %2257 = vrot.lane.b32.xlu0 %v2100, 64
      %v2258 = vpop.permute.xlu0 %2257
      %2259 = vrot.lane.b32.xlu0 %v2101, 64
      %v2260 = vpop.permute.xlu0 %2259
      %2261 = vrot.lane.b32.xlu0 %v2102, 64
      %v2262 = vpop.permute.xlu0 %2261
      %2263 = vrot.lane.b32.xlu0 %v2103, 64
      %v2264 = vpop.permute.xlu0 %2263
      %2265 = vrot.lane.b32.xlu0 %v2104, 64
      %v2266 = vpop.permute.xlu0 %2265
      %2267 = vrot.lane.b32.xlu0 %v2105, 64
      %v2268 = vpop.permute.xlu0 %2267
      %2269 = vrot.lane.b32.xlu0 %v2116, 64
      %v2270 = vpop.permute.xlu0 %2269
      %v2271 = vsel %vm1580, %v2254, %v2256
      %v2272 = vsel %vm1580, %v2256, %v2258
      %v2273 = vsel %vm1580, %v2258, %v2260
      %v2274 = vsel %vm1580, %v2260, %v2262
      %v2275 = vsel %vm1580, %v2262, %v2264
      %v2276 = vsel %vm1580, %v2264, %v2266
      %v2277 = vsel %vm1580, %v2266, %v2268
      %v2278 = vsel %vm1580, %v2268, %v2270
      %v2287 = vsel %vm1407, %v2271, 0.0
      %v2288 = vsel %vm1408, %v2272, 0.0
      %v2289 = vsel %vm1409, %v2273, 0.0
      %v2290 = vsel %vm1410, %v2274, 0.0
      %v2291 = vsel %vm1411, %v2275, 0.0
      %v2292 = vsel %vm1412, %v2276, 0.0
      %v2293 = vsel %vm1413, %v2277, 0.0
      %v2294 = vsel %vm1414, %v2278, 0.0
      %2295 = vrot.lane.b32.xlu0 %v2115, 62
      %v2296 = vpop.permute.xlu0 %2295
      %2297 = vrot.lane.b32.xlu0 %v2099, 62
      %v2298 = vpop.permute.xlu0 %2297
      %2299 = vrot.lane.b32.xlu0 %v2100, 62
      %v2300 = vpop.permute.xlu0 %2299
      %2301 = vrot.lane.b32.xlu0 %v2101, 62
      %v2302 = vpop.permute.xlu0 %2301
      %2303 = vrot.lane.b32.xlu0 %v2102, 62
      %v2304 = vpop.permute.xlu0 %2303
      %2305 = vrot.lane.b32.xlu0 %v2103, 62
      %v2306 = vpop.permute.xlu0 %2305
      %2307 = vrot.lane.b32.xlu0 %v2104, 62
      %v2308 = vpop.permute.xlu0 %2307
      %2309 = vrot.lane.b32.xlu0 %v2105, 62
      %v2310 = vpop.permute.xlu0 %2309
      %2311 = vrot.lane.b32.xlu0 %v2116, 62
      %v2312 = vpop.permute.xlu0 %2311
      %v2313 = vsel %vm1623, %v2296, %v2298
      %v2314 = vsel %vm1623, %v2298, %v2300
      %v2315 = vsel %vm1623, %v2300, %v2302
      %v2316 = vsel %vm1623, %v2302, %v2304
      %v2317 = vsel %vm1623, %v2304, %v2306
      %v2318 = vsel %vm1623, %v2306, %v2308
      %v2319 = vsel %vm1623, %v2308, %v2310
      %v2320 = vsel %vm1623, %v2310, %v2312
      %v2329 = vsel %vm1423, %v2313, 0.0
      %v2330 = vsel %vm1424, %v2314, 0.0
      %v2331 = vsel %vm1425, %v2315, 0.0
      %v2332 = vsel %vm1426, %v2316, 0.0
      %v2333 = vsel %vm1427, %v2317, 0.0
      %v2334 = vsel %vm1428, %v2318, 0.0
      %v2335 = vsel %vm1429, %v2319, 0.0
      %v2336 = vsel %vm1430, %v2320, 0.0
      %v2337 = vrot.slane %v2115, 4
      %v2338 = vrot.slane %v2099, 4
      %v2339 = vrot.slane %v2100, 4
      %v2340 = vrot.slane %v2101, 4
      %v2341 = vrot.slane %v2102, 4
      %v2342 = vrot.slane %v2103, 4
      %v2343 = vrot.slane %v2104, 4
      %v2344 = vrot.slane %v2105, 4
      %v2345 = vrot.slane %v2116, 4
      %2346 = vrot.lane.b32.xlu0 %v2337, 127
      %v2347 = vpop.permute.xlu0 %2346
      %2348 = vrot.lane.b32.xlu0 %v2338, 127
      %v2349 = vpop.permute.xlu0 %2348
      %2350 = vrot.lane.b32.xlu0 %v2339, 127
      %v2351 = vpop.permute.xlu0 %2350
      %2352 = vrot.lane.b32.xlu0 %v2340, 127
      %v2353 = vpop.permute.xlu0 %2352
      %2354 = vrot.lane.b32.xlu0 %v2341, 127
      %v2355 = vpop.permute.xlu0 %2354
      %2356 = vrot.lane.b32.xlu0 %v2342, 127
      %v2357 = vpop.permute.xlu0 %2356
      %2358 = vrot.lane.b32.xlu0 %v2343, 127
      %v2359 = vpop.permute.xlu0 %2358
      %2360 = vrot.lane.b32.xlu0 %v2344, 127
      %v2361 = vpop.permute.xlu0 %2360
      %2362 = vrot.lane.b32.xlu0 %v2345, 127
      %v2363 = vpop.permute.xlu0 %2362
      %v2364 = vsel %vm1675, %v2347, %v2349
      %v2365 = vsel %vm1675, %v2349, %v2351
      %v2366 = vsel %vm1675, %v2351, %v2353
      %v2367 = vsel %vm1675, %v2353, %v2355
      %v2368 = vsel %vm1675, %v2355, %v2357
      %v2369 = vsel %vm1675, %v2357, %v2359
      %v2370 = vsel %vm1675, %v2359, %v2361
      %v2371 = vsel %vm1675, %v2361, %v2363
      %v2388 = vrot.slane %v2203, 4
      %v2389 = vrot.slane %v2204, 4
      %v2390 = vrot.slane %v2205, 4
      %v2391 = vrot.slane %v2206, 4
      %v2392 = vrot.slane %v2207, 4
      %v2393 = vrot.slane %v2208, 4
      %v2394 = vrot.slane %v2209, 4
      %v2395 = vrot.slane %v2210, 4
      %2404 = vrot.lane.b32.xlu0 %v2115, 95
      %v2405 = vpop.permute.xlu0 %2404
      %2406 = vrot.lane.b32.xlu0 %v2099, 95
      %v2407 = vpop.permute.xlu0 %2406
      %2408 = vrot.lane.b32.xlu0 %v2100, 95
      %v2409 = vpop.permute.xlu0 %2408
      %2410 = vrot.lane.b32.xlu0 %v2101, 95
      %v2411 = vpop.permute.xlu0 %2410
      %2412 = vrot.lane.b32.xlu0 %v2102, 95
      %v2413 = vpop.permute.xlu0 %2412
      %2414 = vrot.lane.b32.xlu0 %v2103, 95
      %v2415 = vpop.permute.xlu0 %2414
      %2416 = vrot.lane.b32.xlu0 %v2104, 95
      %v2417 = vpop.permute.xlu0 %2416
      %2418 = vrot.lane.b32.xlu0 %v2105, 95
      %v2419 = vpop.permute.xlu0 %2418
      %2420 = vrot.lane.b32.xlu0 %v2116, 95
      %v2421 = vpop.permute.xlu0 %2420
      %v2422 = vsel %vm1734, %v2405, %v2407
      %v2423 = vsel %vm1734, %v2407, %v2409
      %v2424 = vsel %vm1734, %v2409, %v2411
      %v2425 = vsel %vm1734, %v2411, %v2413
      %v2426 = vsel %vm1734, %v2413, %v2415
      %v2427 = vsel %vm1734, %v2415, %v2417
      %v2428 = vsel %vm1734, %v2417, %v2419
      %v2429 = vsel %vm1734, %v2419, %v2421
      %v2446 = vrot.slane %v2245, 4
      %v2447 = vrot.slane %v2246, 4
      %v2448 = vrot.slane %v2247, 4
      %v2449 = vrot.slane %v2248, 4
      %v2450 = vrot.slane %v2249, 4
      %v2451 = vrot.slane %v2250, 4
      %v2452 = vrot.slane %v2251, 4
      %v2453 = vrot.slane %v2252, 4
      %2462 = vrot.lane.b32.xlu0 %v2337, 63
      %v2463 = vpop.permute.xlu0 %2462
      %2464 = vrot.lane.b32.xlu0 %v2338, 63
      %v2465 = vpop.permute.xlu0 %2464
      %2466 = vrot.lane.b32.xlu0 %v2339, 63
      %v2467 = vpop.permute.xlu0 %2466
      %2468 = vrot.lane.b32.xlu0 %v2340, 63
      %v2469 = vpop.permute.xlu0 %2468
      %2470 = vrot.lane.b32.xlu0 %v2341, 63
      %v2471 = vpop.permute.xlu0 %2470
      %2472 = vrot.lane.b32.xlu0 %v2342, 63
      %v2473 = vpop.permute.xlu0 %2472
      %2474 = vrot.lane.b32.xlu0 %v2343, 63
      %v2475 = vpop.permute.xlu0 %2474
      %2476 = vrot.lane.b32.xlu0 %v2344, 63
      %v2477 = vpop.permute.xlu0 %2476
      %2478 = vrot.lane.b32.xlu0 %v2345, 63
      %v2479 = vpop.permute.xlu0 %2478
      %v2480 = vsel %vm1793, %v2463, %v2465
      %v2481 = vsel %vm1793, %v2465, %v2467
      %v2482 = vsel %vm1793, %v2467, %v2469
      %v2483 = vsel %vm1793, %v2469, %v2471
      %v2484 = vsel %vm1793, %v2471, %v2473
      %v2485 = vsel %vm1793, %v2473, %v2475
      %v2486 = vsel %vm1793, %v2475, %v2477
      %v2487 = vsel %vm1793, %v2477, %v2479
      %v2496 = vsel %vm1810, %v2117, %v2364
      %v2497 = vsel %vm1810, %v2118, %v2365
      %v2498 = vsel %vm1810, %v2119, %v2366
      %v2499 = vsel %vm1810, %v2120, %v2367
      %v2500 = vsel %vm1810, %v2121, %v2368
      %v2501 = vsel %vm1810, %v2122, %v2369
      %v2502 = vsel %vm1810, %v2123, %v2370
      %v2503 = vsel %vm1810, %v2124, %v2371
      %v2504 = vsel %vm1810, %v2161, %v2388
      %v2505 = vsel %vm1810, %v2162, %v2389
      %v2506 = vsel %vm1810, %v2163, %v2390
      %v2507 = vsel %vm1810, %v2164, %v2391
      %v2508 = vsel %vm1810, %v2165, %v2392
      %v2509 = vsel %vm1810, %v2166, %v2393
      %v2510 = vsel %vm1810, %v2167, %v2394
      %v2511 = vsel %vm1810, %v2168, %v2395
      %v2512 = vsel %vm1810, %v2422, %v2446
      %v2513 = vsel %vm1810, %v2423, %v2447
      %v2514 = vsel %vm1810, %v2424, %v2448
      %v2515 = vsel %vm1810, %v2425, %v2449
      %v2516 = vsel %vm1810, %v2426, %v2450
      %v2517 = vsel %vm1810, %v2427, %v2451
      %v2518 = vsel %vm1810, %v2428, %v2452
      %v2519 = vsel %vm1810, %v2429, %v2453
      %v2520 = vsel %vm1810, %v2287, %v2480
      %v2521 = vsel %vm1810, %v2288, %v2481
      %v2522 = vsel %vm1810, %v2289, %v2482
      %v2523 = vsel %vm1810, %v2290, %v2483
      %v2524 = vsel %vm1810, %v2291, %v2484
      %v2525 = vsel %vm1810, %v2292, %v2485
      %v2526 = vsel %vm1810, %v2293, %v2486
      %v2527 = vsel %vm1810, %v2294, %v2487
      %v2528 = vpack.c.bf16 %v2504, %v2496
      %v2529 = vpack.c.bf16 %v2505, %v2497
      %v2530 = vpack.c.bf16 %v2506, %v2498
      %v2531 = vpack.c.bf16 %v2507, %v2499
      %v2532 = vpack.c.bf16 %v2508, %v2500
      %v2533 = vpack.c.bf16 %v2509, %v2501
      %v2534 = vpack.c.bf16 %v2510, %v2502
      %v2535 = vpack.c.bf16 %v2511, %v2503
      %v2536 = vpack.c.bf16 %v2520, %v2512
      %v2537 = vpack.c.bf16 %v2521, %v2513
      %v2538 = vpack.c.bf16 %v2522, %v2514
      %v2539 = vpack.c.bf16 %v2523, %v2515
      %v2540 = vpack.c.bf16 %v2524, %v2516
      %v2541 = vpack.c.bf16 %v2525, %v2517
      %v2542 = vpack.c.bf16 %v2526, %v2518
      %v2543 = vpack.c.bf16 %v2527, %v2519
      %v2544 = vpack.c.bf16 %v2329, %v2329
      %v2545 = vpack.c.bf16 %v2330, %v2330
      %v2546 = vpack.c.bf16 %v2331, %v2331
      %v2547 = vpack.c.bf16 %v2332, %v2332
      %v2548 = vpack.c.bf16 %v2333, %v2333
      %v2549 = vpack.c.bf16 %v2334, %v2334
      %v2550 = vpack.c.bf16 %v2335, %v2335
      %v2551 = vpack.c.bf16 %v2336, %v2336
      %v2552 = vld [vmem:[%s4] sm:$0x3]
      %v2553 = vld [vmem:[%s5] sm:$0xf]
      %2555 = vset.pattern.permute.xlu0 0
      %2556 = vperm.xlu0 %2555, %v2553
      %v2557 = vpop.permute.xlu0 %2556
      %v2560 = vsel %vm1874, %v2552, 0
      %v2563 = vsel %vm1878, %v2544, 0
      %v2566 = vsel %vm1878, %v2545, 0
      %v2569 = vsel %vm1878, %v2546, 0
      %v2572 = vsel %vm1878, %v2547, 0
      %v2575 = vsel %vm1878, %v2548, 0
      %v2578 = vsel %vm1878, %v2549, 0
      %v2581 = vsel %vm1878, %v2550, 0
      %v2584 = vsel %vm1878, %v2551, 0
      %2586 = vmatprep.subr.bf16.mxu0 %v2529
      %2587 = vmatpush1.bf16.msra.mxu0 %v2528
      %2588 = vmatprep.subr.bf16.mxu0 %v2537
      %2589 = vmatpush1.bf16.msra.mxu0 %v2536
      %2590 = vmatprep.subr.bf16.mxu0 %v2566
      %2591 = vmatpush1.bf16.msra.mxu0 %v2563
      %2592 = vmatprep.subr.bf16.mxu0 0
      %2593 = vmatpush1.bf16.msra.mxu0 0
      %2594 = vmatprep.subr.bf16.mxu0 0
      %2595 = vmatpush1.bf16.msra.mxu0 0
      %2596 = vmatprep.subr.bf16.mxu0 0
      %2597 = vmatpush1.bf16.msra.mxu0 0
      %2598 = vmatprep.subr.bf16.mxu0 0
      %2599 = vmatpush1.bf16.msra.mxu0 0
      %2600 = vmatprep.subr.bf16.mxu0 0
      %2601 = vmatpush1.bf16.msra.mxu0 0
      %2602 = vmatprep.subr.bf16.mxu0 0
      %2603 = vmatpush1.bf16.msra.mxu0 0
      %2604 = vmatprep.subr.bf16.mxu0 0
      %2605 = vmatpush1.bf16.msra.mxu0 0
      %2606 = vmatprep.subr.bf16.mxu0 0
      %2607 = vmatpush1.bf16.msra.mxu0 0
      %2608 = vmatprep.subr.bf16.mxu0 0
      %2609 = vmatpush1.bf16.msra.mxu0 0
      %2610 = vmatprep.subr.bf16.mxu0 0
      %2611 = vmatpush1.bf16.msra.mxu0 0
      %2612 = vmatprep.subr.bf16.mxu0 0
      %2613 = vmatpush1.bf16.msra.mxu0 0
      %2614 = vmatprep.subr.bf16.mxu0 0
      %2615 = vmatpush1.bf16.msra.mxu0 0
      %2616 = vmatprep.subr.bf16.mxu0 0
      %2617 = vmatpush1.bf16.msra.mxu0 0
      %2618 = vmatprep.mubr.bf16.mxu0 0
      %2619 = vmatmul.mubr.bf16.gmra.mrb[0].mxu0 %v2560
      %v2620 = vpop.f32.mrb[0].mxu0
      %v2621 = vadd.f32 %v2557, %v2620
      %v2622 = vpop.f32.mrb[0].mxu0
      %v2623 = vadd.f32 %v2557, %v2622
      %v2624 = vpop.f32.mrb[0].mxu0
      %v2625 = vpop.f32.mrb[0].mxu0
      %2626 = vdwg.mxu0
      %2627 = vmatprep.subr.bf16.mxu0 %v2531
      %2628 = vmatpush1.bf16.msra.mxu0 %v2530
      %2629 = vmatprep.subr.bf16.mxu0 %v2539
      %2630 = vmatpush1.bf16.msra.mxu0 %v2538
      %2631 = vmatprep.subr.bf16.mxu0 %v2572
      %2632 = vmatpush1.bf16.msra.mxu0 %v2569
      %2633 = vmatprep.subr.bf16.mxu0 0
      %2634 = vmatpush1.bf16.msra.mxu0 0
      %2635 = vmatprep.subr.bf16.mxu0 0
      %2636 = vmatpush1.bf16.msra.mxu0 0
      %2637 = vmatprep.subr.bf16.mxu0 0
      %2638 = vmatpush1.bf16.msra.mxu0 0
      %2639 = vmatprep.subr.bf16.mxu0 0
      %2640 = vmatpush1.bf16.msra.mxu0 0
      %2641 = vmatprep.subr.bf16.mxu0 0
      %2642 = vmatpush1.bf16.msra.mxu0 0
      %2643 = vmatprep.subr.bf16.mxu0 0
      %2644 = vmatpush1.bf16.msra.mxu0 0
      %2645 = vmatprep.subr.bf16.mxu0 0
      %2646 = vmatpush1.bf16.msra.mxu0 0
      %2647 = vmatprep.subr.bf16.mxu0 0
      %2648 = vmatpush1.bf16.msra.mxu0 0
      %2649 = vmatprep.subr.bf16.mxu0 0
      %2650 = vmatpush1.bf16.msra.mxu0 0
      %2651 = vmatprep.subr.bf16.mxu0 0
      %2652 = vmatpush1.bf16.msra.mxu0 0
      %2653 = vmatprep.subr.bf16.mxu0 0
      %2654 = vmatpush1.bf16.msra.mxu0 0
      %2655 = vmatprep.subr.bf16.mxu0 0
      %2656 = vmatpush1.bf16.msra.mxu0 0
      %2657 = vmatprep.subr.bf16.mxu0 0
      %2658 = vmatpush1.bf16.msra.mxu0 0
      %2659 = vmatprep.mubr.bf16.mxu0 0
      %2660 = vmatmul.mubr.bf16.gmra.mrb[0].mxu0 %v2560
      %v2661 = vpop.f32.mrb[0].mxu0
      %v2662 = vadd.f32 %v2557, %v2661
      %v2663 = vpop.f32.mrb[0].mxu0
      %v2664 = vadd.f32 %v2557, %v2663
      %v2665 = vpop.f32.mrb[0].mxu0
      %v2666 = vpop.f32.mrb[0].mxu0
      %2667 = vdwg.mxu0
      %2668 = vmatprep.subr.bf16.mxu0 %v2533
      %2669 = vmatpush1.bf16.msra.mxu0 %v2532
      %2670 = vmatprep.subr.bf16.mxu0 %v2541
      %2671 = vmatpush1.bf16.msra.mxu0 %v2540
      %2672 = vmatprep.subr.bf16.mxu0 %v2578
      %2673 = vmatpush1.bf16.msra.mxu0 %v2575
      %2674 = vmatprep.subr.bf16.mxu0 0
      %2675 = vmatpush1.bf16.msra.mxu0 0
      %2676 = vmatprep.subr.bf16.mxu0 0
      %2677 = vmatpush1.bf16.msra.mxu0 0
      %2678 = vmatprep.subr.bf16.mxu0 0
      %2679 = vmatpush1.bf16.msra.mxu0 0
      %2680 = vmatprep.subr.bf16.mxu0 0
      %2681 = vmatpush1.bf16.msra.mxu0 0
      %2682 = vmatprep.subr.bf16.mxu0 0
      %2683 = vmatpush1.bf16.msra.mxu0 0
      %2684 = vmatprep.subr.bf16.mxu0 0
      %2685 = vmatpush1.bf16.msra.mxu0 0
      %2686 = vmatprep.subr.bf16.mxu0 0
      %2687 = vmatpush1.bf16.msra.mxu0 0
      %2688 = vmatprep.subr.bf16.mxu0 0
      %2689 = vmatpush1.bf16.msra.mxu0 0
      %2690 = vmatprep.subr.bf16.mxu0 0
      %2691 = vmatpush1.bf16.msra.mxu0 0
      %2692 = vmatprep.subr.bf16.mxu0 0
      %2693 = vmatpush1.bf16.msra.mxu0 0
      %2694 = vmatprep.subr.bf16.mxu0 0
      %2695 = vmatpush1.bf16.msra.mxu0 0
      %2696 = vmatprep.subr.bf16.mxu0 0
      %2697 = vmatpush1.bf16.msra.mxu0 0
      %2698 = vmatprep.subr.bf16.mxu0 0
      %2699 = vmatpush1.bf16.msra.mxu0 0
      %2700 = vmatprep.mubr.bf16.mxu0 0
      %2701 = vmatmul.mubr.bf16.gmra.mrb[0].mxu0 %v2560
      %v2702 = vpop.f32.mrb[0].mxu0
      %v2703 = vadd.f32 %v2557, %v2702
      %v2704 = vpop.f32.mrb[0].mxu0
      %v2705 = vadd.f32 %v2557, %v2704
      %v2706 = vpop.f32.mrb[0].mxu0
      %v2707 = vpop.f32.mrb[0].mxu0
      %2708 = vdwg.mxu0
      %2709 = vmatprep.subr.bf16.mxu0 %v2535
      %2710 = vmatpush1.bf16.msra.mxu0 %v2534
      %2711 = vmatprep.subr.bf16.mxu0 %v2543
      %2712 = vmatpush1.bf16.msra.mxu0 %v2542
      %2713 = vmatprep.subr.bf16.mxu0 %v2584
      %2714 = vmatpush1.bf16.msra.mxu0 %v2581
      %2715 = vmatprep.subr.bf16.mxu0 0
      %2716 = vmatpush1.bf16.msra.mxu0 0
      %2717 = vmatprep.subr.bf16.mxu0 0
      %2718 = vmatpush1.bf16.msra.mxu0 0
      %2719 = vmatprep.subr.bf16.mxu0 0
      %2720 = vmatpush1.bf16.msra.mxu0 0
      %2721 = vmatprep.subr.bf16.mxu0 0
      %2722 = vmatpush1.bf16.msra.mxu0 0
      %2723 = vmatprep.subr.bf16.mxu0 0
      %2724 = vmatpush1.bf16.msra.mxu0 0
      %2725 = vmatprep.subr.bf16.mxu0 0
      %2726 = vmatpush1.bf16.msra.mxu0 0
      %2727 = vmatprep.subr.bf16.mxu0 0
      %2728 = vmatpush1.bf16.msra.mxu0 0
      %2729 = vmatprep.subr.bf16.mxu0 0
      %2730 = vmatpush1.bf16.msra.mxu0 0
      %2731 = vmatprep.subr.bf16.mxu0 0
      %2732 = vmatpush1.bf16.msra.mxu0 0
      %2733 = vmatprep.subr.bf16.mxu0 0
      %2734 = vmatpush1.bf16.msra.mxu0 0
      %2735 = vmatprep.subr.bf16.mxu0 0
      %2736 = vmatpush1.bf16.msra.mxu0 0
      %2737 = vmatprep.subr.bf16.mxu0 0
      %2738 = vmatpush1.bf16.msra.mxu0 0
      %2739 = vmatprep.subr.bf16.mxu0 0
      %2740 = vmatpush1.bf16.msra.mxu0 0
      %2741 = vmatprep.mubr.bf16.mxu0 0
      %2742 = vmatmul.mubr.bf16.gmra.mrb[0].mxu0 %v2560
      %v2743 = vpop.f32.mrb[0].mxu0
      %v2744 = vadd.f32 %v2557, %v2743
      %v2745 = vpop.f32.mrb[0].mxu0
      %v2746 = vadd.f32 %v2557, %v2745
      %v2747 = vpop.f32.mrb[0].mxu0
      %v2748 = vpop.f32.mrb[0].mxu0
      %2749 = vdwg.mxu0
      %v2750 = vmax.f32 %v2621, 0.0
      %v2751 = vmax.f32 %v2623, 0.0
      %v2752 = vmax.f32 %v2662, 0.0
      %v2753 = vmax.f32 %v2664, 0.0
      %v2754 = vmax.f32 %v2703, 0.0
      %v2755 = vmax.f32 %v2705, 0.0
      %v2756 = vmax.f32 %v2744, 0.0
      %v2757 = vmax.f32 %v2746, 0.0
      %v2758 = vmax.f32 %v2750, 0.0
      %v2759 = vmax.f32 %v2751, 0.0
      %v2760 = vmax.f32 %v2752, 0.0
      %v2761 = vmax.f32 %v2753, 0.0
      %v2762 = vmax.f32 %v2754, 0.0
      %v2763 = vmax.f32 %v2755, 0.0
      %v2764 = vmax.f32 %v2756, 0.0
      %v2765 = vmax.f32 %v2757, 0.0
      %2774 = vrot.lane.b32.xlu0 %v2758, 33
      %v2775 = vpop.permute.xlu0 %2774
      %2776 = vrot.lane.b32.xlu0 %v2759, 33
      %v2777 = vpop.permute.xlu0 %2776
      %2778 = vrot.lane.b32.xlu0 %v2760, 33
      %v2779 = vpop.permute.xlu0 %2778
      %2780 = vrot.lane.b32.xlu0 %v2761, 33
      %v2781 = vpop.permute.xlu0 %2780
      %2782 = vrot.lane.b32.xlu0 %v2762, 33
      %v2783 = vpop.permute.xlu0 %2782
      %2784 = vrot.lane.b32.xlu0 %v2763, 33
      %v2785 = vpop.permute.xlu0 %2784
      %2786 = vrot.lane.b32.xlu0 %v2764, 33
      %v2787 = vpop.permute.xlu0 %2786
      %2788 = vrot.lane.b32.xlu0 %v2765, 33
      %v2789 = vpop.permute.xlu0 %2788
      %v2790 = vsel %vm1283, %v2775, %v2777
      %v2791 = vsel %vm1283, %v2777, %v2779
      %v2792 = vsel %vm1283, %v2779, %v2781
      %v2793 = vsel %vm1283, %v2781, %v2783
      %v2794 = vsel %vm1283, %v2783, %v2785
      %v2795 = vsel %vm1283, %v2785, %v2787
      %v2796 = vsel %vm1283, %v2787, %v2789
      %v2806 = vsel %vm1283, 0.0, %v2775
      %v2807 = vsel %vm1283, %v2789, 0.0
      %v2808 = vsel %vm1407, %v2806, 0.0
      %v2809 = vsel %vm1408, %v2790, 0.0
      %v2810 = vsel %vm1409, %v2791, 0.0
      %v2811 = vsel %vm1410, %v2792, 0.0
      %v2812 = vsel %vm1411, %v2793, 0.0
      %v2813 = vsel %vm1412, %v2794, 0.0
      %v2814 = vsel %vm1413, %v2795, 0.0
      %v2815 = vsel %vm1414, %v2796, 0.0
      %2818 = vrot.lane.b32.xlu0 %v2806, 126
      %v2819 = vpop.permute.xlu0 %2818
      %2820 = vrot.lane.b32.xlu0 %v2790, 126
      %v2821 = vpop.permute.xlu0 %2820
      %2822 = vrot.lane.b32.xlu0 %v2791, 126
      %v2823 = vpop.permute.xlu0 %2822
      %2824 = vrot.lane.b32.xlu0 %v2792, 126
      %v2825 = vpop.permute.xlu0 %2824
      %2826 = vrot.lane.b32.xlu0 %v2793, 126
      %v2827 = vpop.permute.xlu0 %2826
      %2828 = vrot.lane.b32.xlu0 %v2794, 126
      %v2829 = vpop.permute.xlu0 %2828
      %2830 = vrot.lane.b32.xlu0 %v2795, 126
      %v2831 = vpop.permute.xlu0 %2830
      %2832 = vrot.lane.b32.xlu0 %v2796, 126
      %v2833 = vpop.permute.xlu0 %2832
      %2834 = vrot.lane.b32.xlu0 %v2807, 126
      %v2835 = vpop.permute.xlu0 %2834
      %v2836 = vsel %vm1451, %v2819, %v2821
      %v2837 = vsel %vm1451, %v2821, %v2823
      %v2838 = vsel %vm1451, %v2823, %v2825
      %v2839 = vsel %vm1451, %v2825, %v2827
      %v2840 = vsel %vm1451, %v2827, %v2829
      %v2841 = vsel %vm1451, %v2829, %v2831
      %v2842 = vsel %vm1451, %v2831, %v2833
      %v2843 = vsel %vm1451, %v2833, %v2835
      %v2852 = vsel %vm1423, %v2836, 0.0
      %v2853 = vsel %vm1424, %v2837, 0.0
      %v2854 = vsel %vm1425, %v2838, 0.0
      %v2855 = vsel %vm1426, %v2839, 0.0
      %v2856 = vsel %vm1427, %v2840, 0.0
      %v2857 = vsel %vm1428, %v2841, 0.0
      %v2858 = vsel %vm1429, %v2842, 0.0
      %v2859 = vsel %vm1430, %v2843, 0.0
      %2860 = vrot.lane.b32.xlu0 %v2806, 96
      %v2861 = vpop.permute.xlu0 %2860
      %2862 = vrot.lane.b32.xlu0 %v2790, 96
      %v2863 = vpop.permute.xlu0 %2862
      %2864 = vrot.lane.b32.xlu0 %v2791, 96
      %v2865 = vpop.permute.xlu0 %2864
      %2866 = vrot.lane.b32.xlu0 %v2792, 96
      %v2867 = vpop.permute.xlu0 %2866
      %2868 = vrot.lane.b32.xlu0 %v2793, 96
      %v2869 = vpop.permute.xlu0 %2868
      %2870 = vrot.lane.b32.xlu0 %v2794, 96
      %v2871 = vpop.permute.xlu0 %2870
      %2872 = vrot.lane.b32.xlu0 %v2795, 96
      %v2873 = vpop.permute.xlu0 %2872
      %2874 = vrot.lane.b32.xlu0 %v2796, 96
      %v2875 = vpop.permute.xlu0 %2874
      %2876 = vrot.lane.b32.xlu0 %v2807, 96
      %v2877 = vpop.permute.xlu0 %2876
      %v2878 = vsel %vm1494, %v2861, %v2863
      %v2879 = vsel %vm1494, %v2863, %v2865
      %v2880 = vsel %vm1494, %v2865, %v2867
      %v2881 = vsel %vm1494, %v2867, %v2869
      %v2882 = vsel %vm1494, %v2869, %v2871
      %v2883 = vsel %vm1494, %v2871, %v2873
      %v2884 = vsel %vm1494, %v2873, %v2875
      %v2885 = vsel %vm1494, %v2875, %v2877
      %v2894 = vsel %vm1407, %v2878, 0.0
      %v2895 = vsel %vm1408, %v2879, 0.0
      %v2896 = vsel %vm1409, %v2880, 0.0
      %v2897 = vsel %vm1410, %v2881, 0.0
      %v2898 = vsel %vm1411, %v2882, 0.0
      %v2899 = vsel %vm1412, %v2883, 0.0
      %v2900 = vsel %vm1413, %v2884, 0.0
      %v2901 = vsel %vm1414, %v2885, 0.0
      %2902 = vrot.lane.b32.xlu0 %v2806, 94
      %v2903 = vpop.permute.xlu0 %2902
      %2904 = vrot.lane.b32.xlu0 %v2790, 94
      %v2905 = vpop.permute.xlu0 %2904
      %2906 = vrot.lane.b32.xlu0 %v2791, 94
      %v2907 = vpop.permute.xlu0 %2906
      %2908 = vrot.lane.b32.xlu0 %v2792, 94
      %v2909 = vpop.permute.xlu0 %2908
      %2910 = vrot.lane.b32.xlu0 %v2793, 94
      %v2911 = vpop.permute.xlu0 %2910
      %2912 = vrot.lane.b32.xlu0 %v2794, 94
      %v2913 = vpop.permute.xlu0 %2912
      %2914 = vrot.lane.b32.xlu0 %v2795, 94
      %v2915 = vpop.permute.xlu0 %2914
      %2916 = vrot.lane.b32.xlu0 %v2796, 94
      %v2917 = vpop.permute.xlu0 %2916
      %2918 = vrot.lane.b32.xlu0 %v2807, 94
      %v2919 = vpop.permute.xlu0 %2918
      %v2920 = vsel %vm1537, %v2903, %v2905
      %v2921 = vsel %vm1537, %v2905, %v2907
      %v2922 = vsel %vm1537, %v2907, %v2909
      %v2923 = vsel %vm1537, %v2909, %v2911
      %v2924 = vsel %vm1537, %v2911, %v2913
      %v2925 = vsel %vm1537, %v2913, %v2915
      %v2926 = vsel %vm1537, %v2915, %v2917
      %v2927 = vsel %vm1537, %v2917, %v2919
      %v2936 = vsel %vm1423, %v2920, 0.0
      %v2937 = vsel %vm1424, %v2921, 0.0
      %v2938 = vsel %vm1425, %v2922, 0.0
      %v2939 = vsel %vm1426, %v2923, 0.0
      %v2940 = vsel %vm1427, %v2924, 0.0
      %v2941 = vsel %vm1428, %v2925, 0.0
      %v2942 = vsel %vm1429, %v2926, 0.0
      %v2943 = vsel %vm1430, %v2927, 0.0
      %2944 = vrot.lane.b32.xlu0 %v2806, 64
      %v2945 = vpop.permute.xlu0 %2944
      %2946 = vrot.lane.b32.xlu0 %v2790, 64
      %v2947 = vpop.permute.xlu0 %2946
      %2948 = vrot.lane.b32.xlu0 %v2791, 64
      %v2949 = vpop.permute.xlu0 %2948
      %2950 = vrot.lane.b32.xlu0 %v2792, 64
      %v2951 = vpop.permute.xlu0 %2950
      %2952 = vrot.lane.b32.xlu0 %v2793, 64
      %v2953 = vpop.permute.xlu0 %2952
      %2954 = vrot.lane.b32.xlu0 %v2794, 64
      %v2955 = vpop.permute.xlu0 %2954
      %2956 = vrot.lane.b32.xlu0 %v2795, 64
      %v2957 = vpop.permute.xlu0 %2956
      %2958 = vrot.lane.b32.xlu0 %v2796, 64
      %v2959 = vpop.permute.xlu0 %2958
      %2960 = vrot.lane.b32.xlu0 %v2807, 64
      %v2961 = vpop.permute.xlu0 %2960
      %v2962 = vsel %vm1580, %v2945, %v2947
      %v2963 = vsel %vm1580, %v2947, %v2949
      %v2964 = vsel %vm1580, %v2949, %v2951
      %v2965 = vsel %vm1580, %v2951, %v2953
      %v2966 = vsel %vm1580, %v2953, %v2955
      %v2967 = vsel %vm1580, %v2955, %v2957
      %v2968 = vsel %vm1580, %v2957, %v2959
      %v2969 = vsel %vm1580, %v2959, %v2961
      %v2978 = vsel %vm1407, %v2962, 0.0
      %v2979 = vsel %vm1408, %v2963, 0.0
      %v2980 = vsel %vm1409, %v2964, 0.0
      %v2981 = vsel %vm1410, %v2965, 0.0
      %v2982 = vsel %vm1411, %v2966, 0.0
      %v2983 = vsel %vm1412, %v2967, 0.0
      %v2984 = vsel %vm1413, %v2968, 0.0
      %v2985 = vsel %vm1414, %v2969, 0.0
      %2986 = vrot.lane.b32.xlu0 %v2806, 62
      %v2987 = vpop.permute.xlu0 %2986
      %2988 = vrot.lane.b32.xlu0 %v2790, 62
      %v2989 = vpop.permute.xlu0 %2988
      %2990 = vrot.lane.b32.xlu0 %v2791, 62
      %v2991 = vpop.permute.xlu0 %2990
      %2992 = vrot.lane.b32.xlu0 %v2792, 62
      %v2993 = vpop.permute.xlu0 %2992
      %2994 = vrot.lane.b32.xlu0 %v2793, 62
      %v2995 = vpop.permute.xlu0 %2994
      %2996 = vrot.lane.b32.xlu0 %v2794, 62
      %v2997 = vpop.permute.xlu0 %2996
      %2998 = vrot.lane.b32.xlu0 %v2795, 62
      %v2999 = vpop.permute.xlu0 %2998
      %3000 = vrot.lane.b32.xlu0 %v2796, 62
      %v3001 = vpop.permute.xlu0 %3000
      %3002 = vrot.lane.b32.xlu0 %v2807, 62
      %v3003 = vpop.permute.xlu0 %3002
      %v3004 = vsel %vm1623, %v2987, %v2989
      %v3005 = vsel %vm1623, %v2989, %v2991
      %v3006 = vsel %vm1623, %v2991, %v2993
      %v3007 = vsel %vm1623, %v2993, %v2995
      %v3008 = vsel %vm1623, %v2995, %v2997
      %v3009 = vsel %vm1623, %v2997, %v2999
      %v3010 = vsel %vm1623, %v2999, %v3001
      %v3011 = vsel %vm1623, %v3001, %v3003
      %v3020 = vsel %vm1423, %v3004, 0.0
      %v3021 = vsel %vm1424, %v3005, 0.0
      %v3022 = vsel %vm1425, %v3006, 0.0
      %v3023 = vsel %vm1426, %v3007, 0.0
      %v3024 = vsel %vm1427, %v3008, 0.0
      %v3025 = vsel %vm1428, %v3009, 0.0
      %v3026 = vsel %vm1429, %v3010, 0.0
      %v3027 = vsel %vm1430, %v3011, 0.0
      %v3028 = vrot.slane %v2806, 4
      %v3029 = vrot.slane %v2790, 4
      %v3030 = vrot.slane %v2791, 4
      %v3031 = vrot.slane %v2792, 4
      %v3032 = vrot.slane %v2793, 4
      %v3033 = vrot.slane %v2794, 4
      %v3034 = vrot.slane %v2795, 4
      %v3035 = vrot.slane %v2796, 4
      %v3036 = vrot.slane %v2807, 4
      %3037 = vrot.lane.b32.xlu0 %v3028, 127
      %v3038 = vpop.permute.xlu0 %3037
      %3039 = vrot.lane.b32.xlu0 %v3029, 127
      %v3040 = vpop.permute.xlu0 %3039
      %3041 = vrot.lane.b32.xlu0 %v3030, 127
      %v3042 = vpop.permute.xlu0 %3041
      %3043 = vrot.lane.b32.xlu0 %v3031, 127
      %v3044 = vpop.permute.xlu0 %3043
      %3045 = vrot.lane.b32.xlu0 %v3032, 127
      %v3046 = vpop.permute.xlu0 %3045
      %3047 = vrot.lane.b32.xlu0 %v3033, 127
      %v3048 = vpop.permute.xlu0 %3047
      %3049 = vrot.lane.b32.xlu0 %v3034, 127
      %v3050 = vpop.permute.xlu0 %3049
      %3051 = vrot.lane.b32.xlu0 %v3035, 127
      %v3052 = vpop.permute.xlu0 %3051
      %3053 = vrot.lane.b32.xlu0 %v3036, 127
      %v3054 = vpop.permute.xlu0 %3053
      %v3055 = vsel %vm1675, %v3038, %v3040
      %v3056 = vsel %vm1675, %v3040, %v3042
      %v3057 = vsel %vm1675, %v3042, %v3044
      %v3058 = vsel %vm1675, %v3044, %v3046
      %v3059 = vsel %vm1675, %v3046, %v3048
      %v3060 = vsel %vm1675, %v3048, %v3050
      %v3061 = vsel %vm1675, %v3050, %v3052
      %v3062 = vsel %vm1675, %v3052, %v3054
      %v3079 = vrot.slane %v2894, 4
      %v3080 = vrot.slane %v2895, 4
      %v3081 = vrot.slane %v2896, 4
      %v3082 = vrot.slane %v2897, 4
      %v3083 = vrot.slane %v2898, 4
      %v3084 = vrot.slane %v2899, 4
      %v3085 = vrot.slane %v2900, 4
      %v3086 = vrot.slane %v2901, 4
      %3095 = vrot.lane.b32.xlu0 %v2806, 95
      %v3096 = vpop.permute.xlu0 %3095
      %3097 = vrot.lane.b32.xlu0 %v2790, 95
      %v3098 = vpop.permute.xlu0 %3097
      %3099 = vrot.lane.b32.xlu0 %v2791, 95
      %v3100 = vpop.permute.xlu0 %3099
      %3101 = vrot.lane.b32.xlu0 %v2792, 95
      %v3102 = vpop.permute.xlu0 %3101
      %3103 = vrot.lane.b32.xlu0 %v2793, 95
      %v3104 = vpop.permute.xlu0 %3103
      %3105 = vrot.lane.b32.xlu0 %v2794, 95
      %v3106 = vpop.permute.xlu0 %3105
      %3107 = vrot.lane.b32.xlu0 %v2795, 95
      %v3108 = vpop.permute.xlu0 %3107
      %3109 = vrot.lane.b32.xlu0 %v2796, 95
      %v3110 = vpop.permute.xlu0 %3109
      %3111 = vrot.lane.b32.xlu0 %v2807, 95
      %v3112 = vpop.permute.xlu0 %3111
      %v3113 = vsel %vm1734, %v3096, %v3098
      %v3114 = vsel %vm1734, %v3098, %v3100
      %v3115 = vsel %vm1734, %v3100, %v3102
      %v3116 = vsel %vm1734, %v3102, %v3104
      %v3117 = vsel %vm1734, %v3104, %v3106
      %v3118 = vsel %vm1734, %v3106, %v3108
      %v3119 = vsel %vm1734, %v3108, %v3110
      %v3120 = vsel %vm1734, %v3110, %v3112
      %v3137 = vrot.slane %v2936, 4
      %v3138 = vrot.slane %v2937, 4
      %v3139 = vrot.slane %v2938, 4
      %v3140 = vrot.slane %v2939, 4
      %v3141 = vrot.slane %v2940, 4
      %v3142 = vrot.slane %v2941, 4
      %v3143 = vrot.slane %v2942, 4
      %v3144 = vrot.slane %v2943, 4
      %3153 = vrot.lane.b32.xlu0 %v3028, 63
      %v3154 = vpop.permute.xlu0 %3153
      %3155 = vrot.lane.b32.xlu0 %v3029, 63
      %v3156 = vpop.permute.xlu0 %3155
      %3157 = vrot.lane.b32.xlu0 %v3030, 63
      %v3158 = vpop.permute.xlu0 %3157
      %3159 = vrot.lane.b32.xlu0 %v3031, 63
      %v3160 = vpop.permute.xlu0 %3159
      %3161 = vrot.lane.b32.xlu0 %v3032, 63
      %v3162 = vpop.permute.xlu0 %3161
      %3163 = vrot.lane.b32.xlu0 %v3033, 63
      %v3164 = vpop.permute.xlu0 %3163
      %3165 = vrot.lane.b32.xlu0 %v3034, 63
      %v3166 = vpop.permute.xlu0 %3165
      %3167 = vrot.lane.b32.xlu0 %v3035, 63
      %v3168 = vpop.permute.xlu0 %3167
      %3169 = vrot.lane.b32.xlu0 %v3036, 63
      %v3170 = vpop.permute.xlu0 %3169
      %v3171 = vsel %vm1793, %v3154, %v3156
      %v3172 = vsel %vm1793, %v3156, %v3158
      %v3173 = vsel %vm1793, %v3158, %v3160
      %v3174 = vsel %vm1793, %v3160, %v3162
      %v3175 = vsel %vm1793, %v3162, %v3164
      %v3176 = vsel %vm1793, %v3164, %v3166
      %v3177 = vsel %vm1793, %v3166, %v3168
      %v3178 = vsel %vm1793, %v3168, %v3170
      %v3187 = vsel %vm1810, %v2808, %v3055
      %v3188 = vsel %vm1810, %v2809, %v3056
      %v3189 = vsel %vm1810, %v2810, %v3057
      %v3190 = vsel %vm1810, %v2811, %v3058
      %v3191 = vsel %vm1810, %v2812, %v3059
      %v3192 = vsel %vm1810, %v2813, %v3060
      %v3193 = vsel %vm1810, %v2814, %v3061
      %v3194 = vsel %vm1810, %v2815, %v3062
      %v3195 = vsel %vm1810, %v2852, %v3079
      %v3196 = vsel %vm1810, %v2853, %v3080
      %v3197 = vsel %vm1810, %v2854, %v3081
      %v3198 = vsel %vm1810, %v2855, %v3082
      %v3199 = vsel %vm1810, %v2856, %v3083
      %v3200 = vsel %vm1810, %v2857, %v3084
      %v3201 = vsel %vm1810, %v2858, %v3085
      %v3202 = vsel %vm1810, %v2859, %v3086
      %v3203 = vsel %vm1810, %v3113, %v3137
      %v3204 = vsel %vm1810, %v3114, %v3138
      %v3205 = vsel %vm1810, %v3115, %v3139
      %v3206 = vsel %vm1810, %v3116, %v3140
      %v3207 = vsel %vm1810, %v3117, %v3141
      %v3208 = vsel %vm1810, %v3118, %v3142
      %v3209 = vsel %vm1810, %v3119, %v3143
      %v3210 = vsel %vm1810, %v3120, %v3144
      %v3211 = vsel %vm1810, %v2978, %v3171
      %v3212 = vsel %vm1810, %v2979, %v3172
      %v3213 = vsel %vm1810, %v2980, %v3173
      %v3214 = vsel %vm1810, %v2981, %v3174
      %v3215 = vsel %vm1810, %v2982, %v3175
      %v3216 = vsel %vm1810, %v2983, %v3176
      %v3217 = vsel %vm1810, %v2984, %v3177
      %v3218 = vsel %vm1810, %v2985, %v3178
      %v3219 = vpack.c.bf16 %v3195, %v3187
      %v3220 = vpack.c.bf16 %v3196, %v3188
      %v3221 = vpack.c.bf16 %v3197, %v3189
      %v3222 = vpack.c.bf16 %v3198, %v3190
      %v3223 = vpack.c.bf16 %v3199, %v3191
      %v3224 = vpack.c.bf16 %v3200, %v3192
      %v3225 = vpack.c.bf16 %v3201, %v3193
      %v3226 = vpack.c.bf16 %v3202, %v3194
      %v3227 = vpack.c.bf16 %v3211, %v3203
      %v3228 = vpack.c.bf16 %v3212, %v3204
      %v3229 = vpack.c.bf16 %v3213, %v3205
      %v3230 = vpack.c.bf16 %v3214, %v3206
      %v3231 = vpack.c.bf16 %v3215, %v3207
      %v3232 = vpack.c.bf16 %v3216, %v3208
      %v3233 = vpack.c.bf16 %v3217, %v3209
      %v3234 = vpack.c.bf16 %v3218, %v3210
      %v3235 = vpack.c.bf16 %v3020, %v3020
      %v3236 = vpack.c.bf16 %v3021, %v3021
      %v3237 = vpack.c.bf16 %v3022, %v3022
      %v3238 = vpack.c.bf16 %v3023, %v3023
      %v3239 = vpack.c.bf16 %v3024, %v3024
      %v3240 = vpack.c.bf16 %v3025, %v3025
      %v3241 = vpack.c.bf16 %v3026, %v3026
      %v3242 = vpack.c.bf16 %v3027, %v3027
      %v3243 = vld [vmem:[%s6] sm:$0xf]
      %v3244 = vld [vmem:[%s7] sm:$0xff]
      %3246 = vset.pattern.permute.xlu0 0
      %3247 = vperm.xlu0 %3246, %v3244
      %v3248 = vpop.permute.xlu0 %3247
      %v3251 = vsel %vm1874, %v3243, 0
      %v3254 = vsel %vm1878, %v3235, 0
      %v3257 = vsel %vm1878, %v3236, 0
      %v3260 = vsel %vm1878, %v3237, 0
      %v3263 = vsel %vm1878, %v3238, 0
      %v3266 = vsel %vm1878, %v3239, 0
      %v3269 = vsel %vm1878, %v3240, 0
      %v3272 = vsel %vm1878, %v3241, 0
      %v3275 = vsel %vm1878, %v3242, 0
      %3277 = vmatprep.subr.bf16.mxu0 %v3220
      %3278 = vmatpush1.bf16.msra.mxu0 %v3219
      %3279 = vmatprep.subr.bf16.mxu0 %v3228
      %3280 = vmatpush1.bf16.msra.mxu0 %v3227
      %3281 = vmatprep.subr.bf16.mxu0 %v3257
      %3282 = vmatpush1.bf16.msra.mxu0 %v3254
      %3283 = vmatprep.subr.bf16.mxu0 0
      %3284 = vmatpush1.bf16.msra.mxu0 0
      %3285 = vmatprep.subr.bf16.mxu0 0
      %3286 = vmatpush1.bf16.msra.mxu0 0
      %3287 = vmatprep.subr.bf16.mxu0 0
      %3288 = vmatpush1.bf16.msra.mxu0 0
      %3289 = vmatprep.subr.bf16.mxu0 0
      %3290 = vmatpush1.bf16.msra.mxu0 0
      %3291 = vmatprep.subr.bf16.mxu0 0
      %3292 = vmatpush1.bf16.msra.mxu0 0
      %3293 = vmatprep.subr.bf16.mxu0 0
      %3294 = vmatpush1.bf16.msra.mxu0 0
      %3295 = vmatprep.subr.bf16.mxu0 0
      %3296 = vmatpush1.bf16.msra.mxu0 0
      %3297 = vmatprep.subr.bf16.mxu0 0
      %3298 = vmatpush1.bf16.msra.mxu0 0
      %3299 = vmatprep.subr.bf16.mxu0 0
      %3300 = vmatpush1.bf16.msra.mxu0 0
      %3301 = vmatprep.subr.bf16.mxu0 0
      %3302 = vmatpush1.bf16.msra.mxu0 0
      %3303 = vmatprep.subr.bf16.mxu0 0
      %3304 = vmatpush1.bf16.msra.mxu0 0
      %3305 = vmatprep.subr.bf16.mxu0 0
      %3306 = vmatpush1.bf16.msra.mxu0 0
      %3307 = vmatprep.subr.bf16.mxu0 0
      %3308 = vmatpush1.bf16.msra.mxu0 0
      %3309 = vmatprep.mubr.bf16.mxu0 0
      %3310 = vmatmul.mubr.bf16.gmra.mrb[0].mxu0 %v3251
      %v3311 = vpop.f32.mrb[0].mxu0
      %v3312 = vadd.f32 %v3248, %v3311
      %v3313 = vpop.f32.mrb[0].mxu0
      %v3314 = vadd.f32 %v3248, %v3313
      %v3315 = vpop.f32.mrb[0].mxu0
      %v3316 = vpop.f32.mrb[0].mxu0
      %3317 = vdwg.mxu0
      %3318 = vmatprep.subr.bf16.mxu0 %v3222
      %3319 = vmatpush1.bf16.msra.mxu0 %v3221
      %3320 = vmatprep.subr.bf16.mxu0 %v3230
      %3321 = vmatpush1.bf16.msra.mxu0 %v3229
      %3322 = vmatprep.subr.bf16.mxu0 %v3263
      %3323 = vmatpush1.bf16.msra.mxu0 %v3260
      %3324 = vmatprep.subr.bf16.mxu0 0
      %3325 = vmatpush1.bf16.msra.mxu0 0
      %3326 = vmatprep.subr.bf16.mxu0 0
      %3327 = vmatpush1.bf16.msra.mxu0 0
      %3328 = vmatprep.subr.bf16.mxu0 0
      %3329 = vmatpush1.bf16.msra.mxu0 0
      %3330 = vmatprep.subr.bf16.mxu0 0
      %3331 = vmatpush1.bf16.msra.mxu0 0
      %3332 = vmatprep.subr.bf16.mxu0 0
      %3333 = vmatpush1.bf16.msra.mxu0 0
      %3334 = vmatprep.subr.bf16.mxu0 0
      %3335 = vmatpush1.bf16.msra.mxu0 0
      %3336 = vmatprep.subr.bf16.mxu0 0
      %3337 = vmatpush1.bf16.msra.mxu0 0
      %3338 = vmatprep.subr.bf16.mxu0 0
      %3339 = vmatpush1.bf16.msra.mxu0 0
      %3340 = vmatprep.subr.bf16.mxu0 0
      %3341 = vmatpush1.bf16.msra.mxu0 0
      %3342 = vmatprep.subr.bf16.mxu0 0
      %3343 = vmatpush1.bf16.msra.mxu0 0
      %3344 = vmatprep.subr.bf16.mxu0 0
      %3345 = vmatpush1.bf16.msra.mxu0 0
      %3346 = vmatprep.subr.bf16.mxu0 0
      %3347 = vmatpush1.bf16.msra.mxu0 0
      %3348 = vmatprep.subr.bf16.mxu0 0
      %3349 = vmatpush1.bf16.msra.mxu0 0
      %3350 = vmatprep.mubr.bf16.mxu0 0
      %3351 = vmatmul.mubr.bf16.gmra.mrb[0].mxu0 %v3251
      %v3352 = vpop.f32.mrb[0].mxu0
      %v3353 = vadd.f32 %v3248, %v3352
      %v3354 = vpop.f32.mrb[0].mxu0
      %v3355 = vadd.f32 %v3248, %v3354
      %v3356 = vpop.f32.mrb[0].mxu0
      %v3357 = vpop.f32.mrb[0].mxu0
      %3358 = vdwg.mxu0
      %3359 = vmatprep.subr.bf16.mxu0 %v3224
      %3360 = vmatpush1.bf16.msra.mxu0 %v3223
      %3361 = vmatprep.subr.bf16.mxu0 %v3232
      %3362 = vmatpush1.bf16.msra.mxu0 %v3231
      %3363 = vmatprep.subr.bf16.mxu0 %v3269
      %3364 = vmatpush1.bf16.msra.mxu0 %v3266
      %3365 = vmatprep.subr.bf16.mxu0 0
      %3366 = vmatpush1.bf16.msra.mxu0 0
      %3367 = vmatprep.subr.bf16.mxu0 0
      %3368 = vmatpush1.bf16.msra.mxu0 0
      %3369 = vmatprep.subr.bf16.mxu0 0
      %3370 = vmatpush1.bf16.msra.mxu0 0
      %3371 = vmatprep.subr.bf16.mxu0 0
      %3372 = vmatpush1.bf16.msra.mxu0 0
      %3373 = vmatprep.subr.bf16.mxu0 0
      %3374 = vmatpush1.bf16.msra.mxu0 0
      %3375 = vmatprep.subr.bf16.mxu0 0
      %3376 = vmatpush1.bf16.msra.mxu0 0
      %3377 = vmatprep.subr.bf16.mxu0 0
      %3378 = vmatpush1.bf16.msra.mxu0 0
      %3379 = vmatprep.subr.bf16.mxu0 0
      %3380 = vmatpush1.bf16.msra.mxu0 0
      %3381 = vmatprep.subr.bf16.mxu0 0
      %3382 = vmatpush1.bf16.msra.mxu0 0
      %3383 = vmatprep.subr.bf16.mxu0 0
      %3384 = vmatpush1.bf16.msra.mxu0 0
      %3385 = vmatprep.subr.bf16.mxu0 0
      %3386 = vmatpush1.bf16.msra.mxu0 0
      %3387 = vmatprep.subr.bf16.mxu0 0
      %3388 = vmatpush1.bf16.msra.mxu0 0
      %3389 = vmatprep.subr.bf16.mxu0 0
      %3390 = vmatpush1.bf16.msra.mxu0 0
      %3391 = vmatprep.mubr.bf16.mxu0 0
      %3392 = vmatmul.mubr.bf16.gmra.mrb[0].mxu0 %v3251
      %v3393 = vpop.f32.mrb[0].mxu0
      %v3394 = vadd.f32 %v3248, %v3393
      %v3395 = vpop.f32.mrb[0].mxu0
      %v3396 = vadd.f32 %v3248, %v3395
      %v3397 = vpop.f32.mrb[0].mxu0
      %v3398 = vpop.f32.mrb[0].mxu0
      %3399 = vdwg.mxu0
      %3400 = vmatprep.subr.bf16.mxu0 %v3226
      %3401 = vmatpush1.bf16.msra.mxu0 %v3225
      %3402 = vmatprep.subr.bf16.mxu0 %v3234
      %3403 = vmatpush1.bf16.msra.mxu0 %v3233
      %3404 = vmatprep.subr.bf16.mxu0 %v3275
      %3405 = vmatpush1.bf16.msra.mxu0 %v3272
      %3406 = vmatprep.subr.bf16.mxu0 0
      %3407 = vmatpush1.bf16.msra.mxu0 0
      %3408 = vmatprep.subr.bf16.mxu0 0
      %3409 = vmatpush1.bf16.msra.mxu0 0
      %3410 = vmatprep.subr.bf16.mxu0 0
      %3411 = vmatpush1.bf16.msra.mxu0 0
      %3412 = vmatprep.subr.bf16.mxu0 0
      %3413 = vmatpush1.bf16.msra.mxu0 0
      %3414 = vmatprep.subr.bf16.mxu0 0
      %3415 = vmatpush1.bf16.msra.mxu0 0
      %3416 = vmatprep.subr.bf16.mxu0 0
      %3417 = vmatpush1.bf16.msra.mxu0 0
      %3418 = vmatprep.subr.bf16.mxu0 0
      %3419 = vmatpush1.bf16.msra.mxu0 0
      %3420 = vmatprep.subr.bf16.mxu0 0
      %3421 = vmatpush1.bf16.msra.mxu0 0
      %3422 = vmatprep.subr.bf16.mxu0 0
      %3423 = vmatpush1.bf16.msra.mxu0 0
      %3424 = vmatprep.subr.bf16.mxu0 0
      %3425 = vmatpush1.bf16.msra.mxu0 0
      %3426 = vmatprep.subr.bf16.mxu0 0
      %3427 = vmatpush1.bf16.msra.mxu0 0
      %3428 = vmatprep.subr.bf16.mxu0 0
      %3429 = vmatpush1.bf16.msra.mxu0 0
      %3430 = vmatprep.subr.bf16.mxu0 0
      %3431 = vmatpush1.bf16.msra.mxu0 0
      %3432 = vmatprep.mubr.bf16.mxu0 0
      %3433 = vmatmul.mubr.bf16.gmra.mrb[0].mxu0 %v3251
      %v3434 = vpop.f32.mrb[0].mxu0
      %v3435 = vadd.f32 %v3248, %v3434
      %v3436 = vpop.f32.mrb[0].mxu0
      %v3437 = vadd.f32 %v3248, %v3436
      %v3438 = vpop.f32.mrb[0].mxu0
      %v3439 = vpop.f32.mrb[0].mxu0
      %3440 = vdwg.mxu0
      %3441 = vst [vmem:[%s305] sm:$0xff] %v3312
      %3442 = vst [vmem:[%s305 + $0x8] sm:$0xff] %v3314
      %3443 = vst [vmem:[%s305 + $0x10] sm:$0xff] %v3353
      %3444 = vst [vmem:[%s305 + $0x18] sm:$0xff] %v3355
      %3445 = vst [vmem:[%s305 + $0x20] sm:$0xff] %v3394
      %3446 = vst [vmem:[%s305 + $0x28] sm:$0xff] %v3396
      %3447 = vst [vmem:[%s305 + $0x30] sm:$0xff] %v3435
      %3448 = vst [vmem:[%s305 + $0x38] sm:$0xff] %v3437
      %p3449 = scmp.lt.s32.totalorder %s19, 1
      %s3450 = scalar_select %p3449, %s19, 1
      %s3451 = smul.addr %s3450, 8
      %s3452 = smul.addr %s3451, 8
      %s3453 = scalar_lea.vmem %s8, %s3452
      // Predicated region
      $region53: #{recon_model_forward.1} parent=51 // pred_check
        %p3454 = pneg %p210
      $region54: #{recon_model_forward.1} parent=51 // pred_check_branch
        %3456 = sbr.rel (%p3454) target = $region56
      $region55: #{recon_model_forward.1} parent=51 // pred_region
        _
      $region56: #{recon_model_forward.1} parent=51 // pred_fallthru
        _
    $region52: #{recon_model_forward.1} parent=5 // pred_fallthru
      _
    %p3457 = scmp.le.s32.totalorder 2, %s14
    // Predicated region
    $region57: #{recon_model_forward.1} parent=5 // pred_check
      %p3458 = pneg %p3457
    $region58: #{recon_model_forward.1} parent=5 // pred_check_branch
      %3460 = sbr.rel (%p3458) target = $region60
    $region59: #{recon_model_forward.1} parent=5 // pred_region
      %s3461 = ssub.s32 %s14, 2
      // Predicated region
      $region61: #{recon_model_forward.1} parent=59 // pred_check
        %p3462 = pneg %p216
      $region62: #{recon_model_forward.1} parent=59 // pred_check_branch
        %3464 = sbr.rel (%p3462) target = $region64
      $region63: #{recon_model_forward.1} parent=59 // pred_region
        %p3465 = scmp.lt.s32.totalorder %s20, 1
        %s3466 = scalar_select %p3465, %s20, 1
        %s3467 = smul.addr %s3466, 8
        %s3468 = smul.addr %s3467, 8
        %s3469 = scalar_lea.vmem %s8, %s3468
      $region64: #{recon_model_forward.1} parent=59 // pred_fallthru
        _
    $region60: #{recon_model_forward.1} parent=5 // pred_fallthru
      _
  $region6: #{recon_model_forward.1} parent=0 // loop_footer
    %s18 = sadd.s32 1, %s14
  $region7: #{recon_model_forward.1} parent=0 // loop_footer_branch
    %13 = sbr.rel target = $region3
  $region8: #{recon_model_forward.1} parent=0 // loop_exit
    _

</llo_original>
